<compile_context>
chip_gen: v7x
topology: tpu7x:2x2x1
jax: 0.10.0
libtpu: 0.0.40
codegen_flags: <defaults>
</compile_context>

<pallas_src>
import functools

import jax
import jax.numpy as jnp
from jax.experimental import pallas as pl
from jax.experimental.pallas import tpu as pltpu

EPS_BN = 1e-5
EPS_LN = 1e-5

VMEM_SPEC = pl.BlockSpec(memory_space=pltpu.MemorySpace.VMEM)
SMEM_SPEC = pl.BlockSpec(memory_space=pltpu.MemorySpace.SMEM)


# ---------------------------------------------------------------------------
# Kernel 1 (fused): expand 1x1 + BN + ReLU -> depthwise kxk (stride) + BN + ReLU
#                   -> project 1x1 + BN, plus spatial GAP of the projected output.
# Grid = (batch, output-row tiles).  The expanded activation for the whole image
# is kept in the padded VMEM scratch h1p_ref (built once per batch at row-tile 0).
# ---------------------------------------------------------------------------
def _fused_block_kernel(x_ref, w1_ref, s1_ref, b1_ref, wdw_ref, s2_ref, b2_ref,
                        w3_ref, s3_ref, b3_ref, y_ref, gap_ref, h1p_ref,
                        *, k, stride, inv_hw):
    th = pl.program_id(1)

    H, W, c_in = x_ref.shape[1], x_ref.shape[2], x_ref.shape[3]
    mid = w1_ref.shape[1]
    tile_h, w_out, c_out = y_ref.shape[1], y_ref.shape[2], y_ref.shape[3]
    pad = k // 2
    wp = h1p_ref.shape[1]            # 8-aligned padded scratch width

    # --- once per batch image: expansion 1x1 (+BN+ReLU) into the padded scratch.
    # c_in is tiny, so a VPU broadcast-MAC is used (no reshapes, no MXU latency).
    @pl.when(th == 0)
    def _():
        xb = x_ref[0]                                       # (H, W, c_in)
        h1 = jnp.zeros((H, W, mid), jnp.float32)
        for c in range(c_in):
            h1 = h1 + xb[:, :, c:c + 1] * w1_ref[c:c + 1, :]
        h1 = jnp.maximum(h1 * s1_ref[...] + b1_ref[...], 0.0)
        h1p_ref[...] = jnp.zeros_like(h1p_ref)              # zero halo (on-chip pad)
        h1p_ref[pad:pad + H, pad:pad + W, :] = h1
        gap_ref[...] = jnp.zeros_like(gap_ref)

    oh0 = th * tile_h                                       # first output row of tile

    # --- depthwise kxk + BN + ReLU on this row tile (stride handled here).
    if stride == 1:
        win = h1p_ref[pl.ds(oh0, tile_h + k - 1), :, :]     # (tile_h+k-1, wp, mid)
        acc = jnp.zeros((tile_h, wp, mid), jnp.float32)
        for j in range(k):
            # shift W-taps with the XLU instead of misaligned sublane slices
            sh = win if j == 0 else pltpu.roll(win, shift=wp - j, axis=1)
            for i in range(k):
                w_tap = wdw_ref[i * k + j:i * k + j + 1, :]        # (1, mid)
                acc = acc + sh[i:i + tile_h, :, :] * w_tap
        dw = acc[:, :w_out, :]
    else:
        dw = jnp.zeros((tile_h, w_out, mid), jnp.float32)
        for i in range(k):
            for j in range(k):
                patch = h1p_ref[pl.ds(oh0 * stride + i, tile_h, stride=stride),
                                pl.ds(j, w_out, stride=stride), :]
                w_tap = wdw_ref[i * k + j:i * k + j + 1, :]
                dw = dw + patch * w_tap
    dw = jnp.maximum(dw * s2_ref[...] + b2_ref[...], 0.0)

    # --- projection 1x1 + BN (no ReLU) on the bf16 MXU path, f32 accumulation.
    y2d = jnp.dot(dw.reshape(tile_h * w_out, mid).astype(jnp.bfloat16),
                  w3_ref[...].astype(jnp.bfloat16),
                  preferred_element_type=jnp.float32)
    y2d = y2d * s3_ref[...] + b3_ref[...]

    # GAP folded in: accumulate the per-channel partial mean of this row tile.
    gap_ref[...] += jnp.sum(y2d, axis=0, keepdims=True)[None] * inv_hw

    # Store the tile (bf16 intermediate in HBM); per-row stores keep ranks stable.
    yb = y2d.astype(y_ref.dtype)
    for r in range(tile_h):
        y_ref[0, r, :, :] = yb[r * w_out:(r + 1) * w_out, :]


# ---------------------------------------------------------------------------
# Kernel 2: SE/DCA head on (B, C) tensors only.
#   gap (from the fused kernel); optional att_fc(pre_att); Conv2d(2,1,1) mixing
#   of (gap, pre_att); LayerNorm + ReLU; fc = Linear-ReLU-Linear-Sigmoid.
#   Outputs: all_att (B, C) and gap*all_att (B, C).
# ---------------------------------------------------------------------------
def _se_kernel(*refs, has_att_fc, pre_is_none):
    if pre_is_none:
        (gap_ref, fw1, fb1, fw2, fb2, att_ref, gapatt_ref) = refs
    elif has_att_fc:
        (gap_ref, pre_ref, aw1, ab1, lg1, lb1, aw2, ab2, lg2, lb2,
         cw, cb, cg, cbb, fw1, fb1, fw2, fb2, att_ref, gapatt_ref) = refs
    else:
        (gap_ref, pre_ref, cw, cb, cg, cbb,
         fw1, fb1, fw2, fb2, att_ref, gapatt_ref) = refs

    def layernorm(v, g_ref, b_ref):
        mu = jnp.mean(v, axis=-1, keepdims=True)
        var = jnp.mean((v - mu) ** 2, axis=-1, keepdims=True)
        return (v - mu) * jax.lax.rsqrt(var + EPS_LN) * g_ref[...] + b_ref[...]

    gap = gap_ref[...]                                      # (B, C)

    if pre_is_none:
        a = gap
    else:
        if has_att_fc:
            h = jnp.dot(pre_ref[...], aw1[...],
                        preferred_element_type=jnp.float32) + ab1[...]
            h = jnp.maximum(layernorm(h, lg1, lb1), 0.0)
            p = jnp.dot(h, aw2[...],
                        preferred_element_type=jnp.float32) + ab2[...]
            p = jnp.maximum(layernorm(p, lg2, lb2), 0.0)
        else:
            p = pre_ref[...]
        # Conv2d(2, 1, 1) over the stacked (gap, pre_att) "channels" (gap is ch 0)
        a = cw[0, 0] * gap + cw[0, 1] * p + cb[0, 0]
        a = jnp.maximum(layernorm(a, cg, cbb), 0.0)

    f = jnp.maximum(
        jnp.dot(a, fw1[...], preferred_element_type=jnp.float32) + fb1[...], 0.0)
    att = jax.nn.sigmoid(
        jnp.dot(f, fw2[...], preferred_element_type=jnp.float32) + fb2[...])

    att_ref[...] = att
    gapatt_ref[...] = gap * att


# ---------------------------------------------------------------------------
# Kernel 3: channel rescale of the feature map (+ optional residual add),
#           row-tiled over (batch, output-row tiles).
# ---------------------------------------------------------------------------
def _scale_residual_kernel(*refs, residual):
    if residual:
        y_ref, att_ref, x_ref, o_ref = refs
    else:
        y_ref, att_ref, o_ref = refs
    out = y_ref[...].astype(jnp.float32) * att_ref[...]     # (1,TH,Wo,C) * (1,1,C)
    if residual:
        out = out + x_ref[...]
    o_ref[...] = out.astype(o_ref.dtype)


# ---------------------------------------------------------------------------
# Parameters (deterministic, synthetic; BN folded to inference scale/bias)
# ---------------------------------------------------------------------------
def init_params(key, in_ch, out_ch, kernel_size, expansion, reduction):
    mid = in_ch * expansion
    cr = out_ch // reduction
    keys = iter(jax.random.split(key, 40))

    def nrm(shape, scale=0.2):
        return scale * jax.random.normal(next(keys), shape, jnp.float32)

    def bn_fold(c):
        gamma = 1.0 + 0.1 * jax.random.normal(next(keys), (1, c), jnp.float32)
        beta = 0.1 * jax.random.normal(next(keys), (1, c), jnp.float32)
        mean = 0.1 * jax.random.normal(next(keys), (1, c), jnp.float32)
        var = 1.0 + 0.1 * jnp.abs(jax.random.normal(next(keys), (1, c), jnp.float32))
        s = gamma / jnp.sqrt(var + EPS_BN)
        b = beta - mean * s
        return s, b

    def ln_params(c):
        g = 1.0 + 0.05 * jax.random.normal(next(keys), (1, c), jnp.float32)
        b = 0.05 * jax.random.normal(next(keys), (1, c), jnp.float32)
        return g, b

    p = {}
    p["w1"] = nrm((in_ch, mid))                       # expansion 1x1
    p["bn1_s"], p["bn1_b"] = bn_fold(mid)
    p["wdw"] = nrm((kernel_size * kernel_size, mid))  # depthwise kxk (taps x C)
    p["bn2_s"], p["bn2_b"] = bn_fold(mid)
    p["w3"] = nrm((mid, out_ch))                      # projection 1x1
    p["bn3_s"], p["bn3_b"] = bn_fold(out_ch)
    if in_ch != out_ch:                               # SELayer.att_fc
        p["aw1"] = nrm((in_ch, cr))
        p["ab1"] = nrm((1, cr))
        p["aln1_g"], p["aln1_b"] = ln_params(cr)
        p["aw2"] = nrm((cr, out_ch))
        p["ab2"] = nrm((1, out_ch))
        p["aln2_g"], p["aln2_b"] = ln_params(out_ch)
    p["cw"] = nrm((1, 2))                             # Conv2d(2,1,1) weight
    p["cb"] = nrm((1, 1))                             # Conv2d(2,1,1) bias
    p["cln_g"], p["cln_b"] = ln_params(out_ch)
    p["fw1"] = nrm((out_ch, cr))
    p["fb1"] = nrm((1, cr))
    p["fw2"] = nrm((cr, out_ch))
    p["fb2"] = nrm((1, out_ch))
    return p


def _row_tile(h_out):
    for t in (8, 4, 2):
        if h_out % t == 0:
            return t
    return 1


# ---------------------------------------------------------------------------
# Forward pass (wrapper = boundary transposes; all hot paths in Pallas kernels)
# ---------------------------------------------------------------------------
@functools.partial(jax.jit, static_argnames=("kernel_size", "stride", "in_ch", "out_ch"))
def inverted_residual_forward(params, x_nchw, pre_att, *, kernel_size, stride,
                              in_ch, out_ch):
    B, _, H, W = x_nchw.shape
    mid = params["w1"].shape[1]
    pad = kernel_size // 2
    h_out = (H + 2 * pad - kernel_size) // stride + 1
    w_out = (W + 2 * pad - kernel_size) // stride + 1
    tile_h = _row_tile(h_out)
    n_h = h_out // tile_h
    wp = ((W + 2 * pad + 7) // 8) * 8                 # 8-aligned scratch width
    kk = kernel_size * kernel_size

    x = jnp.transpose(x_nchw, (0, 2, 3, 1)).astype(jnp.float32)   # NHWC

    # --- fused expand + depthwise + project (+ GAP) --------------------------
    y, gap3 = pl.pallas_call(
        functools.partial(_fused_block_kernel, k=kernel_size, stride=stride,
                          inv_hw=1.0 / float(h_out * w_out)),
        out_shape=(
            jax.ShapeDtypeStruct((B, h_out, w_out, out_ch), jnp.bfloat16),
            jax.ShapeDtypeStruct((B, 1, out_ch), jnp.float32),
        ),
        grid=(B, n_h),
        in_specs=[
            pl.BlockSpec((1, H, W, in_ch), lambda b, t: (b, 0, 0, 0)),
            pl.BlockSpec((in_ch, mid), lambda b, t: (0, 0)),
            pl.BlockSpec((1, mid), lambda b, t: (0, 0)),
            pl.BlockSpec((1, mid), lambda b, t: (0, 0)),
            pl.BlockSpec((kk, mid), lambda b, t: (0, 0)),
            pl.BlockSpec((1, mid), lambda b, t: (0, 0)),
            pl.BlockSpec((1, mid), lambda b, t: (0, 0)),
            pl.BlockSpec((mid, out_ch), lambda b, t: (0, 0)),
            pl.BlockSpec((1, out_ch), lambda b, t: (0, 0)),
            pl.BlockSpec((1, out_ch), lambda b, t: (0, 0)),
        ],
        out_specs=(
            pl.BlockSpec((1, tile_h, w_out, out_ch), lambda b, t: (b, t, 0, 0)),
            pl.BlockSpec((1, 1, out_ch), lambda b, t: (b, 0, 0)),
        ),
        scratch_shapes=[pltpu.VMEM((H + 2 * pad, wp, mid), jnp.float32)],
        compiler_params=pltpu.CompilerParams(
            dimension_semantics=("parallel", "arbitrary")),
    )(x, params["w1"], params["bn1_s"], params["bn1_b"],
      params["wdw"], params["bn2_s"], params["bn2_b"],
      params["w3"], params["bn3_s"], params["bn3_b"])
    gap = gap3.reshape(B, out_ch)

    # --- SE / DCA head (only (B, C) tensors) ---------------------------------
    has_att_fc = (in_ch != out_ch)
    pre_is_none = pre_att is None
    se_args = [gap]
    se_specs = [VMEM_SPEC]
    if not pre_is_none:
        se_args.append(pre_att.astype(jnp.float32))
        se_specs.append(VMEM_SPEC)
        if has_att_fc:
            se_args += [params["aw1"], params["ab1"], params["aln1_g"],
                        params["aln1_b"], params["aw2"], params["ab2"],
                        params["aln2_g"], params["aln2_b"]]
            se_specs += [VMEM_SPEC] * 8
        se_args += [params["cw"], params["cb"], params["cln_g"], params["cln_b"]]
        se_specs += [SMEM_SPEC, SMEM_SPEC, VMEM_SPEC, VMEM_SPEC]
    se_args += [params["fw1"], params["fb1"], params["fw2"], params["fb2"]]
    se_specs += [VMEM_SPEC] * 4

    att, gap_att = pl.pallas_call(
        functools.partial(_se_kernel, has_att_fc=has_att_fc,
                          pre_is_none=pre_is_none),
        out_shape=(jax.ShapeDtypeStruct((B, out_ch), jnp.float32),
                   jax.ShapeDtypeStruct((B, out_ch), jnp.float32)),
        in_specs=se_specs,
        out_specs=(VMEM_SPEC, VMEM_SPEC),
    )(*se_args)

    # --- channel rescale (+ residual), row tiled -----------------------------
    residual = (in_ch == out_ch) and (stride == 1)
    att3 = att.reshape(B, 1, out_ch)
    rs_specs = [
        pl.BlockSpec((1, tile_h, w_out, out_ch), lambda b, t: (b, t, 0, 0)),
        pl.BlockSpec((1, 1, out_ch), lambda b, t: (b, 0, 0)),
    ]
    rs_args = [y, att3]
    if residual:
        rs_specs.append(pl.BlockSpec((1, tile_h, w_out, out_ch),
                                     lambda b, t: (b, t, 0, 0)))
        rs_args.append(x)
    out_nhwc = pl.pallas_call(
        functools.partial(_scale_residual_kernel, residual=residual),
        out_shape=jax.ShapeDtypeStruct((B, h_out, w_out, out_ch), jnp.float32),
        grid=(B, n_h),
        in_specs=rs_specs,
        out_specs=pl.BlockSpec((1, tile_h, w_out, out_ch),
                               lambda b, t: (b, t, 0, 0)),
        compiler_params=pltpu.CompilerParams(
            dimension_semantics=("parallel", "parallel")),
    )(*rs_args)

    out_nchw = jnp.transpose(out_nhwc, (0, 3, 1, 2))          # back to NCHW
    return {0: out_nchw, 1: gap_att}


if __name__ == "__main__":
    base_key = jax.random.PRNGKey(0)
    B, H, W = 2, 16, 16
    expansion, reduction = 3, 4

    configs = [
        # (in_ch, out_ch, kernel_size, stride)
        (8, 16, 3, 1),    # att_fc SE path, no residual (matches original demo)
        (16, 16, 3, 1),   # residual path (in_ch == out_ch, stride 1)
        (8, 16, 3, 2),    # stride-2 depthwise handled entirely in-kernel
    ]
    for idx, (in_ch, out_ch, ks, stride) in enumerate(configs):
        cfg_key = jax.random.fold_in(base_key, idx)
        kx, kp, kw = jax.random.split(cfg_key, 3)
        x = jax.random.normal(kx, (B, in_ch, H, W), jnp.float32)   # NCHW like PyTorch
        pre_att = jax.random.normal(kp, (B, in_ch), jnp.float32)   # x[1]
        params = init_params(kw, in_ch, out_ch, ks, expansion, reduction)

        out = inverted_residual_forward(params, x, pre_att,
                                        kernel_size=ks, stride=stride,
                                        in_ch=in_ch, out_ch=out_ch)
        jax.block_until_ready(out[0])
        jax.block_until_ready(out[1])

        pad = ks // 2
        ho = (H + 2 * pad - ks) // stride + 1
        assert out[0].shape == (B, out_ch, ho, ho)
        assert out[1].shape == (B, out_ch)

    print("KERNEL_OK")
</pallas_src>

<mosaic_0001>
module attributes {stable_mosaic.version = 11 : i64} {
  func.func @_scale_residual_kernel(%arg0: i32, %arg1: i32, %arg2: memref<1x8x16x16xbf16, #tpu.memory_space<vmem>>, %arg3: memref<1x1x16xf32, #tpu.memory_space<vmem>>, %arg4: memref<1x8x16x16xf32, #tpu.memory_space<vmem>>) attributes {dimension_semantics = [#tpu.dimension_semantics<parallel>, #tpu.dimension_semantics<parallel>], iteration_bounds = array<i64: 2, 2>, scalar_prefetch = 0 : i64, scratch_operands = 0 : i64, tpu.core_type = #tpu.core_type<tc>, window_params = [{transform_indices = @transform_0, window_bounds = array<i64: 1, 8, 16, 16>}, {transform_indices = @transform_1, window_bounds = array<i64: 1, 1, 16>}, {transform_indices = @transform_2, window_bounds = array<i64: 1, 8, 16, 16>}]} {
    %c0 = arith.constant 0 : index
    %c0_0 = arith.constant 0 : index
    %c0_1 = arith.constant 0 : index
    %c0_2 = arith.constant 0 : index
    %0 = vector.load %arg2[%c0, %c0_0, %c0_1, %c0_2] : memref<1x8x16x16xbf16, #tpu.memory_space<vmem>>, vector<1x8x16x16xbf16>
    %1 = arith.extf %0 : vector<1x8x16x16xbf16> to vector<1x8x16x16xf32>
    %c0_3 = arith.constant 0 : index
    %c0_4 = arith.constant 0 : index
    %c0_5 = arith.constant 0 : index
    %2 = vector.load %arg3[%c0_3, %c0_4, %c0_5] : memref<1x1x16xf32, #tpu.memory_space<vmem>>, vector<1x1x16xf32>
    %3 = vector.shape_cast %2 : vector<1x1x16xf32> to vector<1x1x1x16xf32>
    %4 = vector.broadcast %3 : vector<1x1x1x16xf32> to vector<1x8x16x16xf32>
    %5 = arith.mulf %1, %4 : vector<1x8x16x16xf32>
    %c0_6 = arith.constant 0 : index
    %c0_7 = arith.constant 0 : index
    %c0_8 = arith.constant 0 : index
    %c0_9 = arith.constant 0 : index
    %6 = vector.load %arg4[%c0_6, %c0_7, %c0_8, %c0_9] : memref<1x8x16x16xf32, #tpu.memory_space<vmem>>, vector<1x8x16x16xf32>
    tpu.vector_store %arg4[%c0_6, %c0_7, %c0_8, %c0_9], %5 {strides = array<i32>} : memref<1x8x16x16xf32, #tpu.memory_space<vmem>>, vector<1x8x16x16xf32>,
    return
  }
  func.func @transform_0(%arg0: i32, %arg1: i32) -> (i32, i32, i32, i32) {
    %c0_i32 = arith.constant 0 : i32
    %c0_i32_0 = arith.constant 0 : i32
    %c0_i32_1 = arith.constant 0 : i32
    return %arg0, %arg1, %c0_i32, %c0_i32_0 : i32, i32, i32, i32
  }
  func.func @transform_1(%arg0: i32, %arg1: i32) -> (i32, i32, i32) {
    %c0_i32 = arith.constant 0 : i32
    %c0_i32_0 = arith.constant 0 : i32
    %c0_i32_1 = arith.constant 0 : i32
    return %arg0, %c0_i32, %c0_i32_0 : i32, i32, i32
  }
  func.func @transform_2(%arg0: i32, %arg1: i32) -> (i32, i32, i32, i32) {
    %c0_i32 = arith.constant 0 : i32
    %c0_i32_0 = arith.constant 0 : i32
    %c0_i32_1 = arith.constant 0 : i32
    return %arg0, %arg1, %c0_i32, %c0_i32_0 : i32, i32, i32, i32
  }
}

module attributes {stable_mosaic.version = 11 : i64} {
  func.func @_se_kernel(%arg0: memref<2x16xf32, #tpu.memory_space<vmem>>, %arg1: memref<2x8xf32, #tpu.memory_space<vmem>>, %arg2: memref<8x4xf32, #tpu.memory_space<vmem>>, %arg3: memref<1x4xf32, #tpu.memory_space<vmem>>, %arg4: memref<1x4xf32, #tpu.memory_space<vmem>>, %arg5: memref<1x4xf32, #tpu.memory_space<vmem>>, %arg6: memref<4x16xf32, #tpu.memory_space<vmem>>, %arg7: memref<1x16xf32, #tpu.memory_space<vmem>>, %arg8: memref<1x16xf32, #tpu.memory_space<vmem>>, %arg9: memref<1x16xf32, #tpu.memory_space<vmem>>, %arg10: memref<1x2xf32, #tpu.memory_space<smem>>, %arg11: memref<1x1xf32, #tpu.memory_space<smem>>, %arg12: memref<1x16xf32, #tpu.memory_space<vmem>>, %arg13: memref<1x16xf32, #tpu.memory_space<vmem>>, %arg14: memref<16x4xf32, #tpu.memory_space<vmem>>, %arg15: memref<1x4xf32, #tpu.memory_space<vmem>>, %arg16: memref<4x16xf32, #tpu.memory_space<vmem>>, %arg17: memref<1x16xf32, #tpu.memory_space<vmem>>, %arg18: memref<2x16xf32, #tpu.memory_space<vmem>>, %arg19: memref<2x16xf32, #tpu.memory_space<vmem>>) attributes {dimension_semantics = [], scalar_prefetch = 0 : i64, scratch_operands = 0 : i64, tpu.core_type = #tpu.core_type<tc>} {
    %c0 = arith.constant 0 : index
    %c0_0 = arith.constant 0 : index
    %0 = vector.load %arg0[%c0, %c0_0] : memref<2x16xf32, #tpu.memory_space<vmem>>, vector<2x16xf32>
    %c0_1 = arith.constant 0 : index
    %c0_2 = arith.constant 0 : index
    %1 = vector.load %arg1[%c0_1, %c0_2] : memref<2x8xf32, #tpu.memory_space<vmem>>, vector<2x8xf32>
    %c0_3 = arith.constant 0 : index
    %c0_4 = arith.constant 0 : index
    %2 = vector.load %arg2[%c0_3, %c0_4] : memref<8x4xf32, #tpu.memory_space<vmem>>, vector<8x4xf32>
    %cst = arith.constant dense<0.000000e+00> : vector<2x4xf32>
    %3 = tpu.matmul %1, %2, %cst {dimension_numbers = #tpu.dot_dimension_numbers<[1], [0], [0], [1], [0, 0, 1, 1], [], []>} : vector<2x8xf32>, vector<8x4xf32>, vector<2x4xf32> -> vector<2x4xf32>
    %c0_5 = arith.constant 0 : index
    %c0_6 = arith.constant 0 : index
    %4 = vector.load %arg3[%c0_5, %c0_6] : memref<1x4xf32, #tpu.memory_space<vmem>>, vector<1x4xf32>
    %5 = vector.broadcast %4 : vector<1x4xf32> to vector<2x4xf32>
    %6 = arith.addf %3, %5 : vector<2x4xf32>
    %cst_7 = arith.constant dense<0.000000e+00> : vector<2xf32>
    %7 = vector.multi_reduction <add>, %6, %cst_7 [1] : vector<2x4xf32> to vector<2xf32>
    %8 = vector.shape_cast %7 : vector<2xf32> to vector<2x1xf32>
    %cst_8 = arith.constant 4.000000e+00 : f32
    %9 = vector.broadcast %cst_8 : f32 to vector<2x1xf32>
    %10 = arith.divf %8, %9 : vector<2x1xf32>
    %11 = vector.broadcast %10 : vector<2x1xf32> to vector<2x4xf32>
    %12 = arith.subf %6, %11 : vector<2x4xf32>
    %13 = arith.mulf %12, %12 : vector<2x4xf32>
    %cst_9 = arith.constant dense<0.000000e+00> : vector<2xf32>
    %14 = vector.multi_reduction <add>, %13, %cst_9 [1] : vector<2x4xf32> to vector<2xf32>
    %15 = vector.shape_cast %14 : vector<2xf32> to vector<2x1xf32>
    %cst_10 = arith.constant 4.000000e+00 : f32
    %16 = vector.broadcast %cst_10 : f32 to vector<2x1xf32>
    %17 = arith.divf %15, %16 : vector<2x1xf32>
    %18 = vector.broadcast %10 : vector<2x1xf32> to vector<2x4xf32>
    %19 = arith.subf %6, %18 : vector<2x4xf32>
    %cst_11 = arith.constant 9.99999974E-6 : f32
    %20 = vector.broadcast %cst_11 : f32 to vector<2x1xf32>
    %21 = arith.addf %17, %20 : vector<2x1xf32>
    %22 = math.rsqrt %21 : vector<2x1xf32>
    %23 = vector.broadcast %22 : vector<2x1xf32> to vector<2x4xf32>
    %24 = arith.mulf %19, %23 : vector<2x4xf32>
    %c0_12 = arith.constant 0 : index
    %c0_13 = arith.constant 0 : index
    %25 = vector.load %arg4[%c0_12, %c0_13] : memref<1x4xf32, #tpu.memory_space<vmem>>, vector<1x4xf32>
    %26 = vector.broadcast %25 : vector<1x4xf32> to vector<2x4xf32>
    %27 = arith.mulf %24, %26 : vector<2x4xf32>
    %c0_14 = arith.constant 0 : index
    %c0_15 = arith.constant 0 : index
    %28 = vector.load %arg5[%c0_14, %c0_15] : memref<1x4xf32, #tpu.memory_space<vmem>>, vector<1x4xf32>
    %29 = vector.broadcast %28 : vector<1x4xf32> to vector<2x4xf32>
    %30 = arith.addf %27, %29 : vector<2x4xf32>
    %cst_16 = arith.constant 0.000000e+00 : f32
    %31 = vector.broadcast %cst_16 : f32 to vector<2x4xf32>
    %32 = arith.maximumf %30, %31 : vector<2x4xf32>
    %c0_17 = arith.constant 0 : index
    %c0_18 = arith.constant 0 : index
    %33 = vector.load %arg6[%c0_17, %c0_18] : memref<4x16xf32, #tpu.memory_space<vmem>>, vector<4x16xf32>
    %cst_19 = arith.constant dense<0.000000e+00> : vector<2x16xf32>
    %34 = tpu.matmul %32, %33, %cst_19 {dimension_numbers = #tpu.dot_dimension_numbers<[1], [0], [0], [1], [0, 0, 1, 1], [], []>} : vector<2x4xf32>, vector<4x16xf32>, vector<2x16xf32> -> vector<2x16xf32>
    %c0_20 = arith.constant 0 : index
    %c0_21 = arith.constant 0 : index
    %35 = vector.load %arg7[%c0_20, %c0_21] : memref<1x16xf32, #tpu.memory_space<vmem>>, vector<1x16xf32>
    %36 = vector.broadcast %35 : vector<1x16xf32> to vector<2x16xf32>
    %37 = arith.addf %34, %36 : vector<2x16xf32>
    %cst_22 = arith.constant dense<0.000000e+00> : vector<2xf32>
    %38 = vector.multi_reduction <add>, %37, %cst_22 [1] : vector<2x16xf32> to vector<2xf32>
    %39 = vector.shape_cast %38 : vector<2xf32> to vector<2x1xf32>
    %cst_23 = arith.constant 1.600000e+01 : f32
    %40 = vector.broadcast %cst_23 : f32 to vector<2x1xf32>
    %41 = arith.divf %39, %40 : vector<2x1xf32>
    %42 = vector.broadcast %41 : vector<2x1xf32> to vector<2x16xf32>
    %43 = arith.subf %37, %42 : vector<2x16xf32>
    %44 = arith.mulf %43, %43 : vector<2x16xf32>
    %cst_24 = arith.constant dense<0.000000e+00> : vector<2xf32>
    %45 = vector.multi_reduction <add>, %44, %cst_24 [1] : vector<2x16xf32> to vector<2xf32>
    %46 = vector.shape_cast %45 : vector<2xf32> to vector<2x1xf32>
    %cst_25 = arith.constant 1.600000e+01 : f32
    %47 = vector.broadcast %cst_25 : f32 to vector<2x1xf32>
    %48 = arith.divf %46, %47 : vector<2x1xf32>
    %49 = vector.broadcast %41 : vector<2x1xf32> to vector<2x16xf32>
    %50 = arith.subf %37, %49 : vector<2x16xf32>
    %cst_26 = arith.constant 9.99999974E-6 : f32
    %51 = vector.broadcast %cst_26 : f32 to vector<2x1xf32>
    %52 = arith.addf %48, %51 : vector<2x1xf32>
    %53 = math.rsqrt %52 : vector<2x1xf32>
    %54 = vector.broadcast %53 : vector<2x1xf32> to vector<2x16xf32>
    %55 = arith.mulf %50, %54 : vector<2x16xf32>
    %c0_27 = arith.constant 0 : index
    %c0_28 = arith.constant 0 : index
    %56 = vector.load %arg8[%c0_27, %c0_28] : memref<1x16xf32, #tpu.memory_space<vmem>>, vector<1x16xf32>
    %57 = vector.broadcast %56 : vector<1x16xf32> to vector<2x16xf32>
    %58 = arith.mulf %55, %57 : vector<2x16xf32>
    %c0_29 = arith.constant 0 : index
    %c0_30 = arith.constant 0 : index
    %59 = vector.load %arg9[%c0_29, %c0_30] : memref<1x16xf32, #tpu.memory_space<vmem>>, vector<1x16xf32>
    %60 = vector.broadcast %59 : vector<1x16xf32> to vector<2x16xf32>
    %61 = arith.addf %58, %60 : vector<2x16xf32>
    %cst_31 = arith.constant 0.000000e+00 : f32
    %62 = vector.broadcast %cst_31 : f32 to vector<2x16xf32>
    %63 = arith.maximumf %61, %62 : vector<2x16xf32>
    %c0_32 = arith.constant 0 : index
    %c0_33 = arith.constant 0 : index
    %64 = memref.load %arg10[%c0_32, %c0_33] : memref<1x2xf32, #tpu.memory_space<smem>>
    %65 = vector.broadcast %64 : f32 to vector<2x16xf32>
    %66 = arith.mulf %65, %0 : vector<2x16xf32>
    %c0_34 = arith.constant 0 : index
    %c1 = arith.constant 1 : index
    %67 = memref.load %arg10[%c0_34, %c1] : memref<1x2xf32, #tpu.memory_space<smem>>
    %68 = vector.broadcast %67 : f32 to vector<2x16xf32>
    %69 = arith.mulf %68, %63 : vector<2x16xf32>
    %70 = arith.addf %66, %69 : vector<2x16xf32>
    %c0_35 = arith.constant 0 : index
    %c0_36 = arith.constant 0 : index
    %71 = memref.load %arg11[%c0_35, %c0_36] : memref<1x1xf32, #tpu.memory_space<smem>>
    %72 = vector.broadcast %71 : f32 to vector<2x16xf32>
    %73 = arith.addf %70, %72 : vector<2x16xf32>
    %cst_37 = arith.constant dense<0.000000e+00> : vector<2xf32>
    %74 = vector.multi_reduction <add>, %73, %cst_37 [1] : vector<2x16xf32> to vector<2xf32>
    %75 = vector.shape_cast %74 : vector<2xf32> to vector<2x1xf32>
    %cst_38 = arith.constant 1.600000e+01 : f32
    %76 = vector.broadcast %cst_38 : f32 to vector<2x1xf32>
    %77 = arith.divf %75, %76 : vector<2x1xf32>
    %78 = vector.broadcast %77 : vector<2x1xf32> to vector<2x16xf32>
    %79 = arith.subf %73, %78 : vector<2x16xf32>
    %80 = arith.mulf %79, %79 : vector<2x16xf32>
    %cst_39 = arith.constant dense<0.000000e+00> : vector<2xf32>
    %81 = vector.multi_reduction <add>, %80, %cst_39 [1] : vector<2x16xf32> to vector<2xf32>
    %82 = vector.shape_cast %81 : vector<2xf32> to vector<2x1xf32>
    %cst_40 = arith.constant 1.600000e+01 : f32
    %83 = vector.broadcast %cst_40 : f32 to vector<2x1xf32>
    %84 = arith.divf %82, %83 : vector<2x1xf32>
    %85 = vector.broadcast %77 : vector<2x1xf32> to vector<2x16xf32>
    %86 = arith.subf %73, %85 : vector<2x16xf32>
    %cst_41 = arith.constant 9.99999974E-6 : f32
    %87 = vector.broadcast %cst_41 : f32 to vector<2x1xf32>
    %88 = arith.addf %84, %87 : vector<2x1xf32>
    %89 = math.rsqrt %88 : vector<2x1xf32>
    %90 = vector.broadcast %89 : vector<2x1xf32> to vector<2x16xf32>
    %91 = arith.mulf %86, %90 : vector<2x16xf32>
    %c0_42 = arith.constant 0 : index
    %c0_43 = arith.constant 0 : index
    %92 = vector.load %arg12[%c0_42, %c0_43] : memref<1x16xf32, #tpu.memory_space<vmem>>, vector<1x16xf32>
    %93 = vector.broadcast %92 : vector<1x16xf32> to vector<2x16xf32>
    %94 = arith.mulf %91, %93 : vector<2x16xf32>
    %c0_44 = arith.constant 0 : index
    %c0_45 = arith.constant 0 : index
    %95 = vector.load %arg13[%c0_44, %c0_45] : memref<1x16xf32, #tpu.memory_space<vmem>>, vector<1x16xf32>
    %96 = vector.broadcast %95 : vector<1x16xf32> to vector<2x16xf32>
    %97 = arith.addf %94, %96 : vector<2x16xf32>
    %cst_46 = arith.constant 0.000000e+00 : f32
    %98 = vector.broadcast %cst_46 : f32 to vector<2x16xf32>
    %99 = arith.maximumf %97, %98 : vector<2x16xf32>
    %c0_47 = arith.constant 0 : index
    %c0_48 = arith.constant 0 : index
    %100 = vector.load %arg14[%c0_47, %c0_48] : memref<16x4xf32, #tpu.memory_space<vmem>>, vector<16x4xf32>
    %cst_49 = arith.constant dense<0.000000e+00> : vector<2x4xf32>
    %101 = tpu.matmul %99, %100, %cst_49 {dimension_numbers = #tpu.dot_dimension_numbers<[1], [0], [0], [1], [0, 0, 1, 1], [], []>} : vector<2x16xf32>, vector<16x4xf32>, vector<2x4xf32> -> vector<2x4xf32>
    %c0_50 = arith.constant 0 : index
    %c0_51 = arith.constant 0 : index
    %102 = vector.load %arg15[%c0_50, %c0_51] : memref<1x4xf32, #tpu.memory_space<vmem>>, vector<1x4xf32>
    %103 = vector.broadcast %102 : vector<1x4xf32> to vector<2x4xf32>
    %104 = arith.addf %101, %103 : vector<2x4xf32>
    %cst_52 = arith.constant 0.000000e+00 : f32
    %105 = vector.broadcast %cst_52 : f32 to vector<2x4xf32>
    %106 = arith.maximumf %104, %105 : vector<2x4xf32>
    %c0_53 = arith.constant 0 : index
    %c0_54 = arith.constant 0 : index
    %107 = vector.load %arg16[%c0_53, %c0_54] : memref<4x16xf32, #tpu.memory_space<vmem>>, vector<4x16xf32>
    %cst_55 = arith.constant dense<0.000000e+00> : vector<2x16xf32>
    %108 = tpu.matmul %106, %107, %cst_55 {dimension_numbers = #tpu.dot_dimension_numbers<[1], [0], [0], [1], [0, 0, 1, 1], [], []>} : vector<2x4xf32>, vector<4x16xf32>, vector<2x16xf32> -> vector<2x16xf32>
    %c0_56 = arith.constant 0 : index
    %c0_57 = arith.constant 0 : index
    %109 = vector.load %arg17[%c0_56, %c0_57] : memref<1x16xf32, #tpu.memory_space<vmem>>, vector<1x16xf32>
    %110 = vector.broadcast %109 : vector<1x16xf32> to vector<2x16xf32>
    %111 = arith.addf %108, %110 : vector<2x16xf32>
    %112 = arith.negf %111 : vector<2x16xf32>
    %113 = math.exp %112 : vector<2x16xf32>
    %cst_58 = arith.constant 1.000000e+00 : f32
    %114 = vector.broadcast %cst_58 : f32 to vector<2x16xf32>
    %115 = arith.addf %114, %113 : vector<2x16xf32>
    %116 = arith.divf %114, %115 : vector<2x16xf32>
    %c0_59 = arith.constant 0 : index
    %c0_60 = arith.constant 0 : index
    %117 = vector.load %arg18[%c0_59, %c0_60] : memref<2x16xf32, #tpu.memory_space<vmem>>, vector<2x16xf32>
    tpu.vector_store %arg18[%c0_59, %c0_60], %116 {strides = array<i32>} : memref<2x16xf32, #tpu.memory_space<vmem>>, vector<2x16xf32>,
    %118 = arith.mulf %0, %116 : vector<2x16xf32>
    %c0_61 = arith.constant 0 : index
    %c0_62 = arith.constant 0 : index
    %119 = vector.load %arg19[%c0_61, %c0_62] : memref<2x16xf32, #tpu.memory_space<vmem>>, vector<2x16xf32>
    tpu.vector_store %arg19[%c0_61, %c0_62], %118 {strides = array<i32>} : memref<2x16xf32, #tpu.memory_space<vmem>>, vector<2x16xf32>,
    return
  }
}

module attributes {stable_mosaic.version = 11 : i64} {
  func.func @_fused_block_kernel(%arg0: i32, %arg1: i32, %arg2: memref<1x16x16x8xf32, #tpu.memory_space<vmem>>, %arg3: memref<8x24xf32, #tpu.memory_space<vmem>>, %arg4: memref<1x24xf32, #tpu.memory_space<vmem>>, %arg5: memref<1x24xf32, #tpu.memory_space<vmem>>, %arg6: memref<9x24xf32, #tpu.memory_space<vmem>>, %arg7: memref<1x24xf32, #tpu.memory_space<vmem>>, %arg8: memref<1x24xf32, #tpu.memory_space<vmem>>, %arg9: memref<24x16xf32, #tpu.memory_space<vmem>>, %arg10: memref<1x16xf32, #tpu.memory_space<vmem>>, %arg11: memref<1x16xf32, #tpu.memory_space<vmem>>, %arg12: memref<1x8x16x16xbf16, #tpu.memory_space<vmem>>, %arg13: memref<1x1x16xf32, #tpu.memory_space<vmem>>, %arg14: memref<18x24x24xf32, #tpu.memory_space<vmem>>) attributes {dimension_semantics = [#tpu.dimension_semantics<parallel>, #tpu.dimension_semantics<arbitrary>], iteration_bounds = array<i64: 2, 2>, scalar_prefetch = 0 : i64, scratch_operands = 1 : i64, tpu.core_type = #tpu.core_type<tc>, window_params = [{transform_indices = @transform_0, window_bounds = array<i64: 1, 16, 16, 8>}, {pipeline_mode = #tpu.pipeline_mode<synchronous>, transform_indices = @transform_1, window_bounds = array<i64: 8, 24>}, {pipeline_mode = #tpu.pipeline_mode<synchronous>, transform_indices = @transform_2, window_bounds = array<i64: 1, 24>}, {pipeline_mode = #tpu.pipeline_mode<synchronous>, transform_indices = @transform_3, window_bounds = array<i64: 1, 24>}, {pipeline_mode = #tpu.pipeline_mode<synchronous>, transform_indices = @transform_4, window_bounds = array<i64: 9, 24>}, {pipeline_mode = #tpu.pipeline_mode<synchronous>, transform_indices = @transform_5, window_bounds = array<i64: 1, 24>}, {pipeline_mode = #tpu.pipeline_mode<synchronous>, transform_indices = @transform_6, window_bounds = array<i64: 1, 24>}, {pipeline_mode = #tpu.pipeline_mode<synchronous>, transform_indices = @transform_7, window_bounds = array<i64: 24, 16>}, {pipeline_mode = #tpu.pipeline_mode<synchronous>, transform_indices = @transform_8, window_bounds = array<i64: 1, 16>}, {pipeline_mode = #tpu.pipeline_mode<synchronous>, transform_indices = @transform_9, window_bounds = array<i64: 1, 16>}, {transform_indices = @transform_10, window_bounds = array<i64: 1, 8, 16, 16>}, {transform_indices = @transform_11, window_bounds = array<i64: 1, 1, 16>}]} {
    %c0_i32 = arith.constant 0 : i32
    %0 = arith.cmpi eq, %arg1, %c0_i32 : i32
    %1 = arith.extui %0 : i1 to i32
    %c0_i32_0 = arith.constant 0 : i32
    %2 = arith.cmpi ne, %1, %c0_i32_0 : i32
    scf.if %2 {
      %c0_64 = arith.constant 0 : index
      %c0_65 = arith.constant 0 : index
      %c0_66 = arith.constant 0 : index
      %c0_67 = arith.constant 0 : index
      %126 = vector.load %arg2[%c0_64, %c0_65, %c0_66, %c0_67] : memref<1x16x16x8xf32, #tpu.memory_space<vmem>>, vector<1x16x16x8xf32>
      %127 = vector.shape_cast %126 : vector<1x16x16x8xf32> to vector<16x16x8xf32>
      %cst_68 = arith.constant 0.000000e+00 : f32
      %128 = vector.broadcast %cst_68 : f32 to vector<16x16x24xf32>
      %129 = vector.extract_strided_slice %127 {offsets = [0, 0, 0], sizes = [16, 16, 1], strides = [1, 1, 1]} : vector<16x16x8xf32> to vector<16x16x1xf32>
      %c0_69 = arith.constant 0 : index
      %c0_70 = arith.constant 0 : index
      %130 = vector.load %arg3[%c0_69, %c0_70] : memref<8x24xf32, #tpu.memory_space<vmem>>, vector<1x24xf32>
      %131 = vector.shape_cast %130 : vector<1x24xf32> to vector<1x1x24xf32>
      %132 = vector.broadcast %129 : vector<16x16x1xf32> to vector<16x16x24xf32>
      %133 = vector.broadcast %131 : vector<1x1x24xf32> to vector<16x16x24xf32>
      %134 = arith.mulf %132, %133 : vector<16x16x24xf32>
      %135 = arith.addf %128, %134 : vector<16x16x24xf32>
      %136 = vector.extract_strided_slice %127 {offsets = [0, 0, 1], sizes = [16, 16, 1], strides = [1, 1, 1]} : vector<16x16x8xf32> to vector<16x16x1xf32>
      %c1_71 = arith.constant 1 : index
      %c0_72 = arith.constant 0 : index
      %137 = vector.load %arg3[%c1_71, %c0_72] : memref<8x24xf32, #tpu.memory_space<vmem>>, vector<1x24xf32>
      %138 = vector.shape_cast %137 : vector<1x24xf32> to vector<1x1x24xf32>
      %139 = vector.broadcast %136 : vector<16x16x1xf32> to vector<16x16x24xf32>
      %140 = vector.broadcast %138 : vector<1x1x24xf32> to vector<16x16x24xf32>
      %141 = arith.mulf %139, %140 : vector<16x16x24xf32>
      %142 = arith.addf %135, %141 : vector<16x16x24xf32>
      %143 = vector.extract_strided_slice %127 {offsets = [0, 0, 2], sizes = [16, 16, 1], strides = [1, 1, 1]} : vector<16x16x8xf32> to vector<16x16x1xf32>
      %c2_73 = arith.constant 2 : index
      %c0_74 = arith.constant 0 : index
      %144 = vector.load %arg3[%c2_73, %c0_74] : memref<8x24xf32, #tpu.memory_space<vmem>>, vector<1x24xf32>
      %145 = vector.shape_cast %144 : vector<1x24xf32> to vector<1x1x24xf32>
      %146 = vector.broadcast %143 : vector<16x16x1xf32> to vector<16x16x24xf32>
      %147 = vector.broadcast %145 : vector<1x1x24xf32> to vector<16x16x24xf32>
      %148 = arith.mulf %146, %147 : vector<16x16x24xf32>
      %149 = arith.addf %142, %148 : vector<16x16x24xf32>
      %150 = vector.extract_strided_slice %127 {offsets = [0, 0, 3], sizes = [16, 16, 1], strides = [1, 1, 1]} : vector<16x16x8xf32> to vector<16x16x1xf32>
      %c3_75 = arith.constant 3 : index
      %c0_76 = arith.constant 0 : index
      %151 = vector.load %arg3[%c3_75, %c0_76] : memref<8x24xf32, #tpu.memory_space<vmem>>, vector<1x24xf32>
      %152 = vector.shape_cast %151 : vector<1x24xf32> to vector<1x1x24xf32>
      %153 = vector.broadcast %150 : vector<16x16x1xf32> to vector<16x16x24xf32>
      %154 = vector.broadcast %152 : vector<1x1x24xf32> to vector<16x16x24xf32>
      %155 = arith.mulf %153, %154 : vector<16x16x24xf32>
      %156 = arith.addf %149, %155 : vector<16x16x24xf32>
      %157 = vector.extract_strided_slice %127 {offsets = [0, 0, 4], sizes = [16, 16, 1], strides = [1, 1, 1]} : vector<16x16x8xf32> to vector<16x16x1xf32>
      %c4_77 = arith.constant 4 : index
      %c0_78 = arith.constant 0 : index
      %158 = vector.load %arg3[%c4_77, %c0_78] : memref<8x24xf32, #tpu.memory_space<vmem>>, vector<1x24xf32>
      %159 = vector.shape_cast %158 : vector<1x24xf32> to vector<1x1x24xf32>
      %160 = vector.broadcast %157 : vector<16x16x1xf32> to vector<16x16x24xf32>
      %161 = vector.broadcast %159 : vector<1x1x24xf32> to vector<16x16x24xf32>
      %162 = arith.mulf %160, %161 : vector<16x16x24xf32>
      %163 = arith.addf %156, %162 : vector<16x16x24xf32>
      %164 = vector.extract_strided_slice %127 {offsets = [0, 0, 5], sizes = [16, 16, 1], strides = [1, 1, 1]} : vector<16x16x8xf32> to vector<16x16x1xf32>
      %c5_79 = arith.constant 5 : index
      %c0_80 = arith.constant 0 : index
      %165 = vector.load %arg3[%c5_79, %c0_80] : memref<8x24xf32, #tpu.memory_space<vmem>>, vector<1x24xf32>
      %166 = vector.shape_cast %165 : vector<1x24xf32> to vector<1x1x24xf32>
      %167 = vector.broadcast %164 : vector<16x16x1xf32> to vector<16x16x24xf32>
      %168 = vector.broadcast %166 : vector<1x1x24xf32> to vector<16x16x24xf32>
      %169 = arith.mulf %167, %168 : vector<16x16x24xf32>
      %170 = arith.addf %163, %169 : vector<16x16x24xf32>
      %171 = vector.extract_strided_slice %127 {offsets = [0, 0, 6], sizes = [16, 16, 1], strides = [1, 1, 1]} : vector<16x16x8xf32> to vector<16x16x1xf32>
      %c6_81 = arith.constant 6 : index
      %c0_82 = arith.constant 0 : index
      %172 = vector.load %arg3[%c6_81, %c0_82] : memref<8x24xf32, #tpu.memory_space<vmem>>, vector<1x24xf32>
      %173 = vector.shape_cast %172 : vector<1x24xf32> to vector<1x1x24xf32>
      %174 = vector.broadcast %171 : vector<16x16x1xf32> to vector<16x16x24xf32>
      %175 = vector.broadcast %173 : vector<1x1x24xf32> to vector<16x16x24xf32>
      %176 = arith.mulf %174, %175 : vector<16x16x24xf32>
      %177 = arith.addf %170, %176 : vector<16x16x24xf32>
      %178 = vector.extract_strided_slice %127 {offsets = [0, 0, 7], sizes = [16, 16, 1], strides = [1, 1, 1]} : vector<16x16x8xf32> to vector<16x16x1xf32>
      %c7_83 = arith.constant 7 : index
      %c0_84 = arith.constant 0 : index
      %179 = vector.load %arg3[%c7_83, %c0_84] : memref<8x24xf32, #tpu.memory_space<vmem>>, vector<1x24xf32>
      %180 = vector.shape_cast %179 : vector<1x24xf32> to vector<1x1x24xf32>
      %181 = vector.broadcast %178 : vector<16x16x1xf32> to vector<16x16x24xf32>
      %182 = vector.broadcast %180 : vector<1x1x24xf32> to vector<16x16x24xf32>
      %183 = arith.mulf %181, %182 : vector<16x16x24xf32>
      %184 = arith.addf %177, %183 : vector<16x16x24xf32>
      %c0_85 = arith.constant 0 : index
      %c0_86 = arith.constant 0 : index
      %185 = vector.load %arg4[%c0_85, %c0_86] : memref<1x24xf32, #tpu.memory_space<vmem>>, vector<1x24xf32>
      %186 = vector.shape_cast %185 : vector<1x24xf32> to vector<1x1x24xf32>
      %187 = vector.broadcast %186 : vector<1x1x24xf32> to vector<16x16x24xf32>
      %188 = arith.mulf %184, %187 : vector<16x16x24xf32>
      %c0_87 = arith.constant 0 : index
      %c0_88 = arith.constant 0 : index
      %189 = vector.load %arg5[%c0_87, %c0_88] : memref<1x24xf32, #tpu.memory_space<vmem>>, vector<1x24xf32>
      %190 = vector.shape_cast %189 : vector<1x24xf32> to vector<1x1x24xf32>
      %191 = vector.broadcast %190 : vector<1x1x24xf32> to vector<16x16x24xf32>
      %192 = arith.addf %188, %191 : vector<16x16x24xf32>
      %cst_89 = arith.constant 0.000000e+00 : f32
      %193 = vector.broadcast %cst_89 : f32 to vector<16x16x24xf32>
      %194 = arith.maximumf %192, %193 : vector<16x16x24xf32>
      %cst_90 = arith.constant 0.000000e+00 : f32
      %195 = vector.broadcast %cst_90 : f32 to vector<18x24x24xf32>
      %c0_91 = arith.constant 0 : index
      %c0_92 = arith.constant 0 : index
      %c0_93 = arith.constant 0 : index
      %196 = vector.load %arg14[%c0_91, %c0_92, %c0_93] : memref<18x24x24xf32, #tpu.memory_space<vmem>>, vector<18x24x24xf32>
      tpu.vector_store %arg14[%c0_91, %c0_92, %c0_93], %195 {strides = array<i32>} : memref<18x24x24xf32, #tpu.memory_space<vmem>>, vector<18x24x24xf32>,
      %c1_94 = arith.constant 1 : index
      %c1_95 = arith.constant 1 : index
      %c0_96 = arith.constant 0 : index
      %197 = vector.load %arg14[%c1_94, %c1_95, %c0_96] : memref<18x24x24xf32, #tpu.memory_space<vmem>>, vector<16x16x24xf32>
      tpu.vector_store %arg14[%c1_94, %c1_95, %c0_96], %194 {strides = array<i32>} : memref<18x24x24xf32, #tpu.memory_space<vmem>>, vector<16x16x24xf32>,
      %cst_97 = arith.constant 0.000000e+00 : f32
      %198 = vector.broadcast %cst_97 : f32 to vector<1x1x16xf32>
      %c0_98 = arith.constant 0 : index
      %c0_99 = arith.constant 0 : index
      %c0_100 = arith.constant 0 : index
      %199 = vector.load %arg13[%c0_98, %c0_99, %c0_100] : memref<1x1x16xf32, #tpu.memory_space<vmem>>, vector<1x1x16xf32>
      tpu.vector_store %arg13[%c0_98, %c0_99, %c0_100], %198 {strides = array<i32>} : memref<1x1x16xf32, #tpu.memory_space<vmem>>, vector<1x1x16xf32>,
    } else {
    }
    %c8_i32 = arith.constant 8 : i32
    %3 = arith.muli %arg1, %c8_i32 : i32
    %4 = arith.index_cast %3 : i32 to index
    %c0 = arith.constant 0 : index
    %c0_1 = arith.constant 0 : index
    %5 = vector.load %arg14[%4, %c0, %c0_1] : memref<18x24x24xf32, #tpu.memory_space<vmem>>, vector<10x24x24xf32>
    %cst = arith.constant 0.000000e+00 : f32
    %6 = vector.broadcast %cst : f32 to vector<8x24x24xf32>
    %c0_2 = arith.constant 0 : index
    %c0_3 = arith.constant 0 : index
    %7 = vector.load %arg6[%c0_2, %c0_3] : memref<9x24xf32, #tpu.memory_space<vmem>>, vector<1x24xf32>
    %8 = vector.extract_strided_slice %5 {offsets = [0, 0, 0], sizes = [8, 24, 24], strides = [1, 1, 1]} : vector<10x24x24xf32> to vector<8x24x24xf32>
    %9 = vector.shape_cast %7 : vector<1x24xf32> to vector<1x1x24xf32>
    %10 = vector.broadcast %9 : vector<1x1x24xf32> to vector<8x24x24xf32>
    %11 = arith.mulf %8, %10 : vector<8x24x24xf32>
    %12 = arith.addf %6, %11 : vector<8x24x24xf32>
    %c3 = arith.constant 3 : index
    %c0_4 = arith.constant 0 : index
    %13 = vector.load %arg6[%c3, %c0_4] : memref<9x24xf32, #tpu.memory_space<vmem>>, vector<1x24xf32>
    %14 = vector.extract_strided_slice %5 {offsets = [1, 0, 0], sizes = [8, 24, 24], strides = [1, 1, 1]} : vector<10x24x24xf32> to vector<8x24x24xf32>
    %15 = vector.shape_cast %13 : vector<1x24xf32> to vector<1x1x24xf32>
    %16 = vector.broadcast %15 : vector<1x1x24xf32> to vector<8x24x24xf32>
    %17 = arith.mulf %14, %16 : vector<8x24x24xf32>
    %18 = arith.addf %12, %17 : vector<8x24x24xf32>
    %c6 = arith.constant 6 : index
    %c0_5 = arith.constant 0 : index
    %19 = vector.load %arg6[%c6, %c0_5] : memref<9x24xf32, #tpu.memory_space<vmem>>, vector<1x24xf32>
    %20 = vector.extract_strided_slice %5 {offsets = [2, 0, 0], sizes = [8, 24, 24], strides = [1, 1, 1]} : vector<10x24x24xf32> to vector<8x24x24xf32>
    %21 = vector.shape_cast %19 : vector<1x24xf32> to vector<1x1x24xf32>
    %22 = vector.broadcast %21 : vector<1x1x24xf32> to vector<8x24x24xf32>
    %23 = arith.mulf %20, %22 : vector<8x24x24xf32>
    %24 = arith.addf %18, %23 : vector<8x24x24xf32>
    %c23_i32 = arith.constant 23 : i32
    %25 = tpu.dynamic_rotate %5 by %c23_i32 dim 1 : vector<10x24x24xf32>, i32 -> vector<10x24x24xf32>
    %c1 = arith.constant 1 : index
    %c0_6 = arith.constant 0 : index
    %26 = vector.load %arg6[%c1, %c0_6] : memref<9x24xf32, #tpu.memory_space<vmem>>, vector<1x24xf32>
    %27 = vector.extract_strided_slice %25 {offsets = [0, 0, 0], sizes = [8, 24, 24], strides = [1, 1, 1]} : vector<10x24x24xf32> to vector<8x24x24xf32>
    %28 = vector.shape_cast %26 : vector<1x24xf32> to vector<1x1x24xf32>
    %29 = vector.broadcast %28 : vector<1x1x24xf32> to vector<8x24x24xf32>
    %30 = arith.mulf %27, %29 : vector<8x24x24xf32>
    %31 = arith.addf %24, %30 : vector<8x24x24xf32>
    %c4 = arith.constant 4 : index
    %c0_7 = arith.constant 0 : index
    %32 = vector.load %arg6[%c4, %c0_7] : memref<9x24xf32, #tpu.memory_space<vmem>>, vector<1x24xf32>
    %33 = vector.extract_strided_slice %25 {offsets = [1, 0, 0], sizes = [8, 24, 24], strides = [1, 1, 1]} : vector<10x24x24xf32> to vector<8x24x24xf32>
    %34 = vector.shape_cast %32 : vector<1x24xf32> to vector<1x1x24xf32>
    %35 = vector.broadcast %34 : vector<1x1x24xf32> to vector<8x24x24xf32>
    %36 = arith.mulf %33, %35 : vector<8x24x24xf32>
    %37 = arith.addf %31, %36 : vector<8x24x24xf32>
    %c7 = arith.constant 7 : index
    %c0_8 = arith.constant 0 : index
    %38 = vector.load %arg6[%c7, %c0_8] : memref<9x24xf32, #tpu.memory_space<vmem>>, vector<1x24xf32>
    %39 = vector.extract_strided_slice %25 {offsets = [2, 0, 0], sizes = [8, 24, 24], strides = [1, 1, 1]} : vector<10x24x24xf32> to vector<8x24x24xf32>
    %40 = vector.shape_cast %38 : vector<1x24xf32> to vector<1x1x24xf32>
    %41 = vector.broadcast %40 : vector<1x1x24xf32> to vector<8x24x24xf32>
    %42 = arith.mulf %39, %41 : vector<8x24x24xf32>
    %43 = arith.addf %37, %42 : vector<8x24x24xf32>
    %c22_i32 = arith.constant 22 : i32
    %44 = tpu.dynamic_rotate %5 by %c22_i32 dim 1 : vector<10x24x24xf32>, i32 -> vector<10x24x24xf32>
    %c2 = arith.constant 2 : index
    %c0_9 = arith.constant 0 : index
    %45 = vector.load %arg6[%c2, %c0_9] : memref<9x24xf32, #tpu.memory_space<vmem>>, vector<1x24xf32>
    %46 = vector.extract_strided_slice %44 {offsets = [0, 0, 0], sizes = [8, 24, 24], strides = [1, 1, 1]} : vector<10x24x24xf32> to vector<8x24x24xf32>
    %47 = vector.shape_cast %45 : vector<1x24xf32> to vector<1x1x24xf32>
    %48 = vector.broadcast %47 : vector<1x1x24xf32> to vector<8x24x24xf32>
    %49 = arith.mulf %46, %48 : vector<8x24x24xf32>
    %50 = arith.addf %43, %49 : vector<8x24x24xf32>
    %c5 = arith.constant 5 : index
    %c0_10 = arith.constant 0 : index
    %51 = vector.load %arg6[%c5, %c0_10] : memref<9x24xf32, #tpu.memory_space<vmem>>, vector<1x24xf32>
    %52 = vector.extract_strided_slice %44 {offsets = [1, 0, 0], sizes = [8, 24, 24], strides = [1, 1, 1]} : vector<10x24x24xf32> to vector<8x24x24xf32>
    %53 = vector.shape_cast %51 : vector<1x24xf32> to vector<1x1x24xf32>
    %54 = vector.broadcast %53 : vector<1x1x24xf32> to vector<8x24x24xf32>
    %55 = arith.mulf %52, %54 : vector<8x24x24xf32>
    %56 = arith.addf %50, %55 : vector<8x24x24xf32>
    %c8 = arith.constant 8 : index
    %c0_11 = arith.constant 0 : index
    %57 = vector.load %arg6[%c8, %c0_11] : memref<9x24xf32, #tpu.memory_space<vmem>>, vector<1x24xf32>
    %58 = vector.extract_strided_slice %44 {offsets = [2, 0, 0], sizes = [8, 24, 24], strides = [1, 1, 1]} : vector<10x24x24xf32> to vector<8x24x24xf32>
    %59 = vector.shape_cast %57 : vector<1x24xf32> to vector<1x1x24xf32>
    %60 = vector.broadcast %59 : vector<1x1x24xf32> to vector<8x24x24xf32>
    %61 = arith.mulf %58, %60 : vector<8x24x24xf32>
    %62 = arith.addf %56, %61 : vector<8x24x24xf32>
    %63 = vector.extract_strided_slice %62 {offsets = [0, 0, 0], sizes = [8, 16, 24], strides = [1, 1, 1]} : vector<8x24x24xf32> to vector<8x16x24xf32>
    %c0_12 = arith.constant 0 : index
    %c0_13 = arith.constant 0 : index
    %64 = vector.load %arg7[%c0_12, %c0_13] : memref<1x24xf32, #tpu.memory_space<vmem>>, vector<1x24xf32>
    %65 = vector.shape_cast %64 : vector<1x24xf32> to vector<1x1x24xf32>
    %66 = vector.broadcast %65 : vector<1x1x24xf32> to vector<8x16x24xf32>
    %67 = arith.mulf %63, %66 : vector<8x16x24xf32>
    %c0_14 = arith.constant 0 : index
    %c0_15 = arith.constant 0 : index
    %68 = vector.load %arg8[%c0_14, %c0_15] : memref<1x24xf32, #tpu.memory_space<vmem>>, vector<1x24xf32>
    %69 = vector.shape_cast %68 : vector<1x24xf32> to vector<1x1x24xf32>
    %70 = vector.broadcast %69 : vector<1x1x24xf32> to vector<8x16x24xf32>
    %71 = arith.addf %67, %70 : vector<8x16x24xf32>
    %cst_16 = arith.constant 0.000000e+00 : f32
    %72 = vector.broadcast %cst_16 : f32 to vector<8x16x24xf32>
    %73 = arith.maximumf %71, %72 : vector<8x16x24xf32>
    %74 = vector.shape_cast %73 : vector<8x16x24xf32> to vector<128x24xf32>
    %75 = arith.truncf %74 : vector<128x24xf32> to vector<128x24xbf16>
    %c0_17 = arith.constant 0 : index
    %c0_18 = arith.constant 0 : index
    %76 = vector.load %arg9[%c0_17, %c0_18] : memref<24x16xf32, #tpu.memory_space<vmem>>, vector<24x16xf32>
    %77 = arith.truncf %76 : vector<24x16xf32> to vector<24x16xbf16>
    %cst_19 = arith.constant dense<0.000000e+00> : vector<128x16xf32>
    %78 = tpu.matmul %75, %77, %cst_19 {dimension_numbers = #tpu.dot_dimension_numbers<[1], [0], [0], [1], [0, 0, 1, 1], [], []>} : vector<128x24xbf16>, vector<24x16xbf16>, vector<128x16xf32> -> vector<128x16xf32>
    %c0_20 = arith.constant 0 : index
    %c0_21 = arith.constant 0 : index
    %79 = vector.load %arg10[%c0_20, %c0_21] : memref<1x16xf32, #tpu.memory_space<vmem>>, vector<1x16xf32>
    %80 = vector.broadcast %79 : vector<1x16xf32> to vector<128x16xf32>
    %81 = arith.mulf %78, %80 : vector<128x16xf32>
    %c0_22 = arith.constant 0 : index
    %c0_23 = arith.constant 0 : index
    %82 = vector.load %arg11[%c0_22, %c0_23] : memref<1x16xf32, #tpu.memory_space<vmem>>, vector<1x16xf32>
    %83 = vector.broadcast %82 : vector<1x16xf32> to vector<128x16xf32>
    %84 = arith.addf %81, %83 : vector<128x16xf32>
    %c0_24 = arith.constant 0 : index
    %c0_25 = arith.constant 0 : index
    %c0_26 = arith.constant 0 : index
    %85 = vector.load %arg13[%c0_24, %c0_25, %c0_26] : memref<1x1x16xf32, #tpu.memory_space<vmem>>, vector<1x1x16xf32>
    %cst_27 = arith.constant dense<0.000000e+00> : vector<16xf32>
    %86 = vector.multi_reduction <add>, %84, %cst_27 [0] : vector<128x16xf32> to vector<16xf32>
    %87 = vector.shape_cast %86 : vector<16xf32> to vector<1x16xf32>
    %88 = vector.shape_cast %87 : vector<1x16xf32> to vector<1x1x16xf32>
    %cst_28 = arith.constant 3.906250e-03 : f32
    %89 = vector.broadcast %cst_28 : f32 to vector<1x1x16xf32>
    %90 = arith.mulf %88, %89 : vector<1x1x16xf32>
    %91 = arith.addf %85, %90 : vector<1x1x16xf32>
    %c0_29 = arith.constant 0 : index
    %c0_30 = arith.constant 0 : index
    %c0_31 = arith.constant 0 : index
    %92 = vector.load %arg13[%c0_29, %c0_30, %c0_31] : memref<1x1x16xf32, #tpu.memory_space<vmem>>, vector<1x1x16xf32>
    tpu.vector_store %arg13[%c0_29, %c0_30, %c0_31], %91 {strides = array<i32>} : memref<1x1x16xf32, #tpu.memory_space<vmem>>, vector<1x1x16xf32>,
    %93 = arith.truncf %84 : vector<128x16xf32> to vector<128x16xbf16>
    %94 = vector.extract_strided_slice %93 {offsets = [0, 0], sizes = [16, 16], strides = [1, 1]} : vector<128x16xbf16> to vector<16x16xbf16>
    %c0_32 = arith.constant 0 : index
    %c0_33 = arith.constant 0 : index
    %c0_34 = arith.constant 0 : index
    %c0_35 = arith.constant 0 : index
    %95 = vector.load %arg12[%c0_32, %c0_33, %c0_34, %c0_35] : memref<1x8x16x16xbf16, #tpu.memory_space<vmem>>, vector<1x1x16x16xbf16>
    %96 = vector.shape_cast %95 : vector<1x1x16x16xbf16> to vector<16x16xbf16>
    %97 = vector.shape_cast %94 : vector<16x16xbf16> to vector<1x1x16x16xbf16>
    tpu.vector_store %arg12[%c0_32, %c0_33, %c0_34, %c0_35], %97 {strides = array<i32>} : memref<1x8x16x16xbf16, #tpu.memory_space<vmem>>, vector<1x1x16x16xbf16>,
    %98 = vector.extract_strided_slice %93 {offsets = [16, 0], sizes = [16, 16], strides = [1, 1]} : vector<128x16xbf16> to vector<16x16xbf16>
    %c0_36 = arith.constant 0 : index
    %c1_37 = arith.constant 1 : index
    %c0_38 = arith.constant 0 : index
    %c0_39 = arith.constant 0 : index
    %99 = vector.load %arg12[%c0_36, %c1_37, %c0_38, %c0_39] : memref<1x8x16x16xbf16, #tpu.memory_space<vmem>>, vector<1x1x16x16xbf16>
    %100 = vector.shape_cast %99 : vector<1x1x16x16xbf16> to vector<16x16xbf16>
    %101 = vector.shape_cast %98 : vector<16x16xbf16> to vector<1x1x16x16xbf16>
    tpu.vector_store %arg12[%c0_36, %c1_37, %c0_38, %c0_39], %101 {strides = array<i32>} : memref<1x8x16x16xbf16, #tpu.memory_space<vmem>>, vector<1x1x16x16xbf16>,
    %102 = vector.extract_strided_slice %93 {offsets = [32, 0], sizes = [16, 16], strides = [1, 1]} : vector<128x16xbf16> to vector<16x16xbf16>
    %c0_40 = arith.constant 0 : index
    %c2_41 = arith.constant 2 : index
    %c0_42 = arith.constant 0 : index
    %c0_43 = arith.constant 0 : index
    %103 = vector.load %arg12[%c0_40, %c2_41, %c0_42, %c0_43] : memref<1x8x16x16xbf16, #tpu.memory_space<vmem>>, vector<1x1x16x16xbf16>
    %104 = vector.shape_cast %103 : vector<1x1x16x16xbf16> to vector<16x16xbf16>
    %105 = vector.shape_cast %102 : vector<16x16xbf16> to vector<1x1x16x16xbf16>
    tpu.vector_store %arg12[%c0_40, %c2_41, %c0_42, %c0_43], %105 {strides = array<i32>} : memref<1x8x16x16xbf16, #tpu.memory_space<vmem>>, vector<1x1x16x16xbf16>,
    %106 = vector.extract_strided_slice %93 {offsets = [48, 0], sizes = [16, 16], strides = [1, 1]} : vector<128x16xbf16> to vector<16x16xbf16>
    %c0_44 = arith.constant 0 : index
    %c3_45 = arith.constant 3 : index
    %c0_46 = arith.constant 0 : index
    %c0_47 = arith.constant 0 : index
    %107 = vector.load %arg12[%c0_44, %c3_45, %c0_46, %c0_47] : memref<1x8x16x16xbf16, #tpu.memory_space<vmem>>, vector<1x1x16x16xbf16>
    %108 = vector.shape_cast %107 : vector<1x1x16x16xbf16> to vector<16x16xbf16>
    %109 = vector.shape_cast %106 : vector<16x16xbf16> to vector<1x1x16x16xbf16>
    tpu.vector_store %arg12[%c0_44, %c3_45, %c0_46, %c0_47], %109 {strides = array<i32>} : memref<1x8x16x16xbf16, #tpu.memory_space<vmem>>, vector<1x1x16x16xbf16>,
    %110 = vector.extract_strided_slice %93 {offsets = [64, 0], sizes = [16, 16], strides = [1, 1]} : vector<128x16xbf16> to vector<16x16xbf16>
    %c0_48 = arith.constant 0 : index
    %c4_49 = arith.constant 4 : index
    %c0_50 = arith.constant 0 : index
    %c0_51 = arith.constant 0 : index
    %111 = vector.load %arg12[%c0_48, %c4_49, %c0_50, %c0_51] : memref<1x8x16x16xbf16, #tpu.memory_space<vmem>>, vector<1x1x16x16xbf16>
    %112 = vector.shape_cast %111 : vector<1x1x16x16xbf16> to vector<16x16xbf16>
    %113 = vector.shape_cast %110 : vector<16x16xbf16> to vector<1x1x16x16xbf16>
    tpu.vector_store %arg12[%c0_48, %c4_49, %c0_50, %c0_51], %113 {strides = array<i32>} : memref<1x8x16x16xbf16, #tpu.memory_space<vmem>>, vector<1x1x16x16xbf16>,
    %114 = vector.extract_strided_slice %93 {offsets = [80, 0], sizes = [16, 16], strides = [1, 1]} : vector<128x16xbf16> to vector<16x16xbf16>
    %c0_52 = arith.constant 0 : index
    %c5_53 = arith.constant 5 : index
    %c0_54 = arith.constant 0 : index
    %c0_55 = arith.constant 0 : index
    %115 = vector.load %arg12[%c0_52, %c5_53, %c0_54, %c0_55] : memref<1x8x16x16xbf16, #tpu.memory_space<vmem>>, vector<1x1x16x16xbf16>
    %116 = vector.shape_cast %115 : vector<1x1x16x16xbf16> to vector<16x16xbf16>
    %117 = vector.shape_cast %114 : vector<16x16xbf16> to vector<1x1x16x16xbf16>
    tpu.vector_store %arg12[%c0_52, %c5_53, %c0_54, %c0_55], %117 {strides = array<i32>} : memref<1x8x16x16xbf16, #tpu.memory_space<vmem>>, vector<1x1x16x16xbf16>,
    %118 = vector.extract_strided_slice %93 {offsets = [96, 0], sizes = [16, 16], strides = [1, 1]} : vector<128x16xbf16> to vector<16x16xbf16>
    %c0_56 = arith.constant 0 : index
    %c6_57 = arith.constant 6 : index
    %c0_58 = arith.constant 0 : index
    %c0_59 = arith.constant 0 : index
    %119 = vector.load %arg12[%c0_56, %c6_57, %c0_58, %c0_59] : memref<1x8x16x16xbf16, #tpu.memory_space<vmem>>, vector<1x1x16x16xbf16>
    %120 = vector.shape_cast %119 : vector<1x1x16x16xbf16> to vector<16x16xbf16>
    %121 = vector.shape_cast %118 : vector<16x16xbf16> to vector<1x1x16x16xbf16>
    tpu.vector_store %arg12[%c0_56, %c6_57, %c0_58, %c0_59], %121 {strides = array<i32>} : memref<1x8x16x16xbf16, #tpu.memory_space<vmem>>, vector<1x1x16x16xbf16>,
    %122 = vector.extract_strided_slice %93 {offsets = [112, 0], sizes = [16, 16], strides = [1, 1]} : vector<128x16xbf16> to vector<16x16xbf16>
    %c0_60 = arith.constant 0 : index
    %c7_61 = arith.constant 7 : index
    %c0_62 = arith.constant 0 : index
    %c0_63 = arith.constant 0 : index
    %123 = vector.load %arg12[%c0_60, %c7_61, %c0_62, %c0_63] : memref<1x8x16x16xbf16, #tpu.memory_space<vmem>>, vector<1x1x16x16xbf16>
    %124 = vector.shape_cast %123 : vector<1x1x16x16xbf16> to vector<16x16xbf16>
    %125 = vector.shape_cast %122 : vector<16x16xbf16> to vector<1x1x16x16xbf16>
    tpu.vector_store %arg12[%c0_60, %c7_61, %c0_62, %c0_63], %125 {strides = array<i32>} : memref<1x8x16x16xbf16, #tpu.memory_space<vmem>>, vector<1x1x16x16xbf16>,
    return
  }
  func.func @transform_0(%arg0: i32, %arg1: i32) -> (i32, i32, i32, i32) {
    %c0_i32 = arith.constant 0 : i32
    %c0_i32_0 = arith.constant 0 : i32
    %c0_i32_1 = arith.constant 0 : i32
    %c0_i32_2 = arith.constant 0 : i32
    return %arg0, %c0_i32, %c0_i32_0, %c0_i32_1 : i32, i32, i32, i32
  }
  func.func @transform_1(%arg0: i32, %arg1: i32) -> (i32, i32) {
    %c0_i32 = arith.constant 0 : i32
    %c0_i32_0 = arith.constant 0 : i32
    %c0_i32_1 = arith.constant 0 : i32
    return %c0_i32, %c0_i32_0 : i32, i32
  }
  func.func @transform_2(%arg0: i32, %arg1: i32) -> (i32, i32) {
    %c0_i32 = arith.constant 0 : i32
    %c0_i32_0 = arith.constant 0 : i32
    %c0_i32_1 = arith.constant 0 : i32
    return %c0_i32, %c0_i32_0 : i32, i32
  }
  func.func @transform_3(%arg0: i32, %arg1: i32) -> (i32, i32) {
    %c0_i32 = arith.constant 0 : i32
    %c0_i32_0 = arith.constant 0 : i32
    %c0_i32_1 = arith.constant 0 : i32
    return %c0_i32, %c0_i32_0 : i32, i32
  }
  func.func @transform_4(%arg0: i32, %arg1: i32) -> (i32, i32) {
    %c0_i32 = arith.constant 0 : i32
    %c0_i32_0 = arith.constant 0 : i32
    %c0_i32_1 = arith.constant 0 : i32
    return %c0_i32, %c0_i32_0 : i32, i32
  }
  func.func @transform_5(%arg0: i32, %arg1: i32) -> (i32, i32) {
    %c0_i32 = arith.constant 0 : i32
    %c0_i32_0 = arith.constant 0 : i32
    %c0_i32_1 = arith.constant 0 : i32
    return %c0_i32, %c0_i32_0 : i32, i32
  }
  func.func @transform_6(%arg0: i32, %arg1: i32) -> (i32, i32) {
    %c0_i32 = arith.constant 0 : i32
    %c0_i32_0 = arith.constant 0 : i32
    %c0_i32_1 = arith.constant 0 : i32
    return %c0_i32, %c0_i32_0 : i32, i32
  }
  func.func @transform_7(%arg0: i32, %arg1: i32) -> (i32, i32) {
    %c0_i32 = arith.constant 0 : i32
    %c0_i32_0 = arith.constant 0 : i32
    %c0_i32_1 = arith.constant 0 : i32
    return %c0_i32, %c0_i32_0 : i32, i32
  }
  func.func @transform_8(%arg0: i32, %arg1: i32) -> (i32, i32) {
    %c0_i32 = arith.constant 0 : i32
    %c0_i32_0 = arith.constant 0 : i32
    %c0_i32_1 = arith.constant 0 : i32
    return %c0_i32, %c0_i32_0 : i32, i32
  }
  func.func @transform_9(%arg0: i32, %arg1: i32) -> (i32, i32) {
    %c0_i32 = arith.constant 0 : i32
    %c0_i32_0 = arith.constant 0 : i32
    %c0_i32_1 = arith.constant 0 : i32
    return %c0_i32, %c0_i32_0 : i32, i32
  }
  func.func @transform_10(%arg0: i32, %arg1: i32) -> (i32, i32, i32, i32) {
    %c0_i32 = arith.constant 0 : i32
    %c0_i32_0 = arith.constant 0 : i32
    %c0_i32_1 = arith.constant 0 : i32
    return %arg0, %arg1, %c0_i32, %c0_i32_0 : i32, i32, i32, i32
  }
  func.func @transform_11(%arg0: i32, %arg1: i32) -> (i32, i32, i32) {
    %c0_i32 = arith.constant 0 : i32
    %c0_i32_0 = arith.constant 0 : i32
    %c0_i32_1 = arith.constant 0 : i32
    return %arg0, %c0_i32, %c0_i32_0 : i32, i32, i32
  }
}

</mosaic_0001>

<llo_original>
// kernel: inverted_residual_forward.5
$region0: #{inverted_residual_forward.5}
  #allocation0 [shape = 'u32[]', space=smem, size = 0x4, offset = 0x4, fixed_abs, tag = 'smem constant byte address 0x4 - core index']
  #allocation1 [shape = 'u32[144,128]{1,0:T(1,128)}', space=vmem, size = 0x12000, scoped, tag = 'internal scratch']
  %s0 = inlined_call_operand.vmem [shape: bf16[2,16,16,16], index: 0, kind: input, shape index: {}]
  %s1 = inlined_call_operand.vmem [shape: f32[2,1,16], index: 1, kind: input, shape index: {}]
  %s2 = inlined_call_operand.vmem [shape: f32[2,16,16,16], index: 2, kind: output, shape index: {}]
  %s3 = sld [smem:[#allocation0]]
  $region41: #{inverted_residual_forward.5} parent=0
    _
  %s5 = ssub.s32 1, %s3
  %s6 = scalar_select 0, %s5, %s3
  loop: start=0, step=1, limit=6
  $region2: #{inverted_residual_forward.5} parent=0 // loop_pre_header
    _
  $region3: #{inverted_residual_forward.5} parent=0 // loop_header
    %s8 = sphi 0, %s12
    %p9 = scmp.ge.s32.totalorder %s8, 6
    %s15 = sphi 0, %s27
    %s16 = sphi 0, %s23
    %s17 = sphi 0, %s15
    %s18 = sphi 0, %s16
    %s19 = sphi 0, %s17
    %s20 = sphi 0, %s18
    %s32 = sphi 0, %s34
    %s35 = sphi 0, %s32
    %s36 = sphi 0, %s35
    %s52 = sphi 0, %s36
    %s58 = sphi 0, %s60
    %s61 = sphi 0, %s58
    %s62 = sphi 0, %s61
    %s78 = sphi 0, %s62
    %s86 = sphi 0, %s88
    %s89 = sphi 0, %s86
    %s90 = sphi 0, %s89
    %s106 = sphi 0, %s90
  $region4: #{inverted_residual_forward.5} parent=0 // loop_header_branch
    %11 = sbr.rel (%p9) target = $region8
  $region5: #{inverted_residual_forward.5} parent=0 // loop_body
    %s13 = ssub.s32 %s8, 1
    %s14 = ssub.s32 %s8, 2
    %s21 = sadd.s32 1, %s16
    %p22 = scmp.ge.s32.totalorder %s21, 2
    %s23 = scalar_select %p22, 0, %s21
    %s24 = sadd.s32 1, %s15
    %s25 = scalar_select %p22, %s24, %s15
    %p26 = scmp.ge.s32.totalorder %s25, 2
    %s27 = scalar_select %p26, 0, %s25
    %s28 = ssub.s32 %s15, %s27
    %s29 = ssub.s32 %s16, %s23
    %s30 = sor.u32 %s28, %s29
    %p31 = scmp.eq.s32.totalorder %s30, 0
    %s33 = sadd.s32 %s32, 1
    %s34 = scalar_select %p31, %s32, %s33
    %p37 = pneg %p31
    %p38 = scmp.eq.s32.totalorder %s8, 3
    %p39 = por %p37, %p38
    %p40 = scmp.ne.s32.totalorder %s32, %s35
    %p41 = scmp.eq.s32.totalorder %s8, 0
    %p42 = por %p40, %p41
    %p43 = scmp.ne.s32.totalorder %s32, %s35
    %p44 = scmp.eq.s32.totalorder %s13, 3
    %p45 = por %p43, %p44
    %p46 = scmp.ne.s32.totalorder %s35, %s36
    %p47 = scmp.eq.s32.totalorder %s13, 0
    %p48 = por %p46, %p47
    %p49 = scmp.ne.s32.totalorder %s35, %s36
    %p50 = scmp.eq.s32.totalorder %s14, 3
    %p51 = por %p49, %p50
    %p53 = scmp.ne.s32.totalorder %s36, %s52
    %p54 = scmp.eq.s32.totalorder %s14, 0
    %p55 = por %p53, %p54
    %s56 = ssub.s32 %s15, %s27
    %p57 = scmp.eq.s32.totalorder %s56, 0
    %s59 = sadd.s32 %s58, 1
    %s60 = scalar_select %p57, %s58, %s59
    %p63 = pneg %p57
    %p64 = scmp.eq.s32.totalorder %s8, 3
    %p65 = por %p63, %p64
    %p66 = scmp.ne.s32.totalorder %s58, %s61
    %p67 = scmp.eq.s32.totalorder %s8, 0
    %p68 = por %p66, %p67
    %p69 = scmp.ne.s32.totalorder %s58, %s61
    %p70 = scmp.eq.s32.totalorder %s13, 3
    %p71 = por %p69, %p70
    %p72 = scmp.ne.s32.totalorder %s61, %s62
    %p73 = scmp.eq.s32.totalorder %s13, 0
    %p74 = por %p72, %p73
    %p75 = scmp.ne.s32.totalorder %s61, %s62
    %p76 = scmp.eq.s32.totalorder %s14, 3
    %p77 = por %p75, %p76
    %p79 = scmp.ne.s32.totalorder %s62, %s78
    %p80 = scmp.eq.s32.totalorder %s14, 0
    %p81 = por %p79, %p80
    %s82 = ssub.s32 %s15, %s27
    %s83 = ssub.s32 %s16, %s23
    %s84 = sor.u32 %s82, %s83
    %p85 = scmp.eq.s32.totalorder %s84, 0
    %s87 = sadd.s32 %s86, 1
    %s88 = scalar_select %p85, %s86, %s87
    %p91 = pneg %p85
    %p92 = scmp.eq.s32.totalorder %s8, 3
    %p93 = por %p91, %p92
    %p94 = scmp.ne.s32.totalorder %s86, %s89
    %p95 = scmp.eq.s32.totalorder %s8, 0
    %p96 = por %p94, %p95
    %p97 = scmp.ne.s32.totalorder %s86, %s89
    %p98 = scmp.eq.s32.totalorder %s13, 3
    %p99 = por %p97, %p98
    %p100 = scmp.ne.s32.totalorder %s89, %s90
    %p101 = scmp.eq.s32.totalorder %s13, 0
    %p102 = por %p100, %p101
    %p103 = scmp.ne.s32.totalorder %s89, %s90
    %p104 = scmp.eq.s32.totalorder %s14, 3
    %p105 = por %p103, %p104
    %p107 = scmp.ne.s32.totalorder %s90, %s106
    %p108 = scmp.eq.s32.totalorder %s14, 0
    %p109 = por %p107, %p108
    %p110 = scmp.le.s32.totalorder 1, %s8
    %p111 = scmp.lt.s32.totalorder %s8, 5
    %p112 = pnand %p110, %p111
    %p113 = pneg %p112
    // Predicated region
    $region9: #{inverted_residual_forward.5} parent=5 // pred_check
      _
    $region10: #{inverted_residual_forward.5} parent=5 // pred_check_branch
      %115 = sbr.rel (%p112) target = $region12
    $region11: #{inverted_residual_forward.5} parent=5 // pred_region
      %s116 = ssub.s32 %s8, 1
    $region12: #{inverted_residual_forward.5} parent=5 // pred_fallthru
      _
    %p117 = scmp.lt.s32.totalorder %s8, 4
    // Predicated region
    $region13: #{inverted_residual_forward.5} parent=5 // pred_check
      %p118 = pneg %p117
    $region14: #{inverted_residual_forward.5} parent=5 // pred_check_branch
      %120 = sbr.rel (%p118) target = $region16
    $region15: #{inverted_residual_forward.5} parent=5 // pred_region
      // Predicated region
      $region17: #{inverted_residual_forward.5} parent=15 // pred_check
        %p121 = pneg %p42
      $region18: #{inverted_residual_forward.5} parent=15 // pred_check_branch
        %123 = sbr.rel (%p121) target = $region20
      $region19: #{inverted_residual_forward.5} parent=15 // pred_region
        %s124 = smul.u32 8, %s16
        %p125 = scmp.lt.s32.totalorder %s15, 1
        %s126 = scalar_select %p125, %s15, 1
        %p127 = scmp.lt.s32.totalorder %s124, 15
        %s128 = scalar_select %p127, %s124, 15
        %s129 = smul.addr %s128, 2
        %s130 = smul.addr %s126, 32
        %s131 = sadd.s32 %s129, %s130
        %s132 = smul.addr %s131, 4
        %s133 = scalar_lea.vmem %s0, %s132
        %s134 = smul.u32 8, %s16
      $region20: #{inverted_residual_forward.5} parent=15 // pred_fallthru
        _
      // Predicated region
      $region21: #{inverted_residual_forward.5} parent=15 // pred_check
        %p135 = pneg %p68
      $region22: #{inverted_residual_forward.5} parent=15 // pred_check_branch
        %137 = sbr.rel (%p135) target = $region24
      $region23: #{inverted_residual_forward.5} parent=15 // pred_region
        %p138 = scmp.lt.s32.totalorder %s15, 1
        %s139 = scalar_select %p138, %s15, 1
        %s140 = scalar_lea.vmem %s1, %s139
      $region24: #{inverted_residual_forward.5} parent=15 // pred_fallthru
        _
    $region16: #{inverted_residual_forward.5} parent=5 // pred_fallthru
      _
    %p141 = scmp.le.s32.totalorder 1, %s8
    %p142 = scmp.lt.s32.totalorder %s8, 5
    %p143 = pnand %p141, %p142
    %p144 = pneg %p143
    // Predicated region
    $region25: #{inverted_residual_forward.5} parent=5 // pred_check
      _
    $region26: #{inverted_residual_forward.5} parent=5 // pred_check_branch
      %146 = sbr.rel (%p143) target = $region28
    $region27: #{inverted_residual_forward.5} parent=5 // pred_region
      %s147 = ssub.s32 %s8, 1
      %s148 = smul.u32 8, %s18
      %p149 = scmp.lt.s32.totalorder %s17, 1
      %s150 = scalar_select %p149, %s17, 1
      %p151 = scmp.lt.s32.totalorder %s148, 15
      %s152 = scalar_select %p151, %s148, 15
      %s153 = smul.addr %s152, 2
      %s154 = smul.addr %s150, 32
      %s155 = sadd.s32 %s153, %s154
      %s156 = smul.addr %s155, 4
      %s157 = scalar_lea.vmem %s0, %s156
      %p158 = pneg %p48
      %p159 = pneg %p45
      %p160 = scmp.lt.s32.totalorder %s17, 1
      %s161 = scalar_select %p160, %s17, 1
      %s162 = scalar_lea.vmem %s1, %s161
      %p163 = pneg %p74
      %p164 = pneg %p71
      %p165 = pneg %p102
      %p166 = pneg %p99
      %s167 = smul.u32 8, %s18
      %p168 = scmp.lt.s32.totalorder %s17, 1
      %s169 = scalar_select %p168, %s17, 1
      %p170 = scmp.lt.s32.totalorder %s167, 15
      %s171 = scalar_select %p170, %s167, 15
      %s172 = smul.addr %s171, 2
      %s173 = smul.addr %s169, 32
      %s174 = sadd.s32 %s172, %s173
      %s175 = smul.addr %s174, 8
      %s176 = scalar_lea.vmem %s2, %s175
      %s177 = smul.u32 8, %s18
      %p178 = scmp.lt.s32.totalorder %s17, 1
      %s179 = scalar_select %p178, %s17, 1
      %p180 = scmp.lt.s32.totalorder %s177, 15
      %s181 = scalar_select %p180, %s177, 15
      %s182 = smul.addr %s181, 2
      %s183 = smul.addr %s179, 32
      %s184 = sadd.s32 %s182, %s183
      %s185 = smul.addr %s184, 4
      %s186 = scalar_lea.vmem %s0, %s185
      %s187 = smul.u32 8, %s18
      %p188 = scmp.lt.s32.totalorder %s17, 1
      %s189 = scalar_select %p188, %s17, 1
      %s190 = scalar_lea.vmem %s1, %s189
      %s191 = smul.u32 8, %s18
      %p192 = scmp.lt.s32.totalorder %s17, 1
      %s193 = scalar_select %p192, %s17, 1
      %p194 = scmp.lt.s32.totalorder %s191, 15
      %s195 = scalar_select %p194, %s191, 15
      %s196 = smul.addr %s195, 2
      %s197 = smul.addr %s193, 32
      %s198 = sadd.s32 %s196, %s197
      %s199 = smul.addr %s198, 8
      %s200 = scalar_lea.vmem %s2, %s199
      %s201 = smul.u32 8, %s18
      %v202 = vld [vmem:[%s186] sm:$0xf]
      %v203 = vld [vmem:[%s186 + $0x4] sm:$0xf]
      %v204 = vld [vmem:[%s186 + $0x8] sm:$0xf]
      %v205 = vld [vmem:[%s186 + $0xc] sm:$0xf]
      %v206 = vld [vmem:[%s186 + $0x10] sm:$0xf]
      %v207 = vld [vmem:[%s186 + $0x14] sm:$0xf]
      %v208 = vld [vmem:[%s186 + $0x18] sm:$0xf]
      %v209 = vld [vmem:[%s186 + $0x1c] sm:$0xf]
      %v210 = vld [vmem:[%s186 + $0x20] sm:$0xf]
      %v211 = vld [vmem:[%s186 + $0x24] sm:$0xf]
      %v212 = vld [vmem:[%s186 + $0x28] sm:$0xf]
      %v213 = vld [vmem:[%s186 + $0x2c] sm:$0xf]
      %v214 = vld [vmem:[%s186 + $0x30] sm:$0xf]
      %v215 = vld [vmem:[%s186 + $0x34] sm:$0xf]
      %v216 = vld [vmem:[%s186 + $0x38] sm:$0xf]
      %v217 = vld [vmem:[%s186 + $0x3c] sm:$0xf]
      %v218 = vunpack.c.l.bf16 %v202
      %v219 = vunpack.c.l.bf16 %v203
      %v220 = vunpack.c.l.bf16 %v204
      %v221 = vunpack.c.l.bf16 %v205
      %v222 = vunpack.c.l.bf16 %v206
      %v223 = vunpack.c.l.bf16 %v207
      %v224 = vunpack.c.l.bf16 %v208
      %v225 = vunpack.c.l.bf16 %v209
      %v226 = vunpack.c.l.bf16 %v210
      %v227 = vunpack.c.l.bf16 %v211
      %v228 = vunpack.c.l.bf16 %v212
      %v229 = vunpack.c.l.bf16 %v213
      %v230 = vunpack.c.l.bf16 %v214
      %v231 = vunpack.c.l.bf16 %v215
      %v232 = vunpack.c.l.bf16 %v216
      %v233 = vunpack.c.l.bf16 %v217
      %v234 = vld [vmem:[%s190] sm:$0x1]
      %v236 = vlaneseq
      %v237 = vshrl.u32 %v236, 7
      %v238 = vsub.s32 0, %v237
      %v239 = vrot.slane %v234, %v238
      %v241 = vmul.f32 %v218, %v239
      %v242 = vmul.f32 %v219, %v239
      %v243 = vmul.f32 %v220, %v239
      %v244 = vmul.f32 %v221, %v239
      %v245 = vmul.f32 %v222, %v239
      %v246 = vmul.f32 %v223, %v239
      %v247 = vmul.f32 %v224, %v239
      %v248 = vmul.f32 %v225, %v239
      %v249 = vmul.f32 %v226, %v239
      %v250 = vmul.f32 %v227, %v239
      %v251 = vmul.f32 %v228, %v239
      %v252 = vmul.f32 %v229, %v239
      %v253 = vmul.f32 %v230, %v239
      %v254 = vmul.f32 %v231, %v239
      %v255 = vmul.f32 %v232, %v239
      %v256 = vmul.f32 %v233, %v239
      %vm257 = vcmask 130048
      %258 = vst.msk [vmem:[%s200] sm:$0xff] %vm257, %v241
      %259 = vst.msk [vmem:[%s200 + $0x8] sm:$0xff] %vm257, %v242
      %260 = vst.msk [vmem:[%s200 + $0x10] sm:$0xff] %vm257, %v243
      %261 = vst.msk [vmem:[%s200 + $0x18] sm:$0xff] %vm257, %v244
      %262 = vst.msk [vmem:[%s200 + $0x20] sm:$0xff] %vm257, %v245
      %263 = vst.msk [vmem:[%s200 + $0x28] sm:$0xff] %vm257, %v246
      %264 = vst.msk [vmem:[%s200 + $0x30] sm:$0xff] %vm257, %v247
      %265 = vst.msk [vmem:[%s200 + $0x38] sm:$0xff] %vm257, %v248
      %266 = vst.msk [vmem:[%s200 + $0x40] sm:$0xff] %vm257, %v249
      %267 = vst.msk [vmem:[%s200 + $0x48] sm:$0xff] %vm257, %v250
      %268 = vst.msk [vmem:[%s200 + $0x50] sm:$0xff] %vm257, %v251
      %269 = vst.msk [vmem:[%s200 + $0x58] sm:$0xff] %vm257, %v252
      %270 = vst.msk [vmem:[%s200 + $0x60] sm:$0xff] %vm257, %v253
      %271 = vst.msk [vmem:[%s200 + $0x68] sm:$0xff] %vm257, %v254
      %272 = vst.msk [vmem:[%s200 + $0x70] sm:$0xff] %vm257, %v255
      %273 = vst.msk [vmem:[%s200 + $0x78] sm:$0xff] %vm257, %v256
      %s274 = smul.u32 8, %s18
      %p275 = scmp.lt.s32.totalorder %s17, 1
      %s276 = scalar_select %p275, %s17, 1
      %p277 = scmp.lt.s32.totalorder %s274, 15
      %s278 = scalar_select %p277, %s274, 15
      %s279 = smul.addr %s278, 2
      %s280 = smul.addr %s276, 32
      %s281 = sadd.s32 %s279, %s280
      %s282 = smul.addr %s281, 8
      %s283 = scalar_lea.vmem %s2, %s282
      // Predicated region
      $region29: #{inverted_residual_forward.5} parent=27 // pred_check
        %p284 = pneg %p99
      $region30: #{inverted_residual_forward.5} parent=27 // pred_check_branch
        %286 = sbr.rel (%p284) target = $region32
      $region31: #{inverted_residual_forward.5} parent=27 // pred_region
        %s287 = smul.u32 8, %s18
      $region32: #{inverted_residual_forward.5} parent=27 // pred_fallthru
        _
    $region28: #{inverted_residual_forward.5} parent=5 // pred_fallthru
      _
    %p288 = scmp.le.s32.totalorder 2, %s8
    // Predicated region
    $region33: #{inverted_residual_forward.5} parent=5 // pred_check
      %p289 = pneg %p288
    $region34: #{inverted_residual_forward.5} parent=5 // pred_check_branch
      %291 = sbr.rel (%p289) target = $region36
    $region35: #{inverted_residual_forward.5} parent=5 // pred_region
      %s292 = ssub.s32 %s8, 2
      // Predicated region
      $region37: #{inverted_residual_forward.5} parent=35 // pred_check
        %p293 = pneg %p105
      $region38: #{inverted_residual_forward.5} parent=35 // pred_check_branch
        %295 = sbr.rel (%p293) target = $region40
      $region39: #{inverted_residual_forward.5} parent=35 // pred_region
        %s296 = smul.u32 8, %s20
        %p297 = scmp.lt.s32.totalorder %s19, 1
        %s298 = scalar_select %p297, %s19, 1
        %p299 = scmp.lt.s32.totalorder %s296, 15
        %s300 = scalar_select %p299, %s296, 15
        %s301 = smul.addr %s300, 2
        %s302 = smul.addr %s298, 32
        %s303 = sadd.s32 %s301, %s302
        %s304 = smul.addr %s303, 8
        %s305 = scalar_lea.vmem %s2, %s304
      $region40: #{inverted_residual_forward.5} parent=35 // pred_fallthru
        _
    $region36: #{inverted_residual_forward.5} parent=5 // pred_fallthru
      _
  $region6: #{inverted_residual_forward.5} parent=0 // loop_footer
    %s12 = sadd.s32 1, %s8
  $region7: #{inverted_residual_forward.5} parent=0 // loop_footer_branch
    %7 = sbr.rel target = $region3
  $region8: #{inverted_residual_forward.5} parent=0 // loop_exit
    _

// kernel: inverted_residual_forward.4
$region0: #{inverted_residual_forward.4}
  #allocation0 [shape = 'u32[]', space=smem, size = 0x4, offset = 0x4, fixed_abs, tag = 'smem constant byte address 0x4 - core index']
  #allocation1 [shape = 'u32[144,128]{1,0:T(1,128)}', space=vmem, size = 0x12000, scoped, tag = 'internal scratch']
  #allocation2 [shape = 'f32[1,1]{1,0:T(1,128)S(6)}', space=smem, size = 0x200, scoped, tag = 'scoped memory for inverted_residual_forward.4']
  %s0 = inlined_call_operand.vmem [shape: f32[2,16], index: 0, kind: input, shape index: {}]
  %s1 = inlined_call_operand.vmem [shape: f32[2,8], index: 1, kind: input, shape index: {}]
  %s2 = inlined_call_operand.vmem [shape: f32[8,4], index: 2, kind: input, shape index: {}]
  %s3 = inlined_call_operand.vmem [shape: f32[1,4], index: 3, kind: input, shape index: {}]
  %s4 = inlined_call_operand.vmem [shape: f32[1,4], index: 4, kind: input, shape index: {}]
  %s5 = inlined_call_operand.vmem [shape: f32[1,4], index: 5, kind: input, shape index: {}]
  %s6 = inlined_call_operand.vmem [shape: f32[4,16], index: 6, kind: input, shape index: {}]
  %s7 = inlined_call_operand.vmem [shape: f32[1,16], index: 7, kind: input, shape index: {}]
  %s8 = inlined_call_operand.vmem [shape: f32[1,16], index: 8, kind: input, shape index: {}]
  %s9 = inlined_call_operand.vmem [shape: f32[1,16], index: 9, kind: input, shape index: {}]
  %s10 = inlined_call_operand.vmem [shape: f32[1,2], index: 10, kind: input, shape index: {}]
  %s11 = inlined_call_operand.<no memory space> [shape: f32[1,1], index: 11, kind: input, shape index: {}]
  %s12 = inlined_call_operand.vmem [shape: f32[1,16], index: 12, kind: input, shape index: {}]
  %s13 = inlined_call_operand.vmem [shape: f32[1,16], index: 13, kind: input, shape index: {}]
  %s14 = inlined_call_operand.vmem [shape: f32[16,4], index: 14, kind: input, shape index: {}]
  %s15 = inlined_call_operand.vmem [shape: f32[1,4], index: 15, kind: input, shape index: {}]
  %s16 = inlined_call_operand.vmem [shape: f32[4,16], index: 16, kind: input, shape index: {}]
  %s17 = inlined_call_operand.vmem [shape: f32[1,16], index: 17, kind: input, shape index: {}]
  %s18 = inlined_call_operand.vmem [shape: f32[2,16], index: 18, kind: output, shape index: {0}]
  %s19 = inlined_call_operand.hbm [shape: f32[2,16], index: 19, kind: output, shape index: {1}]
  %20 = xla_tuple %s18, %s19
  %s21 = sld [smem:[#allocation0]]
  $region94: #{inverted_residual_forward.4} parent=0
    _
  %s23 = ssub.s32 1, %s21
  %s24 = scalar_select 0, %s23, %s21
  %25 = sst [smem:[#allocation2]] %s11
  $region1: #{inverted_residual_forward.4} parent=0
    #allocation3 [shape = 'u8[512]{0}', space=smem, size = 0x200, scoped, tag = 'input window, operand 10, single buffered']
    #allocation4 [shape = 's32[1]{0}', space=sflag, size = 0x4, scoped, tag = 'scoped memory for inverted_residual_forward.4']
    #allocation5 [shape = 's32[1]{0}', space=sflag, size = 0x4, scoped, tag = 'scoped memory for inverted_residual_forward.4']
    #allocation6 [shape = 'u8[1024]{0}', space=vmem, size = 0x400, scoped, tag = 'output window, operand 1, single buffered']
    %26 = vsyncpa [#allocation5], 0
    %27 = vsyncpa [#allocation4], 0
    // Predicated region
    $region2: #{inverted_residual_forward.4} parent=1 // pred_check
      _
    $region3: #{inverted_residual_forward.4} parent=1 // pred_check_branch
      %29 = sbr.rel (0) target = $region5
    $region4: #{inverted_residual_forward.4} parent=1 // pred_region
      _
    $region5: #{inverted_residual_forward.4} parent=1 // pred_fallthru
      _
    // Predicated region
    $region6: #{inverted_residual_forward.4} parent=1 // pred_check
      _
    $region7: #{inverted_residual_forward.4} parent=1 // pred_check_branch
      %31 = sbr.rel (0) target = $region9
    $region8: #{inverted_residual_forward.4} parent=1 // pred_region
      _
    $region9: #{inverted_residual_forward.4} parent=1 // pred_fallthru
      _
    // Predicated region
    $region10: #{inverted_residual_forward.4} parent=1 // pred_check
      _
    $region11: #{inverted_residual_forward.4} parent=1 // pred_check_branch
      %33 = sbr.rel (0) target = $region13
    $region12: #{inverted_residual_forward.4} parent=1 // pred_region
      _
    $region13: #{inverted_residual_forward.4} parent=1 // pred_fallthru
      _
    // Predicated region
    $region14: #{inverted_residual_forward.4} parent=1 // pred_check
      _
    $region15: #{inverted_residual_forward.4} parent=1 // pred_check_branch
      %35 = sbr.rel (0) target = $region17
    $region16: #{inverted_residual_forward.4} parent=1 // pred_region
      _
    $region17: #{inverted_residual_forward.4} parent=1 // pred_fallthru
      _
    // Predicated region
    $region18: #{inverted_residual_forward.4} parent=1 // pred_check
      _
    $region19: #{inverted_residual_forward.4} parent=1 // pred_check_branch
      %37 = sbr.rel (0) target = $region21
    $region20: #{inverted_residual_forward.4} parent=1 // pred_region
      _
    $region21: #{inverted_residual_forward.4} parent=1 // pred_fallthru
      _
    // Predicated region
    $region22: #{inverted_residual_forward.4} parent=1 // pred_check
      _
    $region23: #{inverted_residual_forward.4} parent=1 // pred_check_branch
      %39 = sbr.rel (0) target = $region25
    $region24: #{inverted_residual_forward.4} parent=1 // pred_region
      _
    $region25: #{inverted_residual_forward.4} parent=1 // pred_fallthru
      _
    // Predicated region
    $region26: #{inverted_residual_forward.4} parent=1 // pred_check
      _
    $region27: #{inverted_residual_forward.4} parent=1 // pred_check_branch
      %41 = sbr.rel (0) target = $region29
    $region28: #{inverted_residual_forward.4} parent=1 // pred_region
      _
    $region29: #{inverted_residual_forward.4} parent=1 // pred_fallthru
      _
    // Predicated region
    $region30: #{inverted_residual_forward.4} parent=1 // pred_check
      _
    $region31: #{inverted_residual_forward.4} parent=1 // pred_check_branch
      %43 = sbr.rel (0) target = $region33
    $region32: #{inverted_residual_forward.4} parent=1 // pred_region
      _
    $region33: #{inverted_residual_forward.4} parent=1 // pred_fallthru
      _
    // Predicated region
    $region34: #{inverted_residual_forward.4} parent=1 // pred_check
      _
    $region35: #{inverted_residual_forward.4} parent=1 // pred_check_branch
      %45 = sbr.rel (0) target = $region37
    $region36: #{inverted_residual_forward.4} parent=1 // pred_region
      _
    $region37: #{inverted_residual_forward.4} parent=1 // pred_fallthru
      _
    // Predicated region
    $region38: #{inverted_residual_forward.4} parent=1 // pred_check
      _
    $region39: #{inverted_residual_forward.4} parent=1 // pred_check_branch
      %47 = sbr.rel (0) target = $region41
    $region40: #{inverted_residual_forward.4} parent=1 // pred_region
      _
    $region41: #{inverted_residual_forward.4} parent=1 // pred_fallthru
      _
    // Predicated region
    $region42: #{inverted_residual_forward.4} parent=1 // pred_check
      _
    $region43: #{inverted_residual_forward.4} parent=1 // pred_check_branch
      %49 = sbr.rel (0) target = $region45
    $region44: #{inverted_residual_forward.4} parent=1 // pred_region
      %s51 = ssub.s32 16, 16
      %52 = vsyncadd [#allocation5], %s51
      %s54 = sshll.u32 %s10, 4
      %s55 = int_to_ptr.vmem [resolvable:$true] %s54
      %57 = dma.vmem_to_smem %s55, 16, [#allocation3], [#allocation5]
    $region45: #{inverted_residual_forward.4} parent=1 // pred_fallthru
      _
    // Predicated region
    $region46: #{inverted_residual_forward.4} parent=1 // pred_check
      _
    $region47: #{inverted_residual_forward.4} parent=1 // pred_check_branch
      %59 = sbr.rel (0) target = $region49
    $region48: #{inverted_residual_forward.4} parent=1 // pred_region
      _
    $region49: #{inverted_residual_forward.4} parent=1 // pred_fallthru
      _
    // Predicated region
    $region50: #{inverted_residual_forward.4} parent=1 // pred_check
      _
    $region51: #{inverted_residual_forward.4} parent=1 // pred_check_branch
      %61 = sbr.rel (0) target = $region53
    $region52: #{inverted_residual_forward.4} parent=1 // pred_region
      _
    $region53: #{inverted_residual_forward.4} parent=1 // pred_fallthru
      _
    // Predicated region
    $region54: #{inverted_residual_forward.4} parent=1 // pred_check
      _
    $region55: #{inverted_residual_forward.4} parent=1 // pred_check_branch
      %63 = sbr.rel (0) target = $region57
    $region56: #{inverted_residual_forward.4} parent=1 // pred_region
      _
    $region57: #{inverted_residual_forward.4} parent=1 // pred_fallthru
      _
    // Predicated region
    $region58: #{inverted_residual_forward.4} parent=1 // pred_check
      _
    $region59: #{inverted_residual_forward.4} parent=1 // pred_check_branch
      %65 = sbr.rel (0) target = $region61
    $region60: #{inverted_residual_forward.4} parent=1 // pred_region
      _
    $region61: #{inverted_residual_forward.4} parent=1 // pred_fallthru
      _
    // Predicated region
    $region62: #{inverted_residual_forward.4} parent=1 // pred_check
      _
    $region63: #{inverted_residual_forward.4} parent=1 // pred_check_branch
      %67 = sbr.rel (0) target = $region65
    $region64: #{inverted_residual_forward.4} parent=1 // pred_region
      _
    $region65: #{inverted_residual_forward.4} parent=1 // pred_fallthru
      _
    // Predicated region
    $region66: #{inverted_residual_forward.4} parent=1 // pred_check
      _
    $region67: #{inverted_residual_forward.4} parent=1 // pred_check_branch
      %69 = sbr.rel (0) target = $region69
    $region68: #{inverted_residual_forward.4} parent=1 // pred_region
      _
    $region69: #{inverted_residual_forward.4} parent=1 // pred_fallthru
      _
    // Predicated region
    $region70: #{inverted_residual_forward.4} parent=1 // pred_check
      _
    $region71: #{inverted_residual_forward.4} parent=1 // pred_check_branch
      %71 = sbr.rel (0) target = $region73
    $region72: #{inverted_residual_forward.4} parent=1 // pred_region
      _
    $region73: #{inverted_residual_forward.4} parent=1 // pred_fallthru
      _
    // Predicated region
    $region74: #{inverted_residual_forward.4} parent=1 // pred_check
      _
    $region75: #{inverted_residual_forward.4} parent=1 // pred_check_branch
      %73 = sbr.rel (0) target = $region77
    $region76: #{inverted_residual_forward.4} parent=1 // pred_region
      %74 = dma.done [#allocation5], 16
    $region77: #{inverted_residual_forward.4} parent=1 // pred_fallthru
      _
    %75 = sfence
    %v76 = vld [vmem:[%s0] sm:$0x3]
    %v77 = vld [vmem:[%s1] sm:$0x3]
    %v78 = vld [vmem:[%s2] sm:$0xff]
    %v79 = vld [vmem:[%s3] sm:$0x1]
    %v81 = vlaneseq
    %v82 = vshrl.u32 %v81, 7
    %v83 = vsub.s32 0, %v82
    %v84 = vrot.slane %v79, %v83
    %vm86 = vcmask 64512
    %v88 = vsel %vm86, %v77, 0
    %90 = vmatprep.subr.mxu0 0.0
    %91 = vmatpush1.msra.mxu0 %v78
    %92 = vmatprep.subr.mxu0 0.0
    %93 = vmatpush1.msra.mxu0 0.0
    %94 = vmatprep.subr.mxu0 0.0
    %95 = vmatpush1.msra.mxu0 0.0
    %96 = vmatprep.subr.mxu0 0.0
    %97 = vmatpush1.msra.mxu0 0.0
    %98 = vmatprep.subr.mxu0 0.0
    %99 = vmatpush1.msra.mxu0 0.0
    %100 = vmatprep.subr.mxu0 0.0
    %101 = vmatpush1.msra.mxu0 0.0
    %102 = vmatprep.subr.mxu0 0.0
    %103 = vmatpush1.msra.mxu0 0.0
    %104 = vmatprep.subr.mxu0 0.0
    %105 = vmatpush1.msra.mxu0 0.0
    %106 = vmatprep.subr.mxu0 0.0
    %107 = vmatpush1.msra.mxu0 0.0
    %108 = vmatprep.subr.mxu0 0.0
    %109 = vmatpush1.msra.mxu0 0.0
    %110 = vmatprep.subr.mxu0 0.0
    %111 = vmatpush1.msra.mxu0 0.0
    %112 = vmatprep.subr.mxu0 0.0
    %113 = vmatpush1.msra.mxu0 0.0
    %114 = vmatprep.subr.mxu0 0.0
    %115 = vmatpush1.msra.mxu0 0.0
    %116 = vmatprep.subr.mxu0 0.0
    %117 = vmatpush1.msra.mxu0 0.0
    %118 = vmatprep.subr.mxu0 0.0
    %119 = vmatpush1.msra.mxu0 0.0
    %120 = vmatprep.subr.mxu0 0.0
    %121 = vmatpush1.msra.mxu0 0.0
    %122 = vmatprep.subr.mxu0 0.0
    %123 = vmatpush1.msra.mxu0 0.0
    %124 = vmatprep.subr.mxu0 0.0
    %125 = vmatpush1.msra.mxu0 0.0
    %126 = vmatprep.subr.mxu0 0.0
    %127 = vmatpush1.msra.mxu0 0.0
    %128 = vmatprep.subr.mxu0 0.0
    %129 = vmatpush1.msra.mxu0 0.0
    %130 = vmatprep.subr.mxu0 0.0
    %131 = vmatpush1.msra.mxu0 0.0
    %132 = vmatprep.subr.mxu0 0.0
    %133 = vmatpush1.msra.mxu0 0.0
    %134 = vmatprep.subr.mxu0 0.0
    %135 = vmatpush1.msra.mxu0 0.0
    %136 = vmatprep.subr.mxu0 0.0
    %137 = vmatpush1.msra.mxu0 0.0
    %138 = vmatprep.subr.mxu0 0.0
    %139 = vmatpush1.msra.mxu0 0.0
    %140 = vmatprep.subr.mxu0 0.0
    %141 = vmatpush1.msra.mxu0 0.0
    %142 = vmatprep.subr.mxu0 0.0
    %143 = vmatpush1.msra.mxu0 0.0
    %144 = vmatprep.subr.mxu0 0.0
    %145 = vmatpush1.msra.mxu0 0.0
    %146 = vmatprep.subr.mxu0 0.0
    %147 = vmatpush1.msra.mxu0 0.0
    %148 = vmatprep.subr.mxu0 0.0
    %149 = vmatpush1.msra.mxu0 0.0
    %150 = vmatprep.subr.mxu0 0.0
    %151 = vmatpush1.msra.mxu0 0.0
    %152 = vmatprep.subr.mxu0 0.0
    %153 = vmatpush1.msra.mxu0 0.0
    %154 = vmatprep.mubr.f32.mxu0 0.0
    %155 = vmatmul.mubr.f32.gmra.mrb[0].mxu0 %v88
    %v156 = vpop.f32.mrb[0].mxu0
    %v157 = vadd.f32 %v84, %v156
    %v158 = vpop.f32.mrb[0].mxu0
    %159 = vdwg.mxu0
    %vm160 = vcmask 25600
    %v161 = vsel %vm160, %v157, 0.0
    %162 = vadd.xlane.f32.xlu0 %v161
    %v163 = vpop.xlane.xlu0 %162
    %v164 = vrcp.pop 4.0
    %v165 = vmul.f32 %v163, %v164
    %v166 = vsub.f32 %v157, %v165
    %v167 = vmul.f32 %v166, %v166
    %v168 = vsel %vm160, %v167, 0.0
    %169 = vadd.xlane.f32.xlu0 %v168
    %v170 = vpop.xlane.xlu0 %169
    %v171 = vmul.f32 %v170, %v164
    %v172 = vadd.f32 %v171, 1e-05
    %v173 = vrsqrt.pop %v172
    %v174 = vmul.f32 %v166, %v173
    %v175 = vld [vmem:[%s4] sm:$0x1]
    %v177 = vlaneseq
    %v178 = vshrl.u32 %v177, 7
    %v179 = vsub.s32 0, %v178
    %v180 = vrot.slane %v175, %v179
    %v182 = vmul.f32 %v174, %v180
    %v183 = vld [vmem:[%s5] sm:$0x1]
    %v185 = vlaneseq
    %v186 = vshrl.u32 %v185, 7
    %v187 = vsub.s32 0, %v186
    %v188 = vrot.slane %v183, %v187
    %v190 = vadd.f32 %v182, %v188
    %v191 = vmax.f32 %v190, 0.0
    %v192 = vld [vmem:[%s6] sm:$0xf]
    %v193 = vld [vmem:[%s7] sm:$0x1]
    %v195 = vlaneseq
    %v196 = vshrl.u32 %v195, 7
    %v197 = vsub.s32 0, %v196
    %v198 = vrot.slane %v193, %v197
    %vm200 = vcmask 31744
    %v202 = vsel %vm200, %v191, 0
    %vm204 = vcmask 1043456
    %v206 = vsel %vm204, %v192, 0
    %208 = vmatprep.subr.mxu0 0.0
    %209 = vmatpush1.msra.mxu0 %v206
    %210 = vmatprep.subr.mxu0 0.0
    %211 = vmatpush1.msra.mxu0 0.0
    %212 = vmatprep.subr.mxu0 0.0
    %213 = vmatpush1.msra.mxu0 0.0
    %214 = vmatprep.subr.mxu0 0.0
    %215 = vmatpush1.msra.mxu0 0.0
    %216 = vmatprep.subr.mxu0 0.0
    %217 = vmatpush1.msra.mxu0 0.0
    %218 = vmatprep.subr.mxu0 0.0
    %219 = vmatpush1.msra.mxu0 0.0
    %220 = vmatprep.subr.mxu0 0.0
    %221 = vmatpush1.msra.mxu0 0.0
    %222 = vmatprep.subr.mxu0 0.0
    %223 = vmatpush1.msra.mxu0 0.0
    %224 = vmatprep.subr.mxu0 0.0
    %225 = vmatpush1.msra.mxu0 0.0
    %226 = vmatprep.subr.mxu0 0.0
    %227 = vmatpush1.msra.mxu0 0.0
    %228 = vmatprep.subr.mxu0 0.0
    %229 = vmatpush1.msra.mxu0 0.0
    %230 = vmatprep.subr.mxu0 0.0
    %231 = vmatpush1.msra.mxu0 0.0
    %232 = vmatprep.subr.mxu0 0.0
    %233 = vmatpush1.msra.mxu0 0.0
    %234 = vmatprep.subr.mxu0 0.0
    %235 = vmatpush1.msra.mxu0 0.0
    %236 = vmatprep.subr.mxu0 0.0
    %237 = vmatpush1.msra.mxu0 0.0
    %238 = vmatprep.subr.mxu0 0.0
    %239 = vmatpush1.msra.mxu0 0.0
    %240 = vmatprep.subr.mxu0 0.0
    %241 = vmatpush1.msra.mxu0 0.0
    %242 = vmatprep.subr.mxu0 0.0
    %243 = vmatpush1.msra.mxu0 0.0
    %244 = vmatprep.subr.mxu0 0.0
    %245 = vmatpush1.msra.mxu0 0.0
    %246 = vmatprep.subr.mxu0 0.0
    %247 = vmatpush1.msra.mxu0 0.0
    %248 = vmatprep.subr.mxu0 0.0
    %249 = vmatpush1.msra.mxu0 0.0
    %250 = vmatprep.subr.mxu0 0.0
    %251 = vmatpush1.msra.mxu0 0.0
    %252 = vmatprep.subr.mxu0 0.0
    %253 = vmatpush1.msra.mxu0 0.0
    %254 = vmatprep.subr.mxu0 0.0
    %255 = vmatpush1.msra.mxu0 0.0
    %256 = vmatprep.subr.mxu0 0.0
    %257 = vmatpush1.msra.mxu0 0.0
    %258 = vmatprep.subr.mxu0 0.0
    %259 = vmatpush1.msra.mxu0 0.0
    %260 = vmatprep.subr.mxu0 0.0
    %261 = vmatpush1.msra.mxu0 0.0
    %262 = vmatprep.subr.mxu0 0.0
    %263 = vmatpush1.msra.mxu0 0.0
    %264 = vmatprep.subr.mxu0 0.0
    %265 = vmatpush1.msra.mxu0 0.0
    %266 = vmatprep.subr.mxu0 0.0
    %267 = vmatpush1.msra.mxu0 0.0
    %268 = vmatprep.subr.mxu0 0.0
    %269 = vmatpush1.msra.mxu0 0.0
    %270 = vmatprep.subr.mxu0 0.0
    %271 = vmatpush1.msra.mxu0 0.0
    %272 = vmatprep.mubr.f32.mxu0 0.0
    %273 = vmatmul.mubr.f32.gmra.mrb[0].mxu0 %v202
    %v274 = vpop.f32.mrb[0].mxu0
    %v275 = vadd.f32 %v198, %v274
    %v276 = vpop.f32.mrb[0].mxu0
    %277 = vdwg.mxu0
    %vm278 = vcmask 123904
    %v279 = vsel %vm278, %v275, 0.0
    %280 = vadd.xlane.f32.xlu0 %v279
    %v281 = vpop.xlane.xlu0 %280
    %v282 = vrcp.pop 16.0
    %v283 = vmul.f32 %v281, %v282
    %v284 = vsub.f32 %v275, %v283
    %v285 = vmul.f32 %v284, %v284
    %v286 = vsel %vm278, %v285, 0.0
    %287 = vadd.xlane.f32.xlu0 %v286
    %v288 = vpop.xlane.xlu0 %287
    %v289 = vmul.f32 %v288, %v282
    %v290 = vadd.f32 %v289, 1e-05
    %v291 = vrsqrt.pop %v290
    %v292 = vmul.f32 %v284, %v291
    %v293 = vld [vmem:[%s8] sm:$0x1]
    %v295 = vlaneseq
    %v296 = vshrl.u32 %v295, 7
    %v297 = vsub.s32 0, %v296
    %v298 = vrot.slane %v293, %v297
    %v300 = vmul.f32 %v292, %v298
    %v301 = vld [vmem:[%s9] sm:$0x1]
    %v303 = vlaneseq
    %v304 = vshrl.u32 %v303, 7
    %v305 = vsub.s32 0, %v304
    %v306 = vrot.slane %v301, %v305
    %v308 = vadd.f32 %v300, %v306
    %v309 = vmax.f32 %v308, 0.0
    %s310 = sld [smem:[#allocation3]]
    %v311 = vstv %s310
    %v312 = vmul.f32 %v311, %v76
    %s313 = sld [smem:[#allocation3 + $0x1]]
    %v314 = vstv %s313
    %v315 = vmul.f32 %v314, %v309
    %v316 = vadd.f32 %v312, %v315
    %s317 = sld [smem:[#allocation2]]
    %v318 = vstv %s317
    %v319 = vadd.f32 %v316, %v318
    %v320 = vsel %vm278, %v319, 0.0
    %321 = vadd.xlane.f32.xlu0 %v320
    %v322 = vpop.xlane.xlu0 %321
    %v323 = vmul.f32 %v322, %v282
    %v324 = vsub.f32 %v319, %v323
    %v325 = vmul.f32 %v324, %v324
    %v326 = vsel %vm278, %v325, 0.0
    %327 = vadd.xlane.f32.xlu0 %v326
    %v328 = vpop.xlane.xlu0 %327
    %v329 = vmul.f32 %v328, %v282
    %v330 = vadd.f32 %v329, 1e-05
    %v331 = vrsqrt.pop %v330
    %v332 = vmul.f32 %v324, %v331
    %v333 = vld [vmem:[%s12] sm:$0x1]
    %v335 = vlaneseq
    %v336 = vshrl.u32 %v335, 7
    %v337 = vsub.s32 0, %v336
    %v338 = vrot.slane %v333, %v337
    %v340 = vmul.f32 %v332, %v338
    %v341 = vld [vmem:[%s13] sm:$0x1]
    %v343 = vlaneseq
    %v344 = vshrl.u32 %v343, 7
    %v345 = vsub.s32 0, %v344
    %v346 = vrot.slane %v341, %v345
    %v348 = vadd.f32 %v340, %v346
    %v349 = vmax.f32 %v348, 0.0
    %v350 = vld [vmem:[%s14] sm:$0xff]
    %v351 = vld [vmem:[%s14 + $0x8] sm:$0xff]
    %v352 = vld [vmem:[%s15] sm:$0x1]
    %v354 = vlaneseq
    %v355 = vshrl.u32 %v354, 7
    %v356 = vsub.s32 0, %v355
    %v357 = vrot.slane %v352, %v356
    %vm359 = vcmask 130048
    %v361 = vsel %vm359, %v349, 0
    %363 = vmatprep.subr.mxu0 0.0
    %364 = vmatpush1.msra.mxu0 %v350
    %365 = vmatprep.subr.mxu0 0.0
    %366 = vmatpush1.msra.mxu0 %v351
    %367 = vmatprep.subr.mxu0 0.0
    %368 = vmatpush1.msra.mxu0 0.0
    %369 = vmatprep.subr.mxu0 0.0
    %370 = vmatpush1.msra.mxu0 0.0
    %371 = vmatprep.subr.mxu0 0.0
    %372 = vmatpush1.msra.mxu0 0.0
    %373 = vmatprep.subr.mxu0 0.0
    %374 = vmatpush1.msra.mxu0 0.0
    %375 = vmatprep.subr.mxu0 0.0
    %376 = vmatpush1.msra.mxu0 0.0
    %377 = vmatprep.subr.mxu0 0.0
    %378 = vmatpush1.msra.mxu0 0.0
    %379 = vmatprep.subr.mxu0 0.0
    %380 = vmatpush1.msra.mxu0 0.0
    %381 = vmatprep.subr.mxu0 0.0
    %382 = vmatpush1.msra.mxu0 0.0
    %383 = vmatprep.subr.mxu0 0.0
    %384 = vmatpush1.msra.mxu0 0.0
    %385 = vmatprep.subr.mxu0 0.0
    %386 = vmatpush1.msra.mxu0 0.0
    %387 = vmatprep.subr.mxu0 0.0
    %388 = vmatpush1.msra.mxu0 0.0
    %389 = vmatprep.subr.mxu0 0.0
    %390 = vmatpush1.msra.mxu0 0.0
    %391 = vmatprep.subr.mxu0 0.0
    %392 = vmatpush1.msra.mxu0 0.0
    %393 = vmatprep.subr.mxu0 0.0
    %394 = vmatpush1.msra.mxu0 0.0
    %395 = vmatprep.subr.mxu0 0.0
    %396 = vmatpush1.msra.mxu0 0.0
    %397 = vmatprep.subr.mxu0 0.0
    %398 = vmatpush1.msra.mxu0 0.0
    %399 = vmatprep.subr.mxu0 0.0
    %400 = vmatpush1.msra.mxu0 0.0
    %401 = vmatprep.subr.mxu0 0.0
    %402 = vmatpush1.msra.mxu0 0.0
    %403 = vmatprep.subr.mxu0 0.0
    %404 = vmatpush1.msra.mxu0 0.0
    %405 = vmatprep.subr.mxu0 0.0
    %406 = vmatpush1.msra.mxu0 0.0
    %407 = vmatprep.subr.mxu0 0.0
    %408 = vmatpush1.msra.mxu0 0.0
    %409 = vmatprep.subr.mxu0 0.0
    %410 = vmatpush1.msra.mxu0 0.0
    %411 = vmatprep.subr.mxu0 0.0
    %412 = vmatpush1.msra.mxu0 0.0
    %413 = vmatprep.subr.mxu0 0.0
    %414 = vmatpush1.msra.mxu0 0.0
    %415 = vmatprep.subr.mxu0 0.0
    %416 = vmatpush1.msra.mxu0 0.0
    %417 = vmatprep.subr.mxu0 0.0
    %418 = vmatpush1.msra.mxu0 0.0
    %419 = vmatprep.subr.mxu0 0.0
    %420 = vmatpush1.msra.mxu0 0.0
    %421 = vmatprep.subr.mxu0 0.0
    %422 = vmatpush1.msra.mxu0 0.0
    %423 = vmatprep.subr.mxu0 0.0
    %424 = vmatpush1.msra.mxu0 0.0
    %425 = vmatprep.subr.mxu0 0.0
    %426 = vmatpush1.msra.mxu0 0.0
    %427 = vmatprep.mubr.f32.mxu0 0.0
    %428 = vmatmul.mubr.f32.gmra.mrb[0].mxu0 %v361
    %v429 = vpop.f32.mrb[0].mxu0
    %v430 = vadd.f32 %v357, %v429
    %v431 = vpop.f32.mrb[0].mxu0
    %432 = vdwg.mxu0
    %v433 = vmax.f32 %v430, 0.0
    %v434 = vld [vmem:[%s16] sm:$0xf]
    %v435 = vld [vmem:[%s17] sm:$0x1]
    %v437 = vlaneseq
    %v438 = vshrl.u32 %v437, 7
    %v439 = vsub.s32 0, %v438
    %v440 = vrot.slane %v435, %v439
    %v443 = vsel %vm200, %v433, 0
    %v446 = vsel %vm204, %v434, 0
    %448 = vmatprep.subr.mxu0 0.0
    %449 = vmatpush1.msra.mxu0 %v446
    %450 = vmatprep.subr.mxu0 0.0
    %451 = vmatpush1.msra.mxu0 0.0
    %452 = vmatprep.subr.mxu0 0.0
    %453 = vmatpush1.msra.mxu0 0.0
    %454 = vmatprep.subr.mxu0 0.0
    %455 = vmatpush1.msra.mxu0 0.0
    %456 = vmatprep.subr.mxu0 0.0
    %457 = vmatpush1.msra.mxu0 0.0
    %458 = vmatprep.subr.mxu0 0.0
    %459 = vmatpush1.msra.mxu0 0.0
    %460 = vmatprep.subr.mxu0 0.0
    %461 = vmatpush1.msra.mxu0 0.0
    %462 = vmatprep.subr.mxu0 0.0
    %463 = vmatpush1.msra.mxu0 0.0
    %464 = vmatprep.subr.mxu0 0.0
    %465 = vmatpush1.msra.mxu0 0.0
    %466 = vmatprep.subr.mxu0 0.0
    %467 = vmatpush1.msra.mxu0 0.0
    %468 = vmatprep.subr.mxu0 0.0
    %469 = vmatpush1.msra.mxu0 0.0
    %470 = vmatprep.subr.mxu0 0.0
    %471 = vmatpush1.msra.mxu0 0.0
    %472 = vmatprep.subr.mxu0 0.0
    %473 = vmatpush1.msra.mxu0 0.0
    %474 = vmatprep.subr.mxu0 0.0
    %475 = vmatpush1.msra.mxu0 0.0
    %476 = vmatprep.subr.mxu0 0.0
    %477 = vmatpush1.msra.mxu0 0.0
    %478 = vmatprep.subr.mxu0 0.0
    %479 = vmatpush1.msra.mxu0 0.0
    %480 = vmatprep.subr.mxu0 0.0
    %481 = vmatpush1.msra.mxu0 0.0
    %482 = vmatprep.subr.mxu0 0.0
    %483 = vmatpush1.msra.mxu0 0.0
    %484 = vmatprep.subr.mxu0 0.0
    %485 = vmatpush1.msra.mxu0 0.0
    %486 = vmatprep.subr.mxu0 0.0
    %487 = vmatpush1.msra.mxu0 0.0
    %488 = vmatprep.subr.mxu0 0.0
    %489 = vmatpush1.msra.mxu0 0.0
    %490 = vmatprep.subr.mxu0 0.0
    %491 = vmatpush1.msra.mxu0 0.0
    %492 = vmatprep.subr.mxu0 0.0
    %493 = vmatpush1.msra.mxu0 0.0
    %494 = vmatprep.subr.mxu0 0.0
    %495 = vmatpush1.msra.mxu0 0.0
    %496 = vmatprep.subr.mxu0 0.0
    %497 = vmatpush1.msra.mxu0 0.0
    %498 = vmatprep.subr.mxu0 0.0
    %499 = vmatpush1.msra.mxu0 0.0
    %500 = vmatprep.subr.mxu0 0.0
    %501 = vmatpush1.msra.mxu0 0.0
    %502 = vmatprep.subr.mxu0 0.0
    %503 = vmatpush1.msra.mxu0 0.0
    %504 = vmatprep.subr.mxu0 0.0
    %505 = vmatpush1.msra.mxu0 0.0
    %506 = vmatprep.subr.mxu0 0.0
    %507 = vmatpush1.msra.mxu0 0.0
    %508 = vmatprep.subr.mxu0 0.0
    %509 = vmatpush1.msra.mxu0 0.0
    %510 = vmatprep.subr.mxu0 0.0
    %511 = vmatpush1.msra.mxu0 0.0
    %512 = vmatprep.mubr.f32.mxu0 0.0
    %513 = vmatmul.mubr.f32.gmra.mrb[0].mxu0 %v443
    %v514 = vpop.f32.mrb[0].mxu0
    %v515 = vadd.f32 %v440, %v514
    %v516 = vpop.f32.mrb[0].mxu0
    %517 = vdwg.mxu0
    %v518 = vxor.u32 %v515, 2147483648
    %v519 = vmul.f32 %v518, 1.442695
    %v520 = vpow.pop %v519
    %v521 = vadd.f32 %v520, 1.0
    %v522 = vrcp.pop %v521
    %v523 = vmul.f32 1.0, %v522
    %524 = vst.msk [vmem:[%s18] sm:$0x3] %vm278, %v523
    %v525 = vmul.f32 %v76, %v523
    %526 = vst.msk [vmem:[#allocation6] sm:$0x3] %vm278, %v525
    // Predicated region
    $region78: #{inverted_residual_forward.4} parent=1 // pred_check
      _
    $region79: #{inverted_residual_forward.4} parent=1 // pred_check_branch
      %528 = sbr.rel (0) target = $region81
    $region80: #{inverted_residual_forward.4} parent=1 // pred_region
      _
    $region81: #{inverted_residual_forward.4} parent=1 // pred_fallthru
      _
    // Predicated region
    $region82: #{inverted_residual_forward.4} parent=1 // pred_check
      _
    $region83: #{inverted_residual_forward.4} parent=1 // pred_check_branch
      %530 = sbr.rel (0) target = $region85
    $region84: #{inverted_residual_forward.4} parent=1 // pred_region
      %s532 = ssub.s32 32, 32
      %533 = vsyncadd [#allocation4], %s532
      %s535 = sshll.u32 [#allocation6], 4
      %s536 = int_to_ptr.vmem [resolvable:$true] %s535
      %538 = dma.vmem_to_hbm [thread:$0]  %s536, 32, %s19, [#allocation4]
    $region85: #{inverted_residual_forward.4} parent=1 // pred_fallthru
      _
    // Predicated region
    $region86: #{inverted_residual_forward.4} parent=1 // pred_check
      _
    $region87: #{inverted_residual_forward.4} parent=1 // pred_check_branch
      %540 = sbr.rel (0) target = $region89
    $region88: #{inverted_residual_forward.4} parent=1 // pred_region
      _
    $region89: #{inverted_residual_forward.4} parent=1 // pred_fallthru
      _
    // Predicated region
    $region90: #{inverted_residual_forward.4} parent=1 // pred_check
      _
    $region91: #{inverted_residual_forward.4} parent=1 // pred_check_branch
      %542 = sbr.rel (0) target = $region93
    $region92: #{inverted_residual_forward.4} parent=1 // pred_region
      %543 = dma.done [#allocation4], 32
    $region93: #{inverted_residual_forward.4} parent=1 // pred_fallthru
      _
    %544 = vsyncpa [#allocation4], 1
    %545 = vsyncpa [#allocation5], 1

// kernel: inverted_residual_forward.3
$region0: #{inverted_residual_forward.3}
  #allocation0 [shape = 'u32[]', space=smem, size = 0x4, offset = 0x4, fixed_abs, tag = 'smem constant byte address 0x4 - core index']
  #allocation1 [shape = 'u32[144,128]{1,0:T(1,128)}', space=vmem, size = 0x12000, scoped, tag = 'internal scratch']
  #allocation2 [shape = 'f32[18,24,24]{2,1,0:T(8,128)}', space=vmem, size = 0x36000, scoped, tag = 'scratch operand']
  %s0 = inlined_call_operand.vmem [shape: f32[2,16,16,8], index: 0, kind: input, shape index: {}]
  %s1 = inlined_call_operand.vmem [shape: f32[8,24], index: 1, kind: input, shape index: {}]
  %s2 = inlined_call_operand.vmem [shape: f32[1,24], index: 2, kind: input, shape index: {}]
  %s3 = inlined_call_operand.vmem [shape: f32[1,24], index: 3, kind: input, shape index: {}]
  %s4 = inlined_call_operand.vmem [shape: f32[9,24], index: 4, kind: input, shape index: {}]
  %s5 = inlined_call_operand.vmem [shape: f32[1,24], index: 5, kind: input, shape index: {}]
  %s6 = inlined_call_operand.vmem [shape: f32[1,24], index: 6, kind: input, shape index: {}]
  %s7 = inlined_call_operand.vmem [shape: f32[24,16], index: 7, kind: input, shape index: {}]
  %s8 = inlined_call_operand.vmem [shape: f32[1,16], index: 8, kind: input, shape index: {}]
  %s9 = inlined_call_operand.vmem [shape: f32[1,16], index: 9, kind: input, shape index: {}]
  %s10 = inlined_call_operand.vmem [shape: bf16[2,16,16,16], index: 10, kind: output, shape index: {0}]
  %s11 = inlined_call_operand.vmem [shape: f32[2,1,16], index: 11, kind: output, shape index: {1}]
  %12 = xla_tuple %s10, %s11
  %s13 = sld [smem:[#allocation0]]
  $region85: #{inverted_residual_forward.3} parent=0
    _
  %s15 = ssub.s32 1, %s13
  %s16 = scalar_select 0, %s15, %s13
  loop: start=0, step=1, limit=6
  $region2: #{inverted_residual_forward.3} parent=0 // loop_pre_header
    _
  $region3: #{inverted_residual_forward.3} parent=0 // loop_header
    %s18 = sphi 0, %s22
    %p19 = scmp.ge.s32.totalorder %s18, 6
    %s25 = sphi 0, %s37
    %s26 = sphi 0, %s33
    %s27 = sphi 0, %s25
    %s28 = sphi 0, %s26
    %s29 = sphi 0, %s27
    %s30 = sphi 0, %s28
    %s40 = sphi 0, %s42
    %s43 = sphi 0, %s40
    %s44 = sphi 0, %s43
    %s60 = sphi 0, %s44
    %s64 = sphi 0, %s64
    %s66 = sphi 0, %s64
    %s67 = sphi 0, %s66
    %s81 = sphi 0, %s67
    %s85 = sphi 0, %s85
    %s87 = sphi 0, %s85
    %s88 = sphi 0, %s87
    %s102 = sphi 0, %s88
    %s106 = sphi 0, %s106
    %s108 = sphi 0, %s106
    %s109 = sphi 0, %s108
    %s123 = sphi 0, %s109
    %s127 = sphi 0, %s127
    %s129 = sphi 0, %s127
    %s130 = sphi 0, %s129
    %s144 = sphi 0, %s130
    %s148 = sphi 0, %s148
    %s150 = sphi 0, %s148
    %s151 = sphi 0, %s150
    %s165 = sphi 0, %s151
    %s169 = sphi 0, %s169
    %s171 = sphi 0, %s169
    %s172 = sphi 0, %s171
    %s186 = sphi 0, %s172
    %s190 = sphi 0, %s190
    %s192 = sphi 0, %s190
    %s193 = sphi 0, %s192
    %s207 = sphi 0, %s193
    %s211 = sphi 0, %s211
    %s213 = sphi 0, %s211
    %s214 = sphi 0, %s213
    %s228 = sphi 0, %s214
    %s232 = sphi 0, %s232
    %s234 = sphi 0, %s232
    %s235 = sphi 0, %s234
    %s249 = sphi 0, %s235
    %s257 = sphi 0, %s259
    %s260 = sphi 0, %s257
    %s261 = sphi 0, %s260
    %s277 = sphi 0, %s261
    %s283 = sphi 0, %s285
    %s286 = sphi 0, %s283
    %s287 = sphi 0, %s286
    %s303 = sphi 0, %s287
  $region4: #{inverted_residual_forward.3} parent=0 // loop_header_branch
    %21 = sbr.rel (%p19) target = $region8
  $region5: #{inverted_residual_forward.3} parent=0 // loop_body
    %s23 = ssub.s32 %s18, 1
    %s24 = ssub.s32 %s18, 2
    %s31 = sadd.s32 1, %s26
    %p32 = scmp.ge.s32.totalorder %s31, 2
    %s33 = scalar_select %p32, 0, %s31
    %s34 = sadd.s32 1, %s25
    %s35 = scalar_select %p32, %s34, %s25
    %p36 = scmp.ge.s32.totalorder %s35, 2
    %s37 = scalar_select %p36, 0, %s35
    %s38 = ssub.s32 %s25, %s37
    %p39 = scmp.eq.s32.totalorder %s38, 0
    %s41 = sadd.s32 %s40, 1
    %s42 = scalar_select %p39, %s40, %s41
    %p45 = pneg %p39
    %p46 = scmp.eq.s32.totalorder %s18, 3
    %p47 = por %p45, %p46
    %p48 = scmp.ne.s32.totalorder %s40, %s43
    %p49 = scmp.eq.s32.totalorder %s18, 0
    %p50 = por %p48, %p49
    %p51 = scmp.ne.s32.totalorder %s40, %s43
    %p52 = scmp.eq.s32.totalorder %s23, 3
    %p53 = por %p51, %p52
    %p54 = scmp.ne.s32.totalorder %s43, %s44
    %p55 = scmp.eq.s32.totalorder %s23, 0
    %p56 = por %p54, %p55
    %p57 = scmp.ne.s32.totalorder %s43, %s44
    %p58 = scmp.eq.s32.totalorder %s24, 3
    %p59 = por %p57, %p58
    %p61 = scmp.ne.s32.totalorder %s44, %s60
    %p62 = scmp.eq.s32.totalorder %s24, 0
    %p63 = por %p61, %p62
    %s65 = sadd.s32 %s64, 1
    %p68 = scmp.eq.s32.totalorder %s18, 3
    %p69 = scmp.ne.s32.totalorder %s64, %s66
    %p70 = scmp.eq.s32.totalorder %s18, 0
    %p71 = por %p69, %p70
    %p72 = scmp.ne.s32.totalorder %s64, %s66
    %p73 = scmp.eq.s32.totalorder %s23, 3
    %p74 = por %p72, %p73
    %p75 = scmp.ne.s32.totalorder %s66, %s67
    %p76 = scmp.eq.s32.totalorder %s23, 0
    %p77 = por %p75, %p76
    %p78 = scmp.ne.s32.totalorder %s66, %s67
    %p79 = scmp.eq.s32.totalorder %s24, 3
    %p80 = por %p78, %p79
    %p82 = scmp.ne.s32.totalorder %s67, %s81
    %p83 = scmp.eq.s32.totalorder %s24, 0
    %p84 = por %p82, %p83
    %s86 = sadd.s32 %s85, 1
    %p89 = scmp.eq.s32.totalorder %s18, 3
    %p90 = scmp.ne.s32.totalorder %s85, %s87
    %p91 = scmp.eq.s32.totalorder %s18, 0
    %p92 = por %p90, %p91
    %p93 = scmp.ne.s32.totalorder %s85, %s87
    %p94 = scmp.eq.s32.totalorder %s23, 3
    %p95 = por %p93, %p94
    %p96 = scmp.ne.s32.totalorder %s87, %s88
    %p97 = scmp.eq.s32.totalorder %s23, 0
    %p98 = por %p96, %p97
    %p99 = scmp.ne.s32.totalorder %s87, %s88
    %p100 = scmp.eq.s32.totalorder %s24, 3
    %p101 = por %p99, %p100
    %p103 = scmp.ne.s32.totalorder %s88, %s102
    %p104 = scmp.eq.s32.totalorder %s24, 0
    %p105 = por %p103, %p104
    %s107 = sadd.s32 %s106, 1
    %p110 = scmp.eq.s32.totalorder %s18, 3
    %p111 = scmp.ne.s32.totalorder %s106, %s108
    %p112 = scmp.eq.s32.totalorder %s18, 0
    %p113 = por %p111, %p112
    %p114 = scmp.ne.s32.totalorder %s106, %s108
    %p115 = scmp.eq.s32.totalorder %s23, 3
    %p116 = por %p114, %p115
    %p117 = scmp.ne.s32.totalorder %s108, %s109
    %p118 = scmp.eq.s32.totalorder %s23, 0
    %p119 = por %p117, %p118
    %p120 = scmp.ne.s32.totalorder %s108, %s109
    %p121 = scmp.eq.s32.totalorder %s24, 3
    %p122 = por %p120, %p121
    %p124 = scmp.ne.s32.totalorder %s109, %s123
    %p125 = scmp.eq.s32.totalorder %s24, 0
    %p126 = por %p124, %p125
    %s128 = sadd.s32 %s127, 1
    %p131 = scmp.eq.s32.totalorder %s18, 3
    %p132 = scmp.ne.s32.totalorder %s127, %s129
    %p133 = scmp.eq.s32.totalorder %s18, 0
    %p134 = por %p132, %p133
    %p135 = scmp.ne.s32.totalorder %s127, %s129
    %p136 = scmp.eq.s32.totalorder %s23, 3
    %p137 = por %p135, %p136
    %p138 = scmp.ne.s32.totalorder %s129, %s130
    %p139 = scmp.eq.s32.totalorder %s23, 0
    %p140 = por %p138, %p139
    %p141 = scmp.ne.s32.totalorder %s129, %s130
    %p142 = scmp.eq.s32.totalorder %s24, 3
    %p143 = por %p141, %p142
    %p145 = scmp.ne.s32.totalorder %s130, %s144
    %p146 = scmp.eq.s32.totalorder %s24, 0
    %p147 = por %p145, %p146
    %s149 = sadd.s32 %s148, 1
    %p152 = scmp.eq.s32.totalorder %s18, 3
    %p153 = scmp.ne.s32.totalorder %s148, %s150
    %p154 = scmp.eq.s32.totalorder %s18, 0
    %p155 = por %p153, %p154
    %p156 = scmp.ne.s32.totalorder %s148, %s150
    %p157 = scmp.eq.s32.totalorder %s23, 3
    %p158 = por %p156, %p157
    %p159 = scmp.ne.s32.totalorder %s150, %s151
    %p160 = scmp.eq.s32.totalorder %s23, 0
    %p161 = por %p159, %p160
    %p162 = scmp.ne.s32.totalorder %s150, %s151
    %p163 = scmp.eq.s32.totalorder %s24, 3
    %p164 = por %p162, %p163
    %p166 = scmp.ne.s32.totalorder %s151, %s165
    %p167 = scmp.eq.s32.totalorder %s24, 0
    %p168 = por %p166, %p167
    %s170 = sadd.s32 %s169, 1
    %p173 = scmp.eq.s32.totalorder %s18, 3
    %p174 = scmp.ne.s32.totalorder %s169, %s171
    %p175 = scmp.eq.s32.totalorder %s18, 0
    %p176 = por %p174, %p175
    %p177 = scmp.ne.s32.totalorder %s169, %s171
    %p178 = scmp.eq.s32.totalorder %s23, 3
    %p179 = por %p177, %p178
    %p180 = scmp.ne.s32.totalorder %s171, %s172
    %p181 = scmp.eq.s32.totalorder %s23, 0
    %p182 = por %p180, %p181
    %p183 = scmp.ne.s32.totalorder %s171, %s172
    %p184 = scmp.eq.s32.totalorder %s24, 3
    %p185 = por %p183, %p184
    %p187 = scmp.ne.s32.totalorder %s172, %s186
    %p188 = scmp.eq.s32.totalorder %s24, 0
    %p189 = por %p187, %p188
    %s191 = sadd.s32 %s190, 1
    %p194 = scmp.eq.s32.totalorder %s18, 3
    %p195 = scmp.ne.s32.totalorder %s190, %s192
    %p196 = scmp.eq.s32.totalorder %s18, 0
    %p197 = por %p195, %p196
    %p198 = scmp.ne.s32.totalorder %s190, %s192
    %p199 = scmp.eq.s32.totalorder %s23, 3
    %p200 = por %p198, %p199
    %p201 = scmp.ne.s32.totalorder %s192, %s193
    %p202 = scmp.eq.s32.totalorder %s23, 0
    %p203 = por %p201, %p202
    %p204 = scmp.ne.s32.totalorder %s192, %s193
    %p205 = scmp.eq.s32.totalorder %s24, 3
    %p206 = por %p204, %p205
    %p208 = scmp.ne.s32.totalorder %s193, %s207
    %p209 = scmp.eq.s32.totalorder %s24, 0
    %p210 = por %p208, %p209
    %s212 = sadd.s32 %s211, 1
    %p215 = scmp.eq.s32.totalorder %s18, 3
    %p216 = scmp.ne.s32.totalorder %s211, %s213
    %p217 = scmp.eq.s32.totalorder %s18, 0
    %p218 = por %p216, %p217
    %p219 = scmp.ne.s32.totalorder %s211, %s213
    %p220 = scmp.eq.s32.totalorder %s23, 3
    %p221 = por %p219, %p220
    %p222 = scmp.ne.s32.totalorder %s213, %s214
    %p223 = scmp.eq.s32.totalorder %s23, 0
    %p224 = por %p222, %p223
    %p225 = scmp.ne.s32.totalorder %s213, %s214
    %p226 = scmp.eq.s32.totalorder %s24, 3
    %p227 = por %p225, %p226
    %p229 = scmp.ne.s32.totalorder %s214, %s228
    %p230 = scmp.eq.s32.totalorder %s24, 0
    %p231 = por %p229, %p230
    %s233 = sadd.s32 %s232, 1
    %p236 = scmp.eq.s32.totalorder %s18, 3
    %p237 = scmp.ne.s32.totalorder %s232, %s234
    %p238 = scmp.eq.s32.totalorder %s18, 0
    %p239 = por %p237, %p238
    %p240 = scmp.ne.s32.totalorder %s232, %s234
    %p241 = scmp.eq.s32.totalorder %s23, 3
    %p242 = por %p240, %p241
    %p243 = scmp.ne.s32.totalorder %s234, %s235
    %p244 = scmp.eq.s32.totalorder %s23, 0
    %p245 = por %p243, %p244
    %p246 = scmp.ne.s32.totalorder %s234, %s235
    %p247 = scmp.eq.s32.totalorder %s24, 3
    %p248 = por %p246, %p247
    %p250 = scmp.ne.s32.totalorder %s235, %s249
    %p251 = scmp.eq.s32.totalorder %s24, 0
    %p252 = por %p250, %p251
    %s253 = ssub.s32 %s25, %s37
    %s254 = ssub.s32 %s26, %s33
    %s255 = sor.u32 %s253, %s254
    %p256 = scmp.eq.s32.totalorder %s255, 0
    %s258 = sadd.s32 %s257, 1
    %s259 = scalar_select %p256, %s257, %s258
    %p262 = pneg %p256
    %p263 = scmp.eq.s32.totalorder %s18, 3
    %p264 = por %p262, %p263
    %p265 = scmp.ne.s32.totalorder %s257, %s260
    %p266 = scmp.eq.s32.totalorder %s18, 0
    %p267 = por %p265, %p266
    %p268 = scmp.ne.s32.totalorder %s257, %s260
    %p269 = scmp.eq.s32.totalorder %s23, 3
    %p270 = por %p268, %p269
    %p271 = scmp.ne.s32.totalorder %s260, %s261
    %p272 = scmp.eq.s32.totalorder %s23, 0
    %p273 = por %p271, %p272
    %p274 = scmp.ne.s32.totalorder %s260, %s261
    %p275 = scmp.eq.s32.totalorder %s24, 3
    %p276 = por %p274, %p275
    %p278 = scmp.ne.s32.totalorder %s261, %s277
    %p279 = scmp.eq.s32.totalorder %s24, 0
    %p280 = por %p278, %p279
    %s281 = ssub.s32 %s25, %s37
    %p282 = scmp.eq.s32.totalorder %s281, 0
    %s284 = sadd.s32 %s283, 1
    %s285 = scalar_select %p282, %s283, %s284
    %p288 = pneg %p282
    %p289 = scmp.eq.s32.totalorder %s18, 3
    %p290 = por %p288, %p289
    %p291 = scmp.ne.s32.totalorder %s283, %s286
    %p292 = scmp.eq.s32.totalorder %s18, 0
    %p293 = por %p291, %p292
    %p294 = scmp.ne.s32.totalorder %s283, %s286
    %p295 = scmp.eq.s32.totalorder %s23, 3
    %p296 = por %p294, %p295
    %p297 = scmp.ne.s32.totalorder %s286, %s287
    %p298 = scmp.eq.s32.totalorder %s23, 0
    %p299 = por %p297, %p298
    %p300 = scmp.ne.s32.totalorder %s286, %s287
    %p301 = scmp.eq.s32.totalorder %s24, 3
    %p302 = por %p300, %p301
    %p304 = scmp.ne.s32.totalorder %s287, %s303
    %p305 = scmp.eq.s32.totalorder %s24, 0
    %p306 = por %p304, %p305
    %p307 = scmp.le.s32.totalorder 1, %s18
    %p308 = scmp.lt.s32.totalorder %s18, 5
    %p309 = pnand %p307, %p308
    %p310 = pneg %p309
    // Predicated region
    $region9: #{inverted_residual_forward.3} parent=5 // pred_check
      _
    $region10: #{inverted_residual_forward.3} parent=5 // pred_check_branch
      %312 = sbr.rel (%p309) target = $region12
    $region11: #{inverted_residual_forward.3} parent=5 // pred_region
      %s313 = ssub.s32 %s18, 1
      // Predicated region
      $region13: #{inverted_residual_forward.3} parent=11 // pred_check
        %p314 = pneg %p77
      $region14: #{inverted_residual_forward.3} parent=11 // pred_check_branch
        %316 = sbr.rel (%p314) target = $region16
      $region15: #{inverted_residual_forward.3} parent=11 // pred_region
        _
      $region16: #{inverted_residual_forward.3} parent=11 // pred_fallthru
        _
      // Predicated region
      $region17: #{inverted_residual_forward.3} parent=11 // pred_check
        %p317 = pneg %p98
      $region18: #{inverted_residual_forward.3} parent=11 // pred_check_branch
        %319 = sbr.rel (%p317) target = $region20
      $region19: #{inverted_residual_forward.3} parent=11 // pred_region
        _
      $region20: #{inverted_residual_forward.3} parent=11 // pred_fallthru
        _
      // Predicated region
      $region21: #{inverted_residual_forward.3} parent=11 // pred_check
        %p320 = pneg %p119
      $region22: #{inverted_residual_forward.3} parent=11 // pred_check_branch
        %322 = sbr.rel (%p320) target = $region24
      $region23: #{inverted_residual_forward.3} parent=11 // pred_region
        _
      $region24: #{inverted_residual_forward.3} parent=11 // pred_fallthru
        _
      // Predicated region
      $region25: #{inverted_residual_forward.3} parent=11 // pred_check
        %p323 = pneg %p140
      $region26: #{inverted_residual_forward.3} parent=11 // pred_check_branch
        %325 = sbr.rel (%p323) target = $region28
      $region27: #{inverted_residual_forward.3} parent=11 // pred_region
        _
      $region28: #{inverted_residual_forward.3} parent=11 // pred_fallthru
        _
      // Predicated region
      $region29: #{inverted_residual_forward.3} parent=11 // pred_check
        %p326 = pneg %p161
      $region30: #{inverted_residual_forward.3} parent=11 // pred_check_branch
        %328 = sbr.rel (%p326) target = $region32
      $region31: #{inverted_residual_forward.3} parent=11 // pred_region
        _
      $region32: #{inverted_residual_forward.3} parent=11 // pred_fallthru
        _
      // Predicated region
      $region33: #{inverted_residual_forward.3} parent=11 // pred_check
        %p329 = pneg %p182
      $region34: #{inverted_residual_forward.3} parent=11 // pred_check_branch
        %331 = sbr.rel (%p329) target = $region36
      $region35: #{inverted_residual_forward.3} parent=11 // pred_region
        _
      $region36: #{inverted_residual_forward.3} parent=11 // pred_fallthru
        _
      // Predicated region
      $region37: #{inverted_residual_forward.3} parent=11 // pred_check
        %p332 = pneg %p203
      $region38: #{inverted_residual_forward.3} parent=11 // pred_check_branch
        %334 = sbr.rel (%p332) target = $region40
      $region39: #{inverted_residual_forward.3} parent=11 // pred_region
        _
      $region40: #{inverted_residual_forward.3} parent=11 // pred_fallthru
        _
      // Predicated region
      $region41: #{inverted_residual_forward.3} parent=11 // pred_check
        %p335 = pneg %p224
      $region42: #{inverted_residual_forward.3} parent=11 // pred_check_branch
        %337 = sbr.rel (%p335) target = $region44
      $region43: #{inverted_residual_forward.3} parent=11 // pred_region
        _
      $region44: #{inverted_residual_forward.3} parent=11 // pred_fallthru
        _
      // Predicated region
      $region45: #{inverted_residual_forward.3} parent=11 // pred_check
        %p338 = pneg %p245
      $region46: #{inverted_residual_forward.3} parent=11 // pred_check_branch
        %340 = sbr.rel (%p338) target = $region48
      $region47: #{inverted_residual_forward.3} parent=11 // pred_region
        _
      $region48: #{inverted_residual_forward.3} parent=11 // pred_fallthru
        _
    $region12: #{inverted_residual_forward.3} parent=5 // pred_fallthru
      _
    %p341 = scmp.lt.s32.totalorder %s18, 4
    // Predicated region
    $region49: #{inverted_residual_forward.3} parent=5 // pred_check
      %p342 = pneg %p341
    $region50: #{inverted_residual_forward.3} parent=5 // pred_check_branch
      %344 = sbr.rel (%p342) target = $region52
    $region51: #{inverted_residual_forward.3} parent=5 // pred_region
      // Predicated region
      $region53: #{inverted_residual_forward.3} parent=51 // pred_check
        %p345 = pneg %p50
      $region54: #{inverted_residual_forward.3} parent=51 // pred_check_branch
        %347 = sbr.rel (%p345) target = $region56
      $region55: #{inverted_residual_forward.3} parent=51 // pred_region
        %p348 = scmp.lt.s32.totalorder %s25, 1
        %s349 = scalar_select %p348, %s25, 1
        %s350 = smul.addr %s349, 32
        %s351 = smul.addr %s350, 8
        %s352 = scalar_lea.vmem %s0, %s351
      $region56: #{inverted_residual_forward.3} parent=51 // pred_fallthru
        _
    $region52: #{inverted_residual_forward.3} parent=5 // pred_fallthru
      _
    %p353 = scmp.le.s32.totalorder 1, %s18
    %p354 = scmp.lt.s32.totalorder %s18, 5
    %p355 = pnand %p353, %p354
    %p356 = pneg %p355
    // Predicated region
    $region57: #{inverted_residual_forward.3} parent=5 // pred_check
      _
    $region58: #{inverted_residual_forward.3} parent=5 // pred_check_branch
      %358 = sbr.rel (%p355) target = $region60
    $region59: #{inverted_residual_forward.3} parent=5 // pred_region
      %s359 = ssub.s32 %s18, 1
      %p360 = scmp.lt.s32.totalorder %s27, 1
      %s361 = scalar_select %p360, %s27, 1
      %s362 = smul.addr %s361, 32
      %s363 = smul.addr %s362, 8
      %s364 = scalar_lea.vmem %s0, %s363
      %p365 = pneg %p56
      %p366 = pneg %p53
      %p367 = pneg %p77
      %p368 = pneg %p74
      %p369 = pneg %p98
      %p370 = pneg %p95
      %p371 = pneg %p119
      %p372 = pneg %p116
      %p373 = pneg %p140
      %p374 = pneg %p137
      %p375 = pneg %p161
      %p376 = pneg %p158
      %p377 = pneg %p182
      %p378 = pneg %p179
      %p379 = pneg %p203
      %p380 = pneg %p200
      %p381 = pneg %p224
      %p382 = pneg %p221
      %p383 = pneg %p245
      %p384 = pneg %p242
      %p385 = pneg %p273
      %p386 = pneg %p270
      %s387 = smul.u32 8, %s28
      %p388 = scmp.lt.s32.totalorder %s27, 1
      %s389 = scalar_select %p388, %s27, 1
      %p390 = scmp.lt.s32.totalorder %s387, 15
      %s391 = scalar_select %p390, %s387, 15
      %s392 = smul.addr %s391, 2
      %s393 = smul.addr %s389, 32
      %s394 = sadd.s32 %s392, %s393
      %s395 = smul.addr %s394, 4
      %s396 = scalar_lea.vmem %s10, %s395
      %p397 = pneg %p299
      %p398 = pneg %p296
      %p399 = scmp.lt.s32.totalorder %s27, 1
      %s400 = scalar_select %p399, %s27, 1
      %s401 = scalar_lea.vmem %s11, %s400
      %p402 = scmp.lt.s32.totalorder %s27, 1
      %s403 = scalar_select %p402, %s27, 1
      %s404 = smul.addr %s403, 32
      %s405 = smul.addr %s404, 8
      %s406 = scalar_lea.vmem %s0, %s405
      %s407 = smul.u32 8, %s28
      %p408 = scmp.lt.s32.totalorder %s27, 1
      %s409 = scalar_select %p408, %s27, 1
      %p410 = scmp.lt.s32.totalorder %s407, 15
      %s411 = scalar_select %p410, %s407, 15
      %s412 = smul.addr %s411, 2
      %s413 = smul.addr %s409, 32
      %s414 = sadd.s32 %s412, %s413
      %s415 = smul.addr %s414, 4
      %s416 = scalar_lea.vmem %s10, %s415
      %s417 = smul.u32 8, %s28
      %p418 = scmp.lt.s32.totalorder %s27, 1
      %s419 = scalar_select %p418, %s27, 1
      %s420 = scalar_lea.vmem %s11, %s419
      %p422 = scmp.eq.s32.totalorder %s28, 0
      // Predicated region
      $region61: #{inverted_residual_forward.3} parent=59 // pred_check
        %p423 = pneg %p422
      $region62: #{inverted_residual_forward.3} parent=59 // pred_check_branch
        %425 = sbr.rel (%p423) target = $region64
      $region63: #{inverted_residual_forward.3} parent=59 // pred_region
        %v426 = vld [vmem:[%s406] sm:$0xff]
        %v427 = vld [vmem:[%s406 + $0x8] sm:$0xff]
        %v428 = vld [vmem:[%s406 + $0x10] sm:$0xff]
        %v429 = vld [vmem:[%s406 + $0x18] sm:$0xff]
        %v430 = vld [vmem:[%s406 + $0x20] sm:$0xff]
        %v431 = vld [vmem:[%s406 + $0x28] sm:$0xff]
        %v432 = vld [vmem:[%s406 + $0x30] sm:$0xff]
        %v433 = vld [vmem:[%s406 + $0x38] sm:$0xff]
        %v434 = vld [vmem:[%s406 + $0x40] sm:$0xff]
        %v435 = vld [vmem:[%s406 + $0x48] sm:$0xff]
        %v436 = vld [vmem:[%s406 + $0x50] sm:$0xff]
        %v437 = vld [vmem:[%s406 + $0x58] sm:$0xff]
        %v438 = vld [vmem:[%s406 + $0x60] sm:$0xff]
        %v439 = vld [vmem:[%s406 + $0x68] sm:$0xff]
        %v440 = vld [vmem:[%s406 + $0x70] sm:$0xff]
        %v441 = vld [vmem:[%s406 + $0x78] sm:$0xff]
        %v442 = vld [vmem:[%s406 + $0x80] sm:$0xff]
        %v443 = vld [vmem:[%s406 + $0x88] sm:$0xff]
        %v444 = vld [vmem:[%s406 + $0x90] sm:$0xff]
        %v445 = vld [vmem:[%s406 + $0x98] sm:$0xff]
        %v446 = vld [vmem:[%s406 + $0xa0] sm:$0xff]
        %v447 = vld [vmem:[%s406 + $0xa8] sm:$0xff]
        %v448 = vld [vmem:[%s406 + $0xb0] sm:$0xff]
        %v449 = vld [vmem:[%s406 + $0xb8] sm:$0xff]
        %v450 = vld [vmem:[%s406 + $0xc0] sm:$0xff]
        %v451 = vld [vmem:[%s406 + $0xc8] sm:$0xff]
        %v452 = vld [vmem:[%s406 + $0xd0] sm:$0xff]
        %v453 = vld [vmem:[%s406 + $0xd8] sm:$0xff]
        %v454 = vld [vmem:[%s406 + $0xe0] sm:$0xff]
        %v455 = vld [vmem:[%s406 + $0xe8] sm:$0xff]
        %v456 = vld [vmem:[%s406 + $0xf0] sm:$0xff]
        %v457 = vld [vmem:[%s406 + $0xf8] sm:$0xff]
        %v458 = vld [vmem:[%s1] sm:$0x1]
        %460 = vset.pattern.permute.xlu0 0
        %461 = vperm.xlu0 %460, %v426
        %v462 = vpop.permute.xlu0 %461
        %465 = vset.pattern.permute.xlu0 0
        %466 = vperm.xlu0 %465, %v427
        %v467 = vpop.permute.xlu0 %466
        %470 = vset.pattern.permute.xlu0 0
        %471 = vperm.xlu0 %470, %v428
        %v472 = vpop.permute.xlu0 %471
        %475 = vset.pattern.permute.xlu0 0
        %476 = vperm.xlu0 %475, %v429
        %v477 = vpop.permute.xlu0 %476
        %480 = vset.pattern.permute.xlu0 0
        %481 = vperm.xlu0 %480, %v430
        %v482 = vpop.permute.xlu0 %481
        %485 = vset.pattern.permute.xlu0 0
        %486 = vperm.xlu0 %485, %v431
        %v487 = vpop.permute.xlu0 %486
        %490 = vset.pattern.permute.xlu0 0
        %491 = vperm.xlu0 %490, %v432
        %v492 = vpop.permute.xlu0 %491
        %495 = vset.pattern.permute.xlu0 0
        %496 = vperm.xlu0 %495, %v433
        %v497 = vpop.permute.xlu0 %496
        %500 = vset.pattern.permute.xlu0 0
        %501 = vperm.xlu0 %500, %v434
        %v502 = vpop.permute.xlu0 %501
        %505 = vset.pattern.permute.xlu0 0
        %506 = vperm.xlu0 %505, %v435
        %v507 = vpop.permute.xlu0 %506
        %510 = vset.pattern.permute.xlu0 0
        %511 = vperm.xlu0 %510, %v436
        %v512 = vpop.permute.xlu0 %511
        %515 = vset.pattern.permute.xlu0 0
        %516 = vperm.xlu0 %515, %v437
        %v517 = vpop.permute.xlu0 %516
        %520 = vset.pattern.permute.xlu0 0
        %521 = vperm.xlu0 %520, %v438
        %v522 = vpop.permute.xlu0 %521
        %525 = vset.pattern.permute.xlu0 0
        %526 = vperm.xlu0 %525, %v439
        %v527 = vpop.permute.xlu0 %526
        %530 = vset.pattern.permute.xlu0 0
        %531 = vperm.xlu0 %530, %v440
        %v532 = vpop.permute.xlu0 %531
        %535 = vset.pattern.permute.xlu0 0
        %536 = vperm.xlu0 %535, %v441
        %v537 = vpop.permute.xlu0 %536
        %540 = vset.pattern.permute.xlu0 0
        %541 = vperm.xlu0 %540, %v442
        %v542 = vpop.permute.xlu0 %541
        %545 = vset.pattern.permute.xlu0 0
        %546 = vperm.xlu0 %545, %v443
        %v547 = vpop.permute.xlu0 %546
        %550 = vset.pattern.permute.xlu0 0
        %551 = vperm.xlu0 %550, %v444
        %v552 = vpop.permute.xlu0 %551
        %555 = vset.pattern.permute.xlu0 0
        %556 = vperm.xlu0 %555, %v445
        %v557 = vpop.permute.xlu0 %556
        %560 = vset.pattern.permute.xlu0 0
        %561 = vperm.xlu0 %560, %v446
        %v562 = vpop.permute.xlu0 %561
        %565 = vset.pattern.permute.xlu0 0
        %566 = vperm.xlu0 %565, %v447
        %v567 = vpop.permute.xlu0 %566
        %570 = vset.pattern.permute.xlu0 0
        %571 = vperm.xlu0 %570, %v448
        %v572 = vpop.permute.xlu0 %571
        %575 = vset.pattern.permute.xlu0 0
        %576 = vperm.xlu0 %575, %v449
        %v577 = vpop.permute.xlu0 %576
        %580 = vset.pattern.permute.xlu0 0
        %581 = vperm.xlu0 %580, %v450
        %v582 = vpop.permute.xlu0 %581
        %585 = vset.pattern.permute.xlu0 0
        %586 = vperm.xlu0 %585, %v451
        %v587 = vpop.permute.xlu0 %586
        %590 = vset.pattern.permute.xlu0 0
        %591 = vperm.xlu0 %590, %v452
        %v592 = vpop.permute.xlu0 %591
        %595 = vset.pattern.permute.xlu0 0
        %596 = vperm.xlu0 %595, %v453
        %v597 = vpop.permute.xlu0 %596
        %600 = vset.pattern.permute.xlu0 0
        %601 = vperm.xlu0 %600, %v454
        %v602 = vpop.permute.xlu0 %601
        %605 = vset.pattern.permute.xlu0 0
        %606 = vperm.xlu0 %605, %v455
        %v607 = vpop.permute.xlu0 %606
        %610 = vset.pattern.permute.xlu0 0
        %611 = vperm.xlu0 %610, %v456
        %v612 = vpop.permute.xlu0 %611
        %615 = vset.pattern.permute.xlu0 0
        %616 = vperm.xlu0 %615, %v457
        %v617 = vpop.permute.xlu0 %616
        %v619 = vlaneseq
        %v620 = vshrl.u32 %v619, 7
        %v621 = vsub.s32 0, %v620
        %v622 = vrot.slane %v458, %v621
        %v623 = vmul.f32 %v462, %v622
        %v624 = vmul.f32 %v467, %v622
        %v625 = vmul.f32 %v472, %v622
        %v626 = vmul.f32 %v477, %v622
        %v627 = vmul.f32 %v482, %v622
        %v628 = vmul.f32 %v487, %v622
        %v629 = vmul.f32 %v492, %v622
        %v630 = vmul.f32 %v497, %v622
        %v631 = vmul.f32 %v502, %v622
        %v632 = vmul.f32 %v507, %v622
        %v633 = vmul.f32 %v512, %v622
        %v634 = vmul.f32 %v517, %v622
        %v635 = vmul.f32 %v522, %v622
        %v636 = vmul.f32 %v527, %v622
        %v637 = vmul.f32 %v532, %v622
        %v638 = vmul.f32 %v537, %v622
        %v639 = vmul.f32 %v542, %v622
        %v640 = vmul.f32 %v547, %v622
        %v641 = vmul.f32 %v552, %v622
        %v642 = vmul.f32 %v557, %v622
        %v643 = vmul.f32 %v562, %v622
        %v644 = vmul.f32 %v567, %v622
        %v645 = vmul.f32 %v572, %v622
        %v646 = vmul.f32 %v577, %v622
        %v647 = vmul.f32 %v582, %v622
        %v648 = vmul.f32 %v587, %v622
        %v649 = vmul.f32 %v592, %v622
        %v650 = vmul.f32 %v597, %v622
        %v651 = vmul.f32 %v602, %v622
        %v652 = vmul.f32 %v607, %v622
        %v653 = vmul.f32 %v612, %v622
        %v654 = vmul.f32 %v617, %v622
        %v655 = vadd.f32 %v623, 0.0
        %v656 = vadd.f32 %v624, 0.0
        %v657 = vadd.f32 %v625, 0.0
        %v658 = vadd.f32 %v626, 0.0
        %v659 = vadd.f32 %v627, 0.0
        %v660 = vadd.f32 %v628, 0.0
        %v661 = vadd.f32 %v629, 0.0
        %v662 = vadd.f32 %v630, 0.0
        %v663 = vadd.f32 %v631, 0.0
        %v664 = vadd.f32 %v632, 0.0
        %v665 = vadd.f32 %v633, 0.0
        %v666 = vadd.f32 %v634, 0.0
        %v667 = vadd.f32 %v635, 0.0
        %v668 = vadd.f32 %v636, 0.0
        %v669 = vadd.f32 %v637, 0.0
        %v670 = vadd.f32 %v638, 0.0
        %v671 = vadd.f32 %v639, 0.0
        %v672 = vadd.f32 %v640, 0.0
        %v673 = vadd.f32 %v641, 0.0
        %v674 = vadd.f32 %v642, 0.0
        %v675 = vadd.f32 %v643, 0.0
        %v676 = vadd.f32 %v644, 0.0
        %v677 = vadd.f32 %v645, 0.0
        %v678 = vadd.f32 %v646, 0.0
        %v679 = vadd.f32 %v647, 0.0
        %v680 = vadd.f32 %v648, 0.0
        %v681 = vadd.f32 %v649, 0.0
        %v682 = vadd.f32 %v650, 0.0
        %v683 = vadd.f32 %v651, 0.0
        %v684 = vadd.f32 %v652, 0.0
        %v685 = vadd.f32 %v653, 0.0
        %v686 = vadd.f32 %v654, 0.0
        %v687 = vld [vmem:[%s1 + $0x1] sm:$0x1]
        %688 = vset.pattern.permute.xlu0 1
        %689 = vperm.xlu0 %688, %v426
        %v690 = vpop.permute.xlu0 %689
        %692 = vset.pattern.permute.xlu0 1
        %693 = vperm.xlu0 %692, %v427
        %v694 = vpop.permute.xlu0 %693
        %696 = vset.pattern.permute.xlu0 1
        %697 = vperm.xlu0 %696, %v428
        %v698 = vpop.permute.xlu0 %697
        %700 = vset.pattern.permute.xlu0 1
        %701 = vperm.xlu0 %700, %v429
        %v702 = vpop.permute.xlu0 %701
        %704 = vset.pattern.permute.xlu0 1
        %705 = vperm.xlu0 %704, %v430
        %v706 = vpop.permute.xlu0 %705
        %708 = vset.pattern.permute.xlu0 1
        %709 = vperm.xlu0 %708, %v431
        %v710 = vpop.permute.xlu0 %709
        %712 = vset.pattern.permute.xlu0 1
        %713 = vperm.xlu0 %712, %v432
        %v714 = vpop.permute.xlu0 %713
        %716 = vset.pattern.permute.xlu0 1
        %717 = vperm.xlu0 %716, %v433
        %v718 = vpop.permute.xlu0 %717
        %720 = vset.pattern.permute.xlu0 1
        %721 = vperm.xlu0 %720, %v434
        %v722 = vpop.permute.xlu0 %721
        %724 = vset.pattern.permute.xlu0 1
        %725 = vperm.xlu0 %724, %v435
        %v726 = vpop.permute.xlu0 %725
        %728 = vset.pattern.permute.xlu0 1
        %729 = vperm.xlu0 %728, %v436
        %v730 = vpop.permute.xlu0 %729
        %732 = vset.pattern.permute.xlu0 1
        %733 = vperm.xlu0 %732, %v437
        %v734 = vpop.permute.xlu0 %733
        %736 = vset.pattern.permute.xlu0 1
        %737 = vperm.xlu0 %736, %v438
        %v738 = vpop.permute.xlu0 %737
        %740 = vset.pattern.permute.xlu0 1
        %741 = vperm.xlu0 %740, %v439
        %v742 = vpop.permute.xlu0 %741
        %744 = vset.pattern.permute.xlu0 1
        %745 = vperm.xlu0 %744, %v440
        %v746 = vpop.permute.xlu0 %745
        %748 = vset.pattern.permute.xlu0 1
        %749 = vperm.xlu0 %748, %v441
        %v750 = vpop.permute.xlu0 %749
        %752 = vset.pattern.permute.xlu0 1
        %753 = vperm.xlu0 %752, %v442
        %v754 = vpop.permute.xlu0 %753
        %756 = vset.pattern.permute.xlu0 1
        %757 = vperm.xlu0 %756, %v443
        %v758 = vpop.permute.xlu0 %757
        %760 = vset.pattern.permute.xlu0 1
        %761 = vperm.xlu0 %760, %v444
        %v762 = vpop.permute.xlu0 %761
        %764 = vset.pattern.permute.xlu0 1
        %765 = vperm.xlu0 %764, %v445
        %v766 = vpop.permute.xlu0 %765
        %768 = vset.pattern.permute.xlu0 1
        %769 = vperm.xlu0 %768, %v446
        %v770 = vpop.permute.xlu0 %769
        %772 = vset.pattern.permute.xlu0 1
        %773 = vperm.xlu0 %772, %v447
        %v774 = vpop.permute.xlu0 %773
        %776 = vset.pattern.permute.xlu0 1
        %777 = vperm.xlu0 %776, %v448
        %v778 = vpop.permute.xlu0 %777
        %780 = vset.pattern.permute.xlu0 1
        %781 = vperm.xlu0 %780, %v449
        %v782 = vpop.permute.xlu0 %781
        %784 = vset.pattern.permute.xlu0 1
        %785 = vperm.xlu0 %784, %v450
        %v786 = vpop.permute.xlu0 %785
        %788 = vset.pattern.permute.xlu0 1
        %789 = vperm.xlu0 %788, %v451
        %v790 = vpop.permute.xlu0 %789
        %792 = vset.pattern.permute.xlu0 1
        %793 = vperm.xlu0 %792, %v452
        %v794 = vpop.permute.xlu0 %793
        %796 = vset.pattern.permute.xlu0 1
        %797 = vperm.xlu0 %796, %v453
        %v798 = vpop.permute.xlu0 %797
        %800 = vset.pattern.permute.xlu0 1
        %801 = vperm.xlu0 %800, %v454
        %v802 = vpop.permute.xlu0 %801
        %804 = vset.pattern.permute.xlu0 1
        %805 = vperm.xlu0 %804, %v455
        %v806 = vpop.permute.xlu0 %805
        %808 = vset.pattern.permute.xlu0 1
        %809 = vperm.xlu0 %808, %v456
        %v810 = vpop.permute.xlu0 %809
        %812 = vset.pattern.permute.xlu0 1
        %813 = vperm.xlu0 %812, %v457
        %v814 = vpop.permute.xlu0 %813
        %v816 = vlaneseq
        %v817 = vshrl.u32 %v816, 7
        %v818 = vsub.s32 0, %v817
        %v819 = vrot.slane %v687, %v818
        %v820 = vmul.f32 %v690, %v819
        %v821 = vmul.f32 %v694, %v819
        %v822 = vmul.f32 %v698, %v819
        %v823 = vmul.f32 %v702, %v819
        %v824 = vmul.f32 %v706, %v819
        %v825 = vmul.f32 %v710, %v819
        %v826 = vmul.f32 %v714, %v819
        %v827 = vmul.f32 %v718, %v819
        %v828 = vmul.f32 %v722, %v819
        %v829 = vmul.f32 %v726, %v819
        %v830 = vmul.f32 %v730, %v819
        %v831 = vmul.f32 %v734, %v819
        %v832 = vmul.f32 %v738, %v819
        %v833 = vmul.f32 %v742, %v819
        %v834 = vmul.f32 %v746, %v819
        %v835 = vmul.f32 %v750, %v819
        %v836 = vmul.f32 %v754, %v819
        %v837 = vmul.f32 %v758, %v819
        %v838 = vmul.f32 %v762, %v819
        %v839 = vmul.f32 %v766, %v819
        %v840 = vmul.f32 %v770, %v819
        %v841 = vmul.f32 %v774, %v819
        %v842 = vmul.f32 %v778, %v819
        %v843 = vmul.f32 %v782, %v819
        %v844 = vmul.f32 %v786, %v819
        %v845 = vmul.f32 %v790, %v819
        %v846 = vmul.f32 %v794, %v819
        %v847 = vmul.f32 %v798, %v819
        %v848 = vmul.f32 %v802, %v819
        %v849 = vmul.f32 %v806, %v819
        %v850 = vmul.f32 %v810, %v819
        %v851 = vmul.f32 %v814, %v819
        %v852 = vadd.f32 %v655, %v820
        %v853 = vadd.f32 %v656, %v821
        %v854 = vadd.f32 %v657, %v822
        %v855 = vadd.f32 %v658, %v823
        %v856 = vadd.f32 %v659, %v824
        %v857 = vadd.f32 %v660, %v825
        %v858 = vadd.f32 %v661, %v826
        %v859 = vadd.f32 %v662, %v827
        %v860 = vadd.f32 %v663, %v828
        %v861 = vadd.f32 %v664, %v829
        %v862 = vadd.f32 %v665, %v830
        %v863 = vadd.f32 %v666, %v831
        %v864 = vadd.f32 %v667, %v832
        %v865 = vadd.f32 %v668, %v833
        %v866 = vadd.f32 %v669, %v834
        %v867 = vadd.f32 %v670, %v835
        %v868 = vadd.f32 %v671, %v836
        %v869 = vadd.f32 %v672, %v837
        %v870 = vadd.f32 %v673, %v838
        %v871 = vadd.f32 %v674, %v839
        %v872 = vadd.f32 %v675, %v840
        %v873 = vadd.f32 %v676, %v841
        %v874 = vadd.f32 %v677, %v842
        %v875 = vadd.f32 %v678, %v843
        %v876 = vadd.f32 %v679, %v844
        %v877 = vadd.f32 %v680, %v845
        %v878 = vadd.f32 %v681, %v846
        %v879 = vadd.f32 %v682, %v847
        %v880 = vadd.f32 %v683, %v848
        %v881 = vadd.f32 %v684, %v849
        %v882 = vadd.f32 %v685, %v850
        %v883 = vadd.f32 %v686, %v851
        %v884 = vld [vmem:[%s1 + $0x2] sm:$0x1]
        %885 = vset.pattern.permute.xlu0 2
        %886 = vperm.xlu0 %885, %v426
        %v887 = vpop.permute.xlu0 %886
        %889 = vset.pattern.permute.xlu0 2
        %890 = vperm.xlu0 %889, %v427
        %v891 = vpop.permute.xlu0 %890
        %893 = vset.pattern.permute.xlu0 2
        %894 = vperm.xlu0 %893, %v428
        %v895 = vpop.permute.xlu0 %894
        %897 = vset.pattern.permute.xlu0 2
        %898 = vperm.xlu0 %897, %v429
        %v899 = vpop.permute.xlu0 %898
        %901 = vset.pattern.permute.xlu0 2
        %902 = vperm.xlu0 %901, %v430
        %v903 = vpop.permute.xlu0 %902
        %905 = vset.pattern.permute.xlu0 2
        %906 = vperm.xlu0 %905, %v431
        %v907 = vpop.permute.xlu0 %906
        %909 = vset.pattern.permute.xlu0 2
        %910 = vperm.xlu0 %909, %v432
        %v911 = vpop.permute.xlu0 %910
        %913 = vset.pattern.permute.xlu0 2
        %914 = vperm.xlu0 %913, %v433
        %v915 = vpop.permute.xlu0 %914
        %917 = vset.pattern.permute.xlu0 2
        %918 = vperm.xlu0 %917, %v434
        %v919 = vpop.permute.xlu0 %918
        %921 = vset.pattern.permute.xlu0 2
        %922 = vperm.xlu0 %921, %v435
        %v923 = vpop.permute.xlu0 %922
        %925 = vset.pattern.permute.xlu0 2
        %926 = vperm.xlu0 %925, %v436
        %v927 = vpop.permute.xlu0 %926
        %929 = vset.pattern.permute.xlu0 2
        %930 = vperm.xlu0 %929, %v437
        %v931 = vpop.permute.xlu0 %930
        %933 = vset.pattern.permute.xlu0 2
        %934 = vperm.xlu0 %933, %v438
        %v935 = vpop.permute.xlu0 %934
        %937 = vset.pattern.permute.xlu0 2
        %938 = vperm.xlu0 %937, %v439
        %v939 = vpop.permute.xlu0 %938
        %941 = vset.pattern.permute.xlu0 2
        %942 = vperm.xlu0 %941, %v440
        %v943 = vpop.permute.xlu0 %942
        %945 = vset.pattern.permute.xlu0 2
        %946 = vperm.xlu0 %945, %v441
        %v947 = vpop.permute.xlu0 %946
        %949 = vset.pattern.permute.xlu0 2
        %950 = vperm.xlu0 %949, %v442
        %v951 = vpop.permute.xlu0 %950
        %953 = vset.pattern.permute.xlu0 2
        %954 = vperm.xlu0 %953, %v443
        %v955 = vpop.permute.xlu0 %954
        %957 = vset.pattern.permute.xlu0 2
        %958 = vperm.xlu0 %957, %v444
        %v959 = vpop.permute.xlu0 %958
        %961 = vset.pattern.permute.xlu0 2
        %962 = vperm.xlu0 %961, %v445
        %v963 = vpop.permute.xlu0 %962
        %965 = vset.pattern.permute.xlu0 2
        %966 = vperm.xlu0 %965, %v446
        %v967 = vpop.permute.xlu0 %966
        %969 = vset.pattern.permute.xlu0 2
        %970 = vperm.xlu0 %969, %v447
        %v971 = vpop.permute.xlu0 %970
        %973 = vset.pattern.permute.xlu0 2
        %974 = vperm.xlu0 %973, %v448
        %v975 = vpop.permute.xlu0 %974
        %977 = vset.pattern.permute.xlu0 2
        %978 = vperm.xlu0 %977, %v449
        %v979 = vpop.permute.xlu0 %978
        %981 = vset.pattern.permute.xlu0 2
        %982 = vperm.xlu0 %981, %v450
        %v983 = vpop.permute.xlu0 %982
        %985 = vset.pattern.permute.xlu0 2
        %986 = vperm.xlu0 %985, %v451
        %v987 = vpop.permute.xlu0 %986
        %989 = vset.pattern.permute.xlu0 2
        %990 = vperm.xlu0 %989, %v452
        %v991 = vpop.permute.xlu0 %990
        %993 = vset.pattern.permute.xlu0 2
        %994 = vperm.xlu0 %993, %v453
        %v995 = vpop.permute.xlu0 %994
        %997 = vset.pattern.permute.xlu0 2
        %998 = vperm.xlu0 %997, %v454
        %v999 = vpop.permute.xlu0 %998
        %1001 = vset.pattern.permute.xlu0 2
        %1002 = vperm.xlu0 %1001, %v455
        %v1003 = vpop.permute.xlu0 %1002
        %1005 = vset.pattern.permute.xlu0 2
        %1006 = vperm.xlu0 %1005, %v456
        %v1007 = vpop.permute.xlu0 %1006
        %1009 = vset.pattern.permute.xlu0 2
        %1010 = vperm.xlu0 %1009, %v457
        %v1011 = vpop.permute.xlu0 %1010
        %v1013 = vlaneseq
        %v1014 = vshrl.u32 %v1013, 7
        %v1015 = vsub.s32 0, %v1014
        %v1016 = vrot.slane %v884, %v1015
        %v1017 = vmul.f32 %v887, %v1016
        %v1018 = vmul.f32 %v891, %v1016
        %v1019 = vmul.f32 %v895, %v1016
        %v1020 = vmul.f32 %v899, %v1016
        %v1021 = vmul.f32 %v903, %v1016
        %v1022 = vmul.f32 %v907, %v1016
        %v1023 = vmul.f32 %v911, %v1016
        %v1024 = vmul.f32 %v915, %v1016
        %v1025 = vmul.f32 %v919, %v1016
        %v1026 = vmul.f32 %v923, %v1016
        %v1027 = vmul.f32 %v927, %v1016
        %v1028 = vmul.f32 %v931, %v1016
        %v1029 = vmul.f32 %v935, %v1016
        %v1030 = vmul.f32 %v939, %v1016
        %v1031 = vmul.f32 %v943, %v1016
        %v1032 = vmul.f32 %v947, %v1016
        %v1033 = vmul.f32 %v951, %v1016
        %v1034 = vmul.f32 %v955, %v1016
        %v1035 = vmul.f32 %v959, %v1016
        %v1036 = vmul.f32 %v963, %v1016
        %v1037 = vmul.f32 %v967, %v1016
        %v1038 = vmul.f32 %v971, %v1016
        %v1039 = vmul.f32 %v975, %v1016
        %v1040 = vmul.f32 %v979, %v1016
        %v1041 = vmul.f32 %v983, %v1016
        %v1042 = vmul.f32 %v987, %v1016
        %v1043 = vmul.f32 %v991, %v1016
        %v1044 = vmul.f32 %v995, %v1016
        %v1045 = vmul.f32 %v999, %v1016
        %v1046 = vmul.f32 %v1003, %v1016
        %v1047 = vmul.f32 %v1007, %v1016
        %v1048 = vmul.f32 %v1011, %v1016
        %v1049 = vadd.f32 %v852, %v1017
        %v1050 = vadd.f32 %v853, %v1018
        %v1051 = vadd.f32 %v854, %v1019
        %v1052 = vadd.f32 %v855, %v1020
        %v1053 = vadd.f32 %v856, %v1021
        %v1054 = vadd.f32 %v857, %v1022
        %v1055 = vadd.f32 %v858, %v1023
        %v1056 = vadd.f32 %v859, %v1024
        %v1057 = vadd.f32 %v860, %v1025
        %v1058 = vadd.f32 %v861, %v1026
        %v1059 = vadd.f32 %v862, %v1027
        %v1060 = vadd.f32 %v863, %v1028
        %v1061 = vadd.f32 %v864, %v1029
        %v1062 = vadd.f32 %v865, %v1030
        %v1063 = vadd.f32 %v866, %v1031
        %v1064 = vadd.f32 %v867, %v1032
        %v1065 = vadd.f32 %v868, %v1033
        %v1066 = vadd.f32 %v869, %v1034
        %v1067 = vadd.f32 %v870, %v1035
        %v1068 = vadd.f32 %v871, %v1036
        %v1069 = vadd.f32 %v872, %v1037
        %v1070 = vadd.f32 %v873, %v1038
        %v1071 = vadd.f32 %v874, %v1039
        %v1072 = vadd.f32 %v875, %v1040
        %v1073 = vadd.f32 %v876, %v1041
        %v1074 = vadd.f32 %v877, %v1042
        %v1075 = vadd.f32 %v878, %v1043
        %v1076 = vadd.f32 %v879, %v1044
        %v1077 = vadd.f32 %v880, %v1045
        %v1078 = vadd.f32 %v881, %v1046
        %v1079 = vadd.f32 %v882, %v1047
        %v1080 = vadd.f32 %v883, %v1048
        %v1081 = vld [vmem:[%s1 + $0x3] sm:$0x1]
        %1082 = vset.pattern.permute.xlu0 3
        %1083 = vperm.xlu0 %1082, %v426
        %v1084 = vpop.permute.xlu0 %1083
        %1086 = vset.pattern.permute.xlu0 3
        %1087 = vperm.xlu0 %1086, %v427
        %v1088 = vpop.permute.xlu0 %1087
        %1090 = vset.pattern.permute.xlu0 3
        %1091 = vperm.xlu0 %1090, %v428
        %v1092 = vpop.permute.xlu0 %1091
        %1094 = vset.pattern.permute.xlu0 3
        %1095 = vperm.xlu0 %1094, %v429
        %v1096 = vpop.permute.xlu0 %1095
        %1098 = vset.pattern.permute.xlu0 3
        %1099 = vperm.xlu0 %1098, %v430
        %v1100 = vpop.permute.xlu0 %1099
        %1102 = vset.pattern.permute.xlu0 3
        %1103 = vperm.xlu0 %1102, %v431
        %v1104 = vpop.permute.xlu0 %1103
        %1106 = vset.pattern.permute.xlu0 3
        %1107 = vperm.xlu0 %1106, %v432
        %v1108 = vpop.permute.xlu0 %1107
        %1110 = vset.pattern.permute.xlu0 3
        %1111 = vperm.xlu0 %1110, %v433
        %v1112 = vpop.permute.xlu0 %1111
        %1114 = vset.pattern.permute.xlu0 3
        %1115 = vperm.xlu0 %1114, %v434
        %v1116 = vpop.permute.xlu0 %1115
        %1118 = vset.pattern.permute.xlu0 3
        %1119 = vperm.xlu0 %1118, %v435
        %v1120 = vpop.permute.xlu0 %1119
        %1122 = vset.pattern.permute.xlu0 3
        %1123 = vperm.xlu0 %1122, %v436
        %v1124 = vpop.permute.xlu0 %1123
        %1126 = vset.pattern.permute.xlu0 3
        %1127 = vperm.xlu0 %1126, %v437
        %v1128 = vpop.permute.xlu0 %1127
        %1130 = vset.pattern.permute.xlu0 3
        %1131 = vperm.xlu0 %1130, %v438
        %v1132 = vpop.permute.xlu0 %1131
        %1134 = vset.pattern.permute.xlu0 3
        %1135 = vperm.xlu0 %1134, %v439
        %v1136 = vpop.permute.xlu0 %1135
        %1138 = vset.pattern.permute.xlu0 3
        %1139 = vperm.xlu0 %1138, %v440
        %v1140 = vpop.permute.xlu0 %1139
        %1142 = vset.pattern.permute.xlu0 3
        %1143 = vperm.xlu0 %1142, %v441
        %v1144 = vpop.permute.xlu0 %1143
        %1146 = vset.pattern.permute.xlu0 3
        %1147 = vperm.xlu0 %1146, %v442
        %v1148 = vpop.permute.xlu0 %1147
        %1150 = vset.pattern.permute.xlu0 3
        %1151 = vperm.xlu0 %1150, %v443
        %v1152 = vpop.permute.xlu0 %1151
        %1154 = vset.pattern.permute.xlu0 3
        %1155 = vperm.xlu0 %1154, %v444
        %v1156 = vpop.permute.xlu0 %1155
        %1158 = vset.pattern.permute.xlu0 3
        %1159 = vperm.xlu0 %1158, %v445
        %v1160 = vpop.permute.xlu0 %1159
        %1162 = vset.pattern.permute.xlu0 3
        %1163 = vperm.xlu0 %1162, %v446
        %v1164 = vpop.permute.xlu0 %1163
        %1166 = vset.pattern.permute.xlu0 3
        %1167 = vperm.xlu0 %1166, %v447
        %v1168 = vpop.permute.xlu0 %1167
        %1170 = vset.pattern.permute.xlu0 3
        %1171 = vperm.xlu0 %1170, %v448
        %v1172 = vpop.permute.xlu0 %1171
        %1174 = vset.pattern.permute.xlu0 3
        %1175 = vperm.xlu0 %1174, %v449
        %v1176 = vpop.permute.xlu0 %1175
        %1178 = vset.pattern.permute.xlu0 3
        %1179 = vperm.xlu0 %1178, %v450
        %v1180 = vpop.permute.xlu0 %1179
        %1182 = vset.pattern.permute.xlu0 3
        %1183 = vperm.xlu0 %1182, %v451
        %v1184 = vpop.permute.xlu0 %1183
        %1186 = vset.pattern.permute.xlu0 3
        %1187 = vperm.xlu0 %1186, %v452
        %v1188 = vpop.permute.xlu0 %1187
        %1190 = vset.pattern.permute.xlu0 3
        %1191 = vperm.xlu0 %1190, %v453
        %v1192 = vpop.permute.xlu0 %1191
        %1194 = vset.pattern.permute.xlu0 3
        %1195 = vperm.xlu0 %1194, %v454
        %v1196 = vpop.permute.xlu0 %1195
        %1198 = vset.pattern.permute.xlu0 3
        %1199 = vperm.xlu0 %1198, %v455
        %v1200 = vpop.permute.xlu0 %1199
        %1202 = vset.pattern.permute.xlu0 3
        %1203 = vperm.xlu0 %1202, %v456
        %v1204 = vpop.permute.xlu0 %1203
        %1206 = vset.pattern.permute.xlu0 3
        %1207 = vperm.xlu0 %1206, %v457
        %v1208 = vpop.permute.xlu0 %1207
        %v1210 = vlaneseq
        %v1211 = vshrl.u32 %v1210, 7
        %v1212 = vsub.s32 0, %v1211
        %v1213 = vrot.slane %v1081, %v1212
        %v1214 = vmul.f32 %v1084, %v1213
        %v1215 = vmul.f32 %v1088, %v1213
        %v1216 = vmul.f32 %v1092, %v1213
        %v1217 = vmul.f32 %v1096, %v1213
        %v1218 = vmul.f32 %v1100, %v1213
        %v1219 = vmul.f32 %v1104, %v1213
        %v1220 = vmul.f32 %v1108, %v1213
        %v1221 = vmul.f32 %v1112, %v1213
        %v1222 = vmul.f32 %v1116, %v1213
        %v1223 = vmul.f32 %v1120, %v1213
        %v1224 = vmul.f32 %v1124, %v1213
        %v1225 = vmul.f32 %v1128, %v1213
        %v1226 = vmul.f32 %v1132, %v1213
        %v1227 = vmul.f32 %v1136, %v1213
        %v1228 = vmul.f32 %v1140, %v1213
        %v1229 = vmul.f32 %v1144, %v1213
        %v1230 = vmul.f32 %v1148, %v1213
        %v1231 = vmul.f32 %v1152, %v1213
        %v1232 = vmul.f32 %v1156, %v1213
        %v1233 = vmul.f32 %v1160, %v1213
        %v1234 = vmul.f32 %v1164, %v1213
        %v1235 = vmul.f32 %v1168, %v1213
        %v1236 = vmul.f32 %v1172, %v1213
        %v1237 = vmul.f32 %v1176, %v1213
        %v1238 = vmul.f32 %v1180, %v1213
        %v1239 = vmul.f32 %v1184, %v1213
        %v1240 = vmul.f32 %v1188, %v1213
        %v1241 = vmul.f32 %v1192, %v1213
        %v1242 = vmul.f32 %v1196, %v1213
        %v1243 = vmul.f32 %v1200, %v1213
        %v1244 = vmul.f32 %v1204, %v1213
        %v1245 = vmul.f32 %v1208, %v1213
        %v1246 = vadd.f32 %v1049, %v1214
        %v1247 = vadd.f32 %v1050, %v1215
        %v1248 = vadd.f32 %v1051, %v1216
        %v1249 = vadd.f32 %v1052, %v1217
        %v1250 = vadd.f32 %v1053, %v1218
        %v1251 = vadd.f32 %v1054, %v1219
        %v1252 = vadd.f32 %v1055, %v1220
        %v1253 = vadd.f32 %v1056, %v1221
        %v1254 = vadd.f32 %v1057, %v1222
        %v1255 = vadd.f32 %v1058, %v1223
        %v1256 = vadd.f32 %v1059, %v1224
        %v1257 = vadd.f32 %v1060, %v1225
        %v1258 = vadd.f32 %v1061, %v1226
        %v1259 = vadd.f32 %v1062, %v1227
        %v1260 = vadd.f32 %v1063, %v1228
        %v1261 = vadd.f32 %v1064, %v1229
        %v1262 = vadd.f32 %v1065, %v1230
        %v1263 = vadd.f32 %v1066, %v1231
        %v1264 = vadd.f32 %v1067, %v1232
        %v1265 = vadd.f32 %v1068, %v1233
        %v1266 = vadd.f32 %v1069, %v1234
        %v1267 = vadd.f32 %v1070, %v1235
        %v1268 = vadd.f32 %v1071, %v1236
        %v1269 = vadd.f32 %v1072, %v1237
        %v1270 = vadd.f32 %v1073, %v1238
        %v1271 = vadd.f32 %v1074, %v1239
        %v1272 = vadd.f32 %v1075, %v1240
        %v1273 = vadd.f32 %v1076, %v1241
        %v1274 = vadd.f32 %v1077, %v1242
        %v1275 = vadd.f32 %v1078, %v1243
        %v1276 = vadd.f32 %v1079, %v1244
        %v1277 = vadd.f32 %v1080, %v1245
        %v1278 = vld [vmem:[%s1 + $0x4] sm:$0x1]
        %1279 = vset.pattern.permute.xlu0 4
        %1280 = vperm.xlu0 %1279, %v426
        %v1281 = vpop.permute.xlu0 %1280
        %1283 = vset.pattern.permute.xlu0 4
        %1284 = vperm.xlu0 %1283, %v427
        %v1285 = vpop.permute.xlu0 %1284
        %1287 = vset.pattern.permute.xlu0 4
        %1288 = vperm.xlu0 %1287, %v428
        %v1289 = vpop.permute.xlu0 %1288
        %1291 = vset.pattern.permute.xlu0 4
        %1292 = vperm.xlu0 %1291, %v429
        %v1293 = vpop.permute.xlu0 %1292
        %1295 = vset.pattern.permute.xlu0 4
        %1296 = vperm.xlu0 %1295, %v430
        %v1297 = vpop.permute.xlu0 %1296
        %1299 = vset.pattern.permute.xlu0 4
        %1300 = vperm.xlu0 %1299, %v431
        %v1301 = vpop.permute.xlu0 %1300
        %1303 = vset.pattern.permute.xlu0 4
        %1304 = vperm.xlu0 %1303, %v432
        %v1305 = vpop.permute.xlu0 %1304
        %1307 = vset.pattern.permute.xlu0 4
        %1308 = vperm.xlu0 %1307, %v433
        %v1309 = vpop.permute.xlu0 %1308
        %1311 = vset.pattern.permute.xlu0 4
        %1312 = vperm.xlu0 %1311, %v434
        %v1313 = vpop.permute.xlu0 %1312
        %1315 = vset.pattern.permute.xlu0 4
        %1316 = vperm.xlu0 %1315, %v435
        %v1317 = vpop.permute.xlu0 %1316
        %1319 = vset.pattern.permute.xlu0 4
        %1320 = vperm.xlu0 %1319, %v436
        %v1321 = vpop.permute.xlu0 %1320
        %1323 = vset.pattern.permute.xlu0 4
        %1324 = vperm.xlu0 %1323, %v437
        %v1325 = vpop.permute.xlu0 %1324
        %1327 = vset.pattern.permute.xlu0 4
        %1328 = vperm.xlu0 %1327, %v438
        %v1329 = vpop.permute.xlu0 %1328
        %1331 = vset.pattern.permute.xlu0 4
        %1332 = vperm.xlu0 %1331, %v439
        %v1333 = vpop.permute.xlu0 %1332
        %1335 = vset.pattern.permute.xlu0 4
        %1336 = vperm.xlu0 %1335, %v440
        %v1337 = vpop.permute.xlu0 %1336
        %1339 = vset.pattern.permute.xlu0 4
        %1340 = vperm.xlu0 %1339, %v441
        %v1341 = vpop.permute.xlu0 %1340
        %1343 = vset.pattern.permute.xlu0 4
        %1344 = vperm.xlu0 %1343, %v442
        %v1345 = vpop.permute.xlu0 %1344
        %1347 = vset.pattern.permute.xlu0 4
        %1348 = vperm.xlu0 %1347, %v443
        %v1349 = vpop.permute.xlu0 %1348
        %1351 = vset.pattern.permute.xlu0 4
        %1352 = vperm.xlu0 %1351, %v444
        %v1353 = vpop.permute.xlu0 %1352
        %1355 = vset.pattern.permute.xlu0 4
        %1356 = vperm.xlu0 %1355, %v445
        %v1357 = vpop.permute.xlu0 %1356
        %1359 = vset.pattern.permute.xlu0 4
        %1360 = vperm.xlu0 %1359, %v446
        %v1361 = vpop.permute.xlu0 %1360
        %1363 = vset.pattern.permute.xlu0 4
        %1364 = vperm.xlu0 %1363, %v447
        %v1365 = vpop.permute.xlu0 %1364
        %1367 = vset.pattern.permute.xlu0 4
        %1368 = vperm.xlu0 %1367, %v448
        %v1369 = vpop.permute.xlu0 %1368
        %1371 = vset.pattern.permute.xlu0 4
        %1372 = vperm.xlu0 %1371, %v449
        %v1373 = vpop.permute.xlu0 %1372
        %1375 = vset.pattern.permute.xlu0 4
        %1376 = vperm.xlu0 %1375, %v450
        %v1377 = vpop.permute.xlu0 %1376
        %1379 = vset.pattern.permute.xlu0 4
        %1380 = vperm.xlu0 %1379, %v451
        %v1381 = vpop.permute.xlu0 %1380
        %1383 = vset.pattern.permute.xlu0 4
        %1384 = vperm.xlu0 %1383, %v452
        %v1385 = vpop.permute.xlu0 %1384
        %1387 = vset.pattern.permute.xlu0 4
        %1388 = vperm.xlu0 %1387, %v453
        %v1389 = vpop.permute.xlu0 %1388
        %1391 = vset.pattern.permute.xlu0 4
        %1392 = vperm.xlu0 %1391, %v454
        %v1393 = vpop.permute.xlu0 %1392
        %1395 = vset.pattern.permute.xlu0 4
        %1396 = vperm.xlu0 %1395, %v455
        %v1397 = vpop.permute.xlu0 %1396
        %1399 = vset.pattern.permute.xlu0 4
        %1400 = vperm.xlu0 %1399, %v456
        %v1401 = vpop.permute.xlu0 %1400
        %1403 = vset.pattern.permute.xlu0 4
        %1404 = vperm.xlu0 %1403, %v457
        %v1405 = vpop.permute.xlu0 %1404
        %v1407 = vlaneseq
        %v1408 = vshrl.u32 %v1407, 7
        %v1409 = vsub.s32 0, %v1408
        %v1410 = vrot.slane %v1278, %v1409
        %v1411 = vmul.f32 %v1281, %v1410
        %v1412 = vmul.f32 %v1285, %v1410
        %v1413 = vmul.f32 %v1289, %v1410
        %v1414 = vmul.f32 %v1293, %v1410
        %v1415 = vmul.f32 %v1297, %v1410
        %v1416 = vmul.f32 %v1301, %v1410
        %v1417 = vmul.f32 %v1305, %v1410
        %v1418 = vmul.f32 %v1309, %v1410
        %v1419 = vmul.f32 %v1313, %v1410
        %v1420 = vmul.f32 %v1317, %v1410
        %v1421 = vmul.f32 %v1321, %v1410
        %v1422 = vmul.f32 %v1325, %v1410
        %v1423 = vmul.f32 %v1329, %v1410
        %v1424 = vmul.f32 %v1333, %v1410
        %v1425 = vmul.f32 %v1337, %v1410
        %v1426 = vmul.f32 %v1341, %v1410
        %v1427 = vmul.f32 %v1345, %v1410
        %v1428 = vmul.f32 %v1349, %v1410
        %v1429 = vmul.f32 %v1353, %v1410
        %v1430 = vmul.f32 %v1357, %v1410
        %v1431 = vmul.f32 %v1361, %v1410
        %v1432 = vmul.f32 %v1365, %v1410
        %v1433 = vmul.f32 %v1369, %v1410
        %v1434 = vmul.f32 %v1373, %v1410
        %v1435 = vmul.f32 %v1377, %v1410
        %v1436 = vmul.f32 %v1381, %v1410
        %v1437 = vmul.f32 %v1385, %v1410
        %v1438 = vmul.f32 %v1389, %v1410
        %v1439 = vmul.f32 %v1393, %v1410
        %v1440 = vmul.f32 %v1397, %v1410
        %v1441 = vmul.f32 %v1401, %v1410
        %v1442 = vmul.f32 %v1405, %v1410
        %v1443 = vadd.f32 %v1246, %v1411
        %v1444 = vadd.f32 %v1247, %v1412
        %v1445 = vadd.f32 %v1248, %v1413
        %v1446 = vadd.f32 %v1249, %v1414
        %v1447 = vadd.f32 %v1250, %v1415
        %v1448 = vadd.f32 %v1251, %v1416
        %v1449 = vadd.f32 %v1252, %v1417
        %v1450 = vadd.f32 %v1253, %v1418
        %v1451 = vadd.f32 %v1254, %v1419
        %v1452 = vadd.f32 %v1255, %v1420
        %v1453 = vadd.f32 %v1256, %v1421
        %v1454 = vadd.f32 %v1257, %v1422
        %v1455 = vadd.f32 %v1258, %v1423
        %v1456 = vadd.f32 %v1259, %v1424
        %v1457 = vadd.f32 %v1260, %v1425
        %v1458 = vadd.f32 %v1261, %v1426
        %v1459 = vadd.f32 %v1262, %v1427
        %v1460 = vadd.f32 %v1263, %v1428
        %v1461 = vadd.f32 %v1264, %v1429
        %v1462 = vadd.f32 %v1265, %v1430
        %v1463 = vadd.f32 %v1266, %v1431
        %v1464 = vadd.f32 %v1267, %v1432
        %v1465 = vadd.f32 %v1268, %v1433
        %v1466 = vadd.f32 %v1269, %v1434
        %v1467 = vadd.f32 %v1270, %v1435
        %v1468 = vadd.f32 %v1271, %v1436
        %v1469 = vadd.f32 %v1272, %v1437
        %v1470 = vadd.f32 %v1273, %v1438
        %v1471 = vadd.f32 %v1274, %v1439
        %v1472 = vadd.f32 %v1275, %v1440
        %v1473 = vadd.f32 %v1276, %v1441
        %v1474 = vadd.f32 %v1277, %v1442
        %v1475 = vld [vmem:[%s1 + $0x5] sm:$0x1]
        %1476 = vset.pattern.permute.xlu0 5
        %1477 = vperm.xlu0 %1476, %v426
        %v1478 = vpop.permute.xlu0 %1477
        %1480 = vset.pattern.permute.xlu0 5
        %1481 = vperm.xlu0 %1480, %v427
        %v1482 = vpop.permute.xlu0 %1481
        %1484 = vset.pattern.permute.xlu0 5
        %1485 = vperm.xlu0 %1484, %v428
        %v1486 = vpop.permute.xlu0 %1485
        %1488 = vset.pattern.permute.xlu0 5
        %1489 = vperm.xlu0 %1488, %v429
        %v1490 = vpop.permute.xlu0 %1489
        %1492 = vset.pattern.permute.xlu0 5
        %1493 = vperm.xlu0 %1492, %v430
        %v1494 = vpop.permute.xlu0 %1493
        %1496 = vset.pattern.permute.xlu0 5
        %1497 = vperm.xlu0 %1496, %v431
        %v1498 = vpop.permute.xlu0 %1497
        %1500 = vset.pattern.permute.xlu0 5
        %1501 = vperm.xlu0 %1500, %v432
        %v1502 = vpop.permute.xlu0 %1501
        %1504 = vset.pattern.permute.xlu0 5
        %1505 = vperm.xlu0 %1504, %v433
        %v1506 = vpop.permute.xlu0 %1505
        %1508 = vset.pattern.permute.xlu0 5
        %1509 = vperm.xlu0 %1508, %v434
        %v1510 = vpop.permute.xlu0 %1509
        %1512 = vset.pattern.permute.xlu0 5
        %1513 = vperm.xlu0 %1512, %v435
        %v1514 = vpop.permute.xlu0 %1513
        %1516 = vset.pattern.permute.xlu0 5
        %1517 = vperm.xlu0 %1516, %v436
        %v1518 = vpop.permute.xlu0 %1517
        %1520 = vset.pattern.permute.xlu0 5
        %1521 = vperm.xlu0 %1520, %v437
        %v1522 = vpop.permute.xlu0 %1521
        %1524 = vset.pattern.permute.xlu0 5
        %1525 = vperm.xlu0 %1524, %v438
        %v1526 = vpop.permute.xlu0 %1525
        %1528 = vset.pattern.permute.xlu0 5
        %1529 = vperm.xlu0 %1528, %v439
        %v1530 = vpop.permute.xlu0 %1529
        %1532 = vset.pattern.permute.xlu0 5
        %1533 = vperm.xlu0 %1532, %v440
        %v1534 = vpop.permute.xlu0 %1533
        %1536 = vset.pattern.permute.xlu0 5
        %1537 = vperm.xlu0 %1536, %v441
        %v1538 = vpop.permute.xlu0 %1537
        %1540 = vset.pattern.permute.xlu0 5
        %1541 = vperm.xlu0 %1540, %v442
        %v1542 = vpop.permute.xlu0 %1541
        %1544 = vset.pattern.permute.xlu0 5
        %1545 = vperm.xlu0 %1544, %v443
        %v1546 = vpop.permute.xlu0 %1545
        %1548 = vset.pattern.permute.xlu0 5
        %1549 = vperm.xlu0 %1548, %v444
        %v1550 = vpop.permute.xlu0 %1549
        %1552 = vset.pattern.permute.xlu0 5
        %1553 = vperm.xlu0 %1552, %v445
        %v1554 = vpop.permute.xlu0 %1553
        %1556 = vset.pattern.permute.xlu0 5
        %1557 = vperm.xlu0 %1556, %v446
        %v1558 = vpop.permute.xlu0 %1557
        %1560 = vset.pattern.permute.xlu0 5
        %1561 = vperm.xlu0 %1560, %v447
        %v1562 = vpop.permute.xlu0 %1561
        %1564 = vset.pattern.permute.xlu0 5
        %1565 = vperm.xlu0 %1564, %v448
        %v1566 = vpop.permute.xlu0 %1565
        %1568 = vset.pattern.permute.xlu0 5
        %1569 = vperm.xlu0 %1568, %v449
        %v1570 = vpop.permute.xlu0 %1569
        %1572 = vset.pattern.permute.xlu0 5
        %1573 = vperm.xlu0 %1572, %v450
        %v1574 = vpop.permute.xlu0 %1573
        %1576 = vset.pattern.permute.xlu0 5
        %1577 = vperm.xlu0 %1576, %v451
        %v1578 = vpop.permute.xlu0 %1577
        %1580 = vset.pattern.permute.xlu0 5
        %1581 = vperm.xlu0 %1580, %v452
        %v1582 = vpop.permute.xlu0 %1581
        %1584 = vset.pattern.permute.xlu0 5
        %1585 = vperm.xlu0 %1584, %v453
        %v1586 = vpop.permute.xlu0 %1585
        %1588 = vset.pattern.permute.xlu0 5
        %1589 = vperm.xlu0 %1588, %v454
        %v1590 = vpop.permute.xlu0 %1589
        %1592 = vset.pattern.permute.xlu0 5
        %1593 = vperm.xlu0 %1592, %v455
        %v1594 = vpop.permute.xlu0 %1593
        %1596 = vset.pattern.permute.xlu0 5
        %1597 = vperm.xlu0 %1596, %v456
        %v1598 = vpop.permute.xlu0 %1597
        %1600 = vset.pattern.permute.xlu0 5
        %1601 = vperm.xlu0 %1600, %v457
        %v1602 = vpop.permute.xlu0 %1601
        %v1604 = vlaneseq
        %v1605 = vshrl.u32 %v1604, 7
        %v1606 = vsub.s32 0, %v1605
        %v1607 = vrot.slane %v1475, %v1606
        %v1608 = vmul.f32 %v1478, %v1607
        %v1609 = vmul.f32 %v1482, %v1607
        %v1610 = vmul.f32 %v1486, %v1607
        %v1611 = vmul.f32 %v1490, %v1607
        %v1612 = vmul.f32 %v1494, %v1607
        %v1613 = vmul.f32 %v1498, %v1607
        %v1614 = vmul.f32 %v1502, %v1607
        %v1615 = vmul.f32 %v1506, %v1607
        %v1616 = vmul.f32 %v1510, %v1607
        %v1617 = vmul.f32 %v1514, %v1607
        %v1618 = vmul.f32 %v1518, %v1607
        %v1619 = vmul.f32 %v1522, %v1607
        %v1620 = vmul.f32 %v1526, %v1607
        %v1621 = vmul.f32 %v1530, %v1607
        %v1622 = vmul.f32 %v1534, %v1607
        %v1623 = vmul.f32 %v1538, %v1607
        %v1624 = vmul.f32 %v1542, %v1607
        %v1625 = vmul.f32 %v1546, %v1607
        %v1626 = vmul.f32 %v1550, %v1607
        %v1627 = vmul.f32 %v1554, %v1607
        %v1628 = vmul.f32 %v1558, %v1607
        %v1629 = vmul.f32 %v1562, %v1607
        %v1630 = vmul.f32 %v1566, %v1607
        %v1631 = vmul.f32 %v1570, %v1607
        %v1632 = vmul.f32 %v1574, %v1607
        %v1633 = vmul.f32 %v1578, %v1607
        %v1634 = vmul.f32 %v1582, %v1607
        %v1635 = vmul.f32 %v1586, %v1607
        %v1636 = vmul.f32 %v1590, %v1607
        %v1637 = vmul.f32 %v1594, %v1607
        %v1638 = vmul.f32 %v1598, %v1607
        %v1639 = vmul.f32 %v1602, %v1607
        %v1640 = vadd.f32 %v1443, %v1608
        %v1641 = vadd.f32 %v1444, %v1609
        %v1642 = vadd.f32 %v1445, %v1610
        %v1643 = vadd.f32 %v1446, %v1611
        %v1644 = vadd.f32 %v1447, %v1612
        %v1645 = vadd.f32 %v1448, %v1613
        %v1646 = vadd.f32 %v1449, %v1614
        %v1647 = vadd.f32 %v1450, %v1615
        %v1648 = vadd.f32 %v1451, %v1616
        %v1649 = vadd.f32 %v1452, %v1617
        %v1650 = vadd.f32 %v1453, %v1618
        %v1651 = vadd.f32 %v1454, %v1619
        %v1652 = vadd.f32 %v1455, %v1620
        %v1653 = vadd.f32 %v1456, %v1621
        %v1654 = vadd.f32 %v1457, %v1622
        %v1655 = vadd.f32 %v1458, %v1623
        %v1656 = vadd.f32 %v1459, %v1624
        %v1657 = vadd.f32 %v1460, %v1625
        %v1658 = vadd.f32 %v1461, %v1626
        %v1659 = vadd.f32 %v1462, %v1627
        %v1660 = vadd.f32 %v1463, %v1628
        %v1661 = vadd.f32 %v1464, %v1629
        %v1662 = vadd.f32 %v1465, %v1630
        %v1663 = vadd.f32 %v1466, %v1631
        %v1664 = vadd.f32 %v1467, %v1632
        %v1665 = vadd.f32 %v1468, %v1633
        %v1666 = vadd.f32 %v1469, %v1634
        %v1667 = vadd.f32 %v1470, %v1635
        %v1668 = vadd.f32 %v1471, %v1636
        %v1669 = vadd.f32 %v1472, %v1637
        %v1670 = vadd.f32 %v1473, %v1638
        %v1671 = vadd.f32 %v1474, %v1639
        %v1672 = vld [vmem:[%s1 + $0x6] sm:$0x1]
        %1673 = vset.pattern.permute.xlu0 6
        %1674 = vperm.xlu0 %1673, %v426
        %v1675 = vpop.permute.xlu0 %1674
        %1677 = vset.pattern.permute.xlu0 6
        %1678 = vperm.xlu0 %1677, %v427
        %v1679 = vpop.permute.xlu0 %1678
        %1681 = vset.pattern.permute.xlu0 6
        %1682 = vperm.xlu0 %1681, %v428
        %v1683 = vpop.permute.xlu0 %1682
        %1685 = vset.pattern.permute.xlu0 6
        %1686 = vperm.xlu0 %1685, %v429
        %v1687 = vpop.permute.xlu0 %1686
        %1689 = vset.pattern.permute.xlu0 6
        %1690 = vperm.xlu0 %1689, %v430
        %v1691 = vpop.permute.xlu0 %1690
        %1693 = vset.pattern.permute.xlu0 6
        %1694 = vperm.xlu0 %1693, %v431
        %v1695 = vpop.permute.xlu0 %1694
        %1697 = vset.pattern.permute.xlu0 6
        %1698 = vperm.xlu0 %1697, %v432
        %v1699 = vpop.permute.xlu0 %1698
        %1701 = vset.pattern.permute.xlu0 6
        %1702 = vperm.xlu0 %1701, %v433
        %v1703 = vpop.permute.xlu0 %1702
        %1705 = vset.pattern.permute.xlu0 6
        %1706 = vperm.xlu0 %1705, %v434
        %v1707 = vpop.permute.xlu0 %1706
        %1709 = vset.pattern.permute.xlu0 6
        %1710 = vperm.xlu0 %1709, %v435
        %v1711 = vpop.permute.xlu0 %1710
        %1713 = vset.pattern.permute.xlu0 6
        %1714 = vperm.xlu0 %1713, %v436
        %v1715 = vpop.permute.xlu0 %1714
        %1717 = vset.pattern.permute.xlu0 6
        %1718 = vperm.xlu0 %1717, %v437
        %v1719 = vpop.permute.xlu0 %1718
        %1721 = vset.pattern.permute.xlu0 6
        %1722 = vperm.xlu0 %1721, %v438
        %v1723 = vpop.permute.xlu0 %1722
        %1725 = vset.pattern.permute.xlu0 6
        %1726 = vperm.xlu0 %1725, %v439
        %v1727 = vpop.permute.xlu0 %1726
        %1729 = vset.pattern.permute.xlu0 6
        %1730 = vperm.xlu0 %1729, %v440
        %v1731 = vpop.permute.xlu0 %1730
        %1733 = vset.pattern.permute.xlu0 6
        %1734 = vperm.xlu0 %1733, %v441
        %v1735 = vpop.permute.xlu0 %1734
        %1737 = vset.pattern.permute.xlu0 6
        %1738 = vperm.xlu0 %1737, %v442
        %v1739 = vpop.permute.xlu0 %1738
        %1741 = vset.pattern.permute.xlu0 6
        %1742 = vperm.xlu0 %1741, %v443
        %v1743 = vpop.permute.xlu0 %1742
        %1745 = vset.pattern.permute.xlu0 6
        %1746 = vperm.xlu0 %1745, %v444
        %v1747 = vpop.permute.xlu0 %1746
        %1749 = vset.pattern.permute.xlu0 6
        %1750 = vperm.xlu0 %1749, %v445
        %v1751 = vpop.permute.xlu0 %1750
        %1753 = vset.pattern.permute.xlu0 6
        %1754 = vperm.xlu0 %1753, %v446
        %v1755 = vpop.permute.xlu0 %1754
        %1757 = vset.pattern.permute.xlu0 6
        %1758 = vperm.xlu0 %1757, %v447
        %v1759 = vpop.permute.xlu0 %1758
        %1761 = vset.pattern.permute.xlu0 6
        %1762 = vperm.xlu0 %1761, %v448
        %v1763 = vpop.permute.xlu0 %1762
        %1765 = vset.pattern.permute.xlu0 6
        %1766 = vperm.xlu0 %1765, %v449
        %v1767 = vpop.permute.xlu0 %1766
        %1769 = vset.pattern.permute.xlu0 6
        %1770 = vperm.xlu0 %1769, %v450
        %v1771 = vpop.permute.xlu0 %1770
        %1773 = vset.pattern.permute.xlu0 6
        %1774 = vperm.xlu0 %1773, %v451
        %v1775 = vpop.permute.xlu0 %1774
        %1777 = vset.pattern.permute.xlu0 6
        %1778 = vperm.xlu0 %1777, %v452
        %v1779 = vpop.permute.xlu0 %1778
        %1781 = vset.pattern.permute.xlu0 6
        %1782 = vperm.xlu0 %1781, %v453
        %v1783 = vpop.permute.xlu0 %1782
        %1785 = vset.pattern.permute.xlu0 6
        %1786 = vperm.xlu0 %1785, %v454
        %v1787 = vpop.permute.xlu0 %1786
        %1789 = vset.pattern.permute.xlu0 6
        %1790 = vperm.xlu0 %1789, %v455
        %v1791 = vpop.permute.xlu0 %1790
        %1793 = vset.pattern.permute.xlu0 6
        %1794 = vperm.xlu0 %1793, %v456
        %v1795 = vpop.permute.xlu0 %1794
        %1797 = vset.pattern.permute.xlu0 6
        %1798 = vperm.xlu0 %1797, %v457
        %v1799 = vpop.permute.xlu0 %1798
        %v1801 = vlaneseq
        %v1802 = vshrl.u32 %v1801, 7
        %v1803 = vsub.s32 0, %v1802
        %v1804 = vrot.slane %v1672, %v1803
        %v1805 = vmul.f32 %v1675, %v1804
        %v1806 = vmul.f32 %v1679, %v1804
        %v1807 = vmul.f32 %v1683, %v1804
        %v1808 = vmul.f32 %v1687, %v1804
        %v1809 = vmul.f32 %v1691, %v1804
        %v1810 = vmul.f32 %v1695, %v1804
        %v1811 = vmul.f32 %v1699, %v1804
        %v1812 = vmul.f32 %v1703, %v1804
        %v1813 = vmul.f32 %v1707, %v1804
        %v1814 = vmul.f32 %v1711, %v1804
        %v1815 = vmul.f32 %v1715, %v1804
        %v1816 = vmul.f32 %v1719, %v1804
        %v1817 = vmul.f32 %v1723, %v1804
        %v1818 = vmul.f32 %v1727, %v1804
        %v1819 = vmul.f32 %v1731, %v1804
        %v1820 = vmul.f32 %v1735, %v1804
        %v1821 = vmul.f32 %v1739, %v1804
        %v1822 = vmul.f32 %v1743, %v1804
        %v1823 = vmul.f32 %v1747, %v1804
        %v1824 = vmul.f32 %v1751, %v1804
        %v1825 = vmul.f32 %v1755, %v1804
        %v1826 = vmul.f32 %v1759, %v1804
        %v1827 = vmul.f32 %v1763, %v1804
        %v1828 = vmul.f32 %v1767, %v1804
        %v1829 = vmul.f32 %v1771, %v1804
        %v1830 = vmul.f32 %v1775, %v1804
        %v1831 = vmul.f32 %v1779, %v1804
        %v1832 = vmul.f32 %v1783, %v1804
        %v1833 = vmul.f32 %v1787, %v1804
        %v1834 = vmul.f32 %v1791, %v1804
        %v1835 = vmul.f32 %v1795, %v1804
        %v1836 = vmul.f32 %v1799, %v1804
        %v1837 = vadd.f32 %v1640, %v1805
        %v1838 = vadd.f32 %v1641, %v1806
        %v1839 = vadd.f32 %v1642, %v1807
        %v1840 = vadd.f32 %v1643, %v1808
        %v1841 = vadd.f32 %v1644, %v1809
        %v1842 = vadd.f32 %v1645, %v1810
        %v1843 = vadd.f32 %v1646, %v1811
        %v1844 = vadd.f32 %v1647, %v1812
        %v1845 = vadd.f32 %v1648, %v1813
        %v1846 = vadd.f32 %v1649, %v1814
        %v1847 = vadd.f32 %v1650, %v1815
        %v1848 = vadd.f32 %v1651, %v1816
        %v1849 = vadd.f32 %v1652, %v1817
        %v1850 = vadd.f32 %v1653, %v1818
        %v1851 = vadd.f32 %v1654, %v1819
        %v1852 = vadd.f32 %v1655, %v1820
        %v1853 = vadd.f32 %v1656, %v1821
        %v1854 = vadd.f32 %v1657, %v1822
        %v1855 = vadd.f32 %v1658, %v1823
        %v1856 = vadd.f32 %v1659, %v1824
        %v1857 = vadd.f32 %v1660, %v1825
        %v1858 = vadd.f32 %v1661, %v1826
        %v1859 = vadd.f32 %v1662, %v1827
        %v1860 = vadd.f32 %v1663, %v1828
        %v1861 = vadd.f32 %v1664, %v1829
        %v1862 = vadd.f32 %v1665, %v1830
        %v1863 = vadd.f32 %v1666, %v1831
        %v1864 = vadd.f32 %v1667, %v1832
        %v1865 = vadd.f32 %v1668, %v1833
        %v1866 = vadd.f32 %v1669, %v1834
        %v1867 = vadd.f32 %v1670, %v1835
        %v1868 = vadd.f32 %v1671, %v1836
        %v1869 = vld [vmem:[%s1 + $0x7] sm:$0x1]
        %1870 = vset.pattern.permute.xlu0 7
        %1871 = vperm.xlu0 %1870, %v426
        %v1872 = vpop.permute.xlu0 %1871
        %1874 = vset.pattern.permute.xlu0 7
        %1875 = vperm.xlu0 %1874, %v427
        %v1876 = vpop.permute.xlu0 %1875
        %1878 = vset.pattern.permute.xlu0 7
        %1879 = vperm.xlu0 %1878, %v428
        %v1880 = vpop.permute.xlu0 %1879
        %1882 = vset.pattern.permute.xlu0 7
        %1883 = vperm.xlu0 %1882, %v429
        %v1884 = vpop.permute.xlu0 %1883
        %1886 = vset.pattern.permute.xlu0 7
        %1887 = vperm.xlu0 %1886, %v430
        %v1888 = vpop.permute.xlu0 %1887
        %1890 = vset.pattern.permute.xlu0 7
        %1891 = vperm.xlu0 %1890, %v431
        %v1892 = vpop.permute.xlu0 %1891
        %1894 = vset.pattern.permute.xlu0 7
        %1895 = vperm.xlu0 %1894, %v432
        %v1896 = vpop.permute.xlu0 %1895
        %1898 = vset.pattern.permute.xlu0 7
        %1899 = vperm.xlu0 %1898, %v433
        %v1900 = vpop.permute.xlu0 %1899
        %1902 = vset.pattern.permute.xlu0 7
        %1903 = vperm.xlu0 %1902, %v434
        %v1904 = vpop.permute.xlu0 %1903
        %1906 = vset.pattern.permute.xlu0 7
        %1907 = vperm.xlu0 %1906, %v435
        %v1908 = vpop.permute.xlu0 %1907
        %1910 = vset.pattern.permute.xlu0 7
        %1911 = vperm.xlu0 %1910, %v436
        %v1912 = vpop.permute.xlu0 %1911
        %1914 = vset.pattern.permute.xlu0 7
        %1915 = vperm.xlu0 %1914, %v437
        %v1916 = vpop.permute.xlu0 %1915
        %1918 = vset.pattern.permute.xlu0 7
        %1919 = vperm.xlu0 %1918, %v438
        %v1920 = vpop.permute.xlu0 %1919
        %1922 = vset.pattern.permute.xlu0 7
        %1923 = vperm.xlu0 %1922, %v439
        %v1924 = vpop.permute.xlu0 %1923
        %1926 = vset.pattern.permute.xlu0 7
        %1927 = vperm.xlu0 %1926, %v440
        %v1928 = vpop.permute.xlu0 %1927
        %1930 = vset.pattern.permute.xlu0 7
        %1931 = vperm.xlu0 %1930, %v441
        %v1932 = vpop.permute.xlu0 %1931
        %1934 = vset.pattern.permute.xlu0 7
        %1935 = vperm.xlu0 %1934, %v442
        %v1936 = vpop.permute.xlu0 %1935
        %1938 = vset.pattern.permute.xlu0 7
        %1939 = vperm.xlu0 %1938, %v443
        %v1940 = vpop.permute.xlu0 %1939
        %1942 = vset.pattern.permute.xlu0 7
        %1943 = vperm.xlu0 %1942, %v444
        %v1944 = vpop.permute.xlu0 %1943
        %1946 = vset.pattern.permute.xlu0 7
        %1947 = vperm.xlu0 %1946, %v445
        %v1948 = vpop.permute.xlu0 %1947
        %1950 = vset.pattern.permute.xlu0 7
        %1951 = vperm.xlu0 %1950, %v446
        %v1952 = vpop.permute.xlu0 %1951
        %1954 = vset.pattern.permute.xlu0 7
        %1955 = vperm.xlu0 %1954, %v447
        %v1956 = vpop.permute.xlu0 %1955
        %1958 = vset.pattern.permute.xlu0 7
        %1959 = vperm.xlu0 %1958, %v448
        %v1960 = vpop.permute.xlu0 %1959
        %1962 = vset.pattern.permute.xlu0 7
        %1963 = vperm.xlu0 %1962, %v449
        %v1964 = vpop.permute.xlu0 %1963
        %1966 = vset.pattern.permute.xlu0 7
        %1967 = vperm.xlu0 %1966, %v450
        %v1968 = vpop.permute.xlu0 %1967
        %1970 = vset.pattern.permute.xlu0 7
        %1971 = vperm.xlu0 %1970, %v451
        %v1972 = vpop.permute.xlu0 %1971
        %1974 = vset.pattern.permute.xlu0 7
        %1975 = vperm.xlu0 %1974, %v452
        %v1976 = vpop.permute.xlu0 %1975
        %1978 = vset.pattern.permute.xlu0 7
        %1979 = vperm.xlu0 %1978, %v453
        %v1980 = vpop.permute.xlu0 %1979
        %1982 = vset.pattern.permute.xlu0 7
        %1983 = vperm.xlu0 %1982, %v454
        %v1984 = vpop.permute.xlu0 %1983
        %1986 = vset.pattern.permute.xlu0 7
        %1987 = vperm.xlu0 %1986, %v455
        %v1988 = vpop.permute.xlu0 %1987
        %1990 = vset.pattern.permute.xlu0 7
        %1991 = vperm.xlu0 %1990, %v456
        %v1992 = vpop.permute.xlu0 %1991
        %1994 = vset.pattern.permute.xlu0 7
        %1995 = vperm.xlu0 %1994, %v457
        %v1996 = vpop.permute.xlu0 %1995
        %v1998 = vlaneseq
        %v1999 = vshrl.u32 %v1998, 7
        %v2000 = vsub.s32 0, %v1999
        %v2001 = vrot.slane %v1869, %v2000
        %v2002 = vmul.f32 %v1872, %v2001
        %v2003 = vmul.f32 %v1876, %v2001
        %v2004 = vmul.f32 %v1880, %v2001
        %v2005 = vmul.f32 %v1884, %v2001
        %v2006 = vmul.f32 %v1888, %v2001
        %v2007 = vmul.f32 %v1892, %v2001
        %v2008 = vmul.f32 %v1896, %v2001
        %v2009 = vmul.f32 %v1900, %v2001
        %v2010 = vmul.f32 %v1904, %v2001
        %v2011 = vmul.f32 %v1908, %v2001
        %v2012 = vmul.f32 %v1912, %v2001
        %v2013 = vmul.f32 %v1916, %v2001
        %v2014 = vmul.f32 %v1920, %v2001
        %v2015 = vmul.f32 %v1924, %v2001
        %v2016 = vmul.f32 %v1928, %v2001
        %v2017 = vmul.f32 %v1932, %v2001
        %v2018 = vmul.f32 %v1936, %v2001
        %v2019 = vmul.f32 %v1940, %v2001
        %v2020 = vmul.f32 %v1944, %v2001
        %v2021 = vmul.f32 %v1948, %v2001
        %v2022 = vmul.f32 %v1952, %v2001
        %v2023 = vmul.f32 %v1956, %v2001
        %v2024 = vmul.f32 %v1960, %v2001
        %v2025 = vmul.f32 %v1964, %v2001
        %v2026 = vmul.f32 %v1968, %v2001
        %v2027 = vmul.f32 %v1972, %v2001
        %v2028 = vmul.f32 %v1976, %v2001
        %v2029 = vmul.f32 %v1980, %v2001
        %v2030 = vmul.f32 %v1984, %v2001
        %v2031 = vmul.f32 %v1988, %v2001
        %v2032 = vmul.f32 %v1992, %v2001
        %v2033 = vmul.f32 %v1996, %v2001
        %v2034 = vadd.f32 %v1837, %v2002
        %v2035 = vadd.f32 %v1838, %v2003
        %v2036 = vadd.f32 %v1839, %v2004
        %v2037 = vadd.f32 %v1840, %v2005
        %v2038 = vadd.f32 %v1841, %v2006
        %v2039 = vadd.f32 %v1842, %v2007
        %v2040 = vadd.f32 %v1843, %v2008
        %v2041 = vadd.f32 %v1844, %v2009
        %v2042 = vadd.f32 %v1845, %v2010
        %v2043 = vadd.f32 %v1846, %v2011
        %v2044 = vadd.f32 %v1847, %v2012
        %v2045 = vadd.f32 %v1848, %v2013
        %v2046 = vadd.f32 %v1849, %v2014
        %v2047 = vadd.f32 %v1850, %v2015
        %v2048 = vadd.f32 %v1851, %v2016
        %v2049 = vadd.f32 %v1852, %v2017
        %v2050 = vadd.f32 %v1853, %v2018
        %v2051 = vadd.f32 %v1854, %v2019
        %v2052 = vadd.f32 %v1855, %v2020
        %v2053 = vadd.f32 %v1856, %v2021
        %v2054 = vadd.f32 %v1857, %v2022
        %v2055 = vadd.f32 %v1858, %v2023
        %v2056 = vadd.f32 %v1859, %v2024
        %v2057 = vadd.f32 %v1860, %v2025
        %v2058 = vadd.f32 %v1861, %v2026
        %v2059 = vadd.f32 %v1862, %v2027
        %v2060 = vadd.f32 %v1863, %v2028
        %v2061 = vadd.f32 %v1864, %v2029
        %v2062 = vadd.f32 %v1865, %v2030
        %v2063 = vadd.f32 %v1866, %v2031
        %v2064 = vadd.f32 %v1867, %v2032
        %v2065 = vadd.f32 %v1868, %v2033
        %v2066 = vld [vmem:[%s2] sm:$0x1]
        %v2068 = vlaneseq
        %v2069 = vshrl.u32 %v2068, 7
        %v2070 = vsub.s32 0, %v2069
        %v2071 = vrot.slane %v2066, %v2070
        %v2073 = vmul.f32 %v2034, %v2071
        %v2074 = vmul.f32 %v2035, %v2071
        %v2075 = vmul.f32 %v2036, %v2071
        %v2076 = vmul.f32 %v2037, %v2071
        %v2077 = vmul.f32 %v2038, %v2071
        %v2078 = vmul.f32 %v2039, %v2071
        %v2079 = vmul.f32 %v2040, %v2071
        %v2080 = vmul.f32 %v2041, %v2071
        %v2081 = vmul.f32 %v2042, %v2071
        %v2082 = vmul.f32 %v2043, %v2071
        %v2083 = vmul.f32 %v2044, %v2071
        %v2084 = vmul.f32 %v2045, %v2071
        %v2085 = vmul.f32 %v2046, %v2071
        %v2086 = vmul.f32 %v2047, %v2071
        %v2087 = vmul.f32 %v2048, %v2071
        %v2088 = vmul.f32 %v2049, %v2071
        %v2089 = vmul.f32 %v2050, %v2071
        %v2090 = vmul.f32 %v2051, %v2071
        %v2091 = vmul.f32 %v2052, %v2071
        %v2092 = vmul.f32 %v2053, %v2071
        %v2093 = vmul.f32 %v2054, %v2071
        %v2094 = vmul.f32 %v2055, %v2071
        %v2095 = vmul.f32 %v2056, %v2071
        %v2096 = vmul.f32 %v2057, %v2071
        %v2097 = vmul.f32 %v2058, %v2071
        %v2098 = vmul.f32 %v2059, %v2071
        %v2099 = vmul.f32 %v2060, %v2071
        %v2100 = vmul.f32 %v2061, %v2071
        %v2101 = vmul.f32 %v2062, %v2071
        %v2102 = vmul.f32 %v2063, %v2071
        %v2103 = vmul.f32 %v2064, %v2071
        %v2104 = vmul.f32 %v2065, %v2071
        %v2105 = vld [vmem:[%s3] sm:$0x1]
        %v2107 = vlaneseq
        %v2108 = vshrl.u32 %v2107, 7
        %v2109 = vsub.s32 0, %v2108
        %v2110 = vrot.slane %v2105, %v2109
        %v2112 = vadd.f32 %v2073, %v2110
        %v2113 = vadd.f32 %v2074, %v2110
        %v2114 = vadd.f32 %v2075, %v2110
        %v2115 = vadd.f32 %v2076, %v2110
        %v2116 = vadd.f32 %v2077, %v2110
        %v2117 = vadd.f32 %v2078, %v2110
        %v2118 = vadd.f32 %v2079, %v2110
        %v2119 = vadd.f32 %v2080, %v2110
        %v2120 = vadd.f32 %v2081, %v2110
        %v2121 = vadd.f32 %v2082, %v2110
        %v2122 = vadd.f32 %v2083, %v2110
        %v2123 = vadd.f32 %v2084, %v2110
        %v2124 = vadd.f32 %v2085, %v2110
        %v2125 = vadd.f32 %v2086, %v2110
        %v2126 = vadd.f32 %v2087, %v2110
        %v2127 = vadd.f32 %v2088, %v2110
        %v2128 = vadd.f32 %v2089, %v2110
        %v2129 = vadd.f32 %v2090, %v2110
        %v2130 = vadd.f32 %v2091, %v2110
        %v2131 = vadd.f32 %v2092, %v2110
        %v2132 = vadd.f32 %v2093, %v2110
        %v2133 = vadd.f32 %v2094, %v2110
        %v2134 = vadd.f32 %v2095, %v2110
        %v2135 = vadd.f32 %v2096, %v2110
        %v2136 = vadd.f32 %v2097, %v2110
        %v2137 = vadd.f32 %v2098, %v2110
        %v2138 = vadd.f32 %v2099, %v2110
        %v2139 = vadd.f32 %v2100, %v2110
        %v2140 = vadd.f32 %v2101, %v2110
        %v2141 = vadd.f32 %v2102, %v2110
        %v2142 = vadd.f32 %v2103, %v2110
        %v2143 = vadd.f32 %v2104, %v2110
        %v2144 = vmax.f32 %v2112, 0.0
        %v2145 = vmax.f32 %v2113, 0.0
        %v2146 = vmax.f32 %v2114, 0.0
        %v2147 = vmax.f32 %v2115, 0.0
        %v2148 = vmax.f32 %v2116, 0.0
        %v2149 = vmax.f32 %v2117, 0.0
        %v2150 = vmax.f32 %v2118, 0.0
        %v2151 = vmax.f32 %v2119, 0.0
        %v2152 = vmax.f32 %v2120, 0.0
        %v2153 = vmax.f32 %v2121, 0.0
        %v2154 = vmax.f32 %v2122, 0.0
        %v2155 = vmax.f32 %v2123, 0.0
        %v2156 = vmax.f32 %v2124, 0.0
        %v2157 = vmax.f32 %v2125, 0.0
        %v2158 = vmax.f32 %v2126, 0.0
        %v2159 = vmax.f32 %v2127, 0.0
        %v2160 = vmax.f32 %v2128, 0.0
        %v2161 = vmax.f32 %v2129, 0.0
        %v2162 = vmax.f32 %v2130, 0.0
        %v2163 = vmax.f32 %v2131, 0.0
        %v2164 = vmax.f32 %v2132, 0.0
        %v2165 = vmax.f32 %v2133, 0.0
        %v2166 = vmax.f32 %v2134, 0.0
        %v2167 = vmax.f32 %v2135, 0.0
        %v2168 = vmax.f32 %v2136, 0.0
        %v2169 = vmax.f32 %v2137, 0.0
        %v2170 = vmax.f32 %v2138, 0.0
        %v2171 = vmax.f32 %v2139, 0.0
        %v2172 = vmax.f32 %v2140, 0.0
        %v2173 = vmax.f32 %v2141, 0.0
        %v2174 = vmax.f32 %v2142, 0.0
        %v2175 = vmax.f32 %v2143, 0.0
        %vm2176 = vcmask 195584
        %2177 = vst.msk [vmem:[#allocation2] sm:$0xff] %vm2176, 0.0
        %2178 = vst.msk [vmem:[#allocation2 + $0x8] sm:$0xff] %vm2176, 0.0
        %2179 = vst.msk [vmem:[#allocation2 + $0x10] sm:$0xff] %vm2176, 0.0
        %2180 = vst.msk [vmem:[#allocation2 + $0x18] sm:$0xff] %vm2176, 0.0
        %2181 = vst.msk [vmem:[#allocation2 + $0x20] sm:$0xff] %vm2176, 0.0
        %2182 = vst.msk [vmem:[#allocation2 + $0x28] sm:$0xff] %vm2176, 0.0
        %2183 = vst.msk [vmem:[#allocation2 + $0x30] sm:$0xff] %vm2176, 0.0
        %2184 = vst.msk [vmem:[#allocation2 + $0x38] sm:$0xff] %vm2176, 0.0
        %2185 = vst.msk [vmem:[#allocation2 + $0x40] sm:$0xff] %vm2176, 0.0
        %2186 = vst.msk [vmem:[#allocation2 + $0x48] sm:$0xff] %vm2176, 0.0
        %2187 = vst.msk [vmem:[#allocation2 + $0x50] sm:$0xff] %vm2176, 0.0
        %2188 = vst.msk [vmem:[#allocation2 + $0x58] sm:$0xff] %vm2176, 0.0
        %2189 = vst.msk [vmem:[#allocation2 + $0x60] sm:$0xff] %vm2176, 0.0
        %2190 = vst.msk [vmem:[#allocation2 + $0x68] sm:$0xff] %vm2176, 0.0
        %2191 = vst.msk [vmem:[#allocation2 + $0x70] sm:$0xff] %vm2176, 0.0
        %2192 = vst.msk [vmem:[#allocation2 + $0x78] sm:$0xff] %vm2176, 0.0
        %2193 = vst.msk [vmem:[#allocation2 + $0x80] sm:$0xff] %vm2176, 0.0
        %2194 = vst.msk [vmem:[#allocation2 + $0x88] sm:$0xff] %vm2176, 0.0
        %2195 = vst.msk [vmem:[#allocation2 + $0x90] sm:$0xff] %vm2176, 0.0
        %2196 = vst.msk [vmem:[#allocation2 + $0x98] sm:$0xff] %vm2176, 0.0
        %2197 = vst.msk [vmem:[#allocation2 + $0xa0] sm:$0xff] %vm2176, 0.0
        %2198 = vst.msk [vmem:[#allocation2 + $0xa8] sm:$0xff] %vm2176, 0.0
        %2199 = vst.msk [vmem:[#allocation2 + $0xb0] sm:$0xff] %vm2176, 0.0
        %2200 = vst.msk [vmem:[#allocation2 + $0xb8] sm:$0xff] %vm2176, 0.0
        %2201 = vst.msk [vmem:[#allocation2 + $0xc0] sm:$0xff] %vm2176, 0.0
        %2202 = vst.msk [vmem:[#allocation2 + $0xc8] sm:$0xff] %vm2176, 0.0
        %2203 = vst.msk [vmem:[#allocation2 + $0xd0] sm:$0xff] %vm2176, 0.0
        %2204 = vst.msk [vmem:[#allocation2 + $0xd8] sm:$0xff] %vm2176, 0.0
        %2205 = vst.msk [vmem:[#allocation2 + $0xe0] sm:$0xff] %vm2176, 0.0
        %2206 = vst.msk [vmem:[#allocation2 + $0xe8] sm:$0xff] %vm2176, 0.0
        %2207 = vst.msk [vmem:[#allocation2 + $0xf0] sm:$0xff] %vm2176, 0.0
        %2208 = vst.msk [vmem:[#allocation2 + $0xf8] sm:$0xff] %vm2176, 0.0
        %2209 = vst.msk [vmem:[#allocation2 + $0x100] sm:$0xff] %vm2176, 0.0
        %2210 = vst.msk [vmem:[#allocation2 + $0x108] sm:$0xff] %vm2176, 0.0
        %2211 = vst.msk [vmem:[#allocation2 + $0x110] sm:$0xff] %vm2176, 0.0
        %2212 = vst.msk [vmem:[#allocation2 + $0x118] sm:$0xff] %vm2176, 0.0
        %2213 = vst.msk [vmem:[#allocation2 + $0x120] sm:$0xff] %vm2176, 0.0
        %2214 = vst.msk [vmem:[#allocation2 + $0x128] sm:$0xff] %vm2176, 0.0
        %2215 = vst.msk [vmem:[#allocation2 + $0x130] sm:$0xff] %vm2176, 0.0
        %2216 = vst.msk [vmem:[#allocation2 + $0x138] sm:$0xff] %vm2176, 0.0
        %2217 = vst.msk [vmem:[#allocation2 + $0x140] sm:$0xff] %vm2176, 0.0
        %2218 = vst.msk [vmem:[#allocation2 + $0x148] sm:$0xff] %vm2176, 0.0
        %2219 = vst.msk [vmem:[#allocation2 + $0x150] sm:$0xff] %vm2176, 0.0
        %2220 = vst.msk [vmem:[#allocation2 + $0x158] sm:$0xff] %vm2176, 0.0
        %2221 = vst.msk [vmem:[#allocation2 + $0x160] sm:$0xff] %vm2176, 0.0
        %2222 = vst.msk [vmem:[#allocation2 + $0x168] sm:$0xff] %vm2176, 0.0
        %2223 = vst.msk [vmem:[#allocation2 + $0x170] sm:$0xff] %vm2176, 0.0
        %2224 = vst.msk [vmem:[#allocation2 + $0x178] sm:$0xff] %vm2176, 0.0
        %2225 = vst.msk [vmem:[#allocation2 + $0x180] sm:$0xff] %vm2176, 0.0
        %2226 = vst.msk [vmem:[#allocation2 + $0x188] sm:$0xff] %vm2176, 0.0
        %2227 = vst.msk [vmem:[#allocation2 + $0x190] sm:$0xff] %vm2176, 0.0
        %2228 = vst.msk [vmem:[#allocation2 + $0x198] sm:$0xff] %vm2176, 0.0
        %2229 = vst.msk [vmem:[#allocation2 + $0x1a0] sm:$0xff] %vm2176, 0.0
        %2230 = vst.msk [vmem:[#allocation2 + $0x1a8] sm:$0xff] %vm2176, 0.0
        %s2231 = scalar_lea.vmem [#allocation2], 24
        %2232 = vst.msk [vmem:[%s2231 + $0x1] sm:$0xff] %vm2176, %v2144
        %2233 = vst.msk [vmem:[%s2231 + $0x9] sm:$0xff] %vm2176, %v2145
        %2234 = vst.msk [vmem:[%s2231 + $0x19] sm:$0xff] %vm2176, %v2146
        %2235 = vst.msk [vmem:[%s2231 + $0x21] sm:$0xff] %vm2176, %v2147
        %2236 = vst.msk [vmem:[%s2231 + $0x31] sm:$0xff] %vm2176, %v2148
        %2237 = vst.msk [vmem:[%s2231 + $0x39] sm:$0xff] %vm2176, %v2149
        %2238 = vst.msk [vmem:[%s2231 + $0x49] sm:$0xff] %vm2176, %v2150
        %2239 = vst.msk [vmem:[%s2231 + $0x51] sm:$0xff] %vm2176, %v2151
        %2240 = vst.msk [vmem:[%s2231 + $0x61] sm:$0xff] %vm2176, %v2152
        %2241 = vst.msk [vmem:[%s2231 + $0x69] sm:$0xff] %vm2176, %v2153
        %2242 = vst.msk [vmem:[%s2231 + $0x79] sm:$0xff] %vm2176, %v2154
        %2243 = vst.msk [vmem:[%s2231 + $0x81] sm:$0xff] %vm2176, %v2155
        %2244 = vst.msk [vmem:[%s2231 + $0x91] sm:$0xff] %vm2176, %v2156
        %2245 = vst.msk [vmem:[%s2231 + $0x99] sm:$0xff] %vm2176, %v2157
        %2246 = vst.msk [vmem:[%s2231 + $0xa9] sm:$0xff] %vm2176, %v2158
        %2247 = vst.msk [vmem:[%s2231 + $0xb1] sm:$0xff] %vm2176, %v2159
        %2248 = vst.msk [vmem:[%s2231 + $0xc1] sm:$0xff] %vm2176, %v2160
        %2249 = vst.msk [vmem:[%s2231 + $0xc9] sm:$0xff] %vm2176, %v2161
        %2250 = vst.msk [vmem:[%s2231 + $0xd9] sm:$0xff] %vm2176, %v2162
        %2251 = vst.msk [vmem:[%s2231 + $0xe1] sm:$0xff] %vm2176, %v2163
        %2252 = vst.msk [vmem:[%s2231 + $0xf1] sm:$0xff] %vm2176, %v2164
        %2253 = vst.msk [vmem:[%s2231 + $0xf9] sm:$0xff] %vm2176, %v2165
        %2254 = vst.msk [vmem:[%s2231 + $0x109] sm:$0xff] %vm2176, %v2166
        %2255 = vst.msk [vmem:[%s2231 + $0x111] sm:$0xff] %vm2176, %v2167
        %2256 = vst.msk [vmem:[%s2231 + $0x121] sm:$0xff] %vm2176, %v2168
        %2257 = vst.msk [vmem:[%s2231 + $0x129] sm:$0xff] %vm2176, %v2169
        %2258 = vst.msk [vmem:[%s2231 + $0x139] sm:$0xff] %vm2176, %v2170
        %2259 = vst.msk [vmem:[%s2231 + $0x141] sm:$0xff] %vm2176, %v2171
        %2260 = vst.msk [vmem:[%s2231 + $0x151] sm:$0xff] %vm2176, %v2172
        %2261 = vst.msk [vmem:[%s2231 + $0x159] sm:$0xff] %vm2176, %v2173
        %2262 = vst.msk [vmem:[%s2231 + $0x169] sm:$0xff] %vm2176, %v2174
        %2263 = vst.msk [vmem:[%s2231 + $0x171] sm:$0xff] %vm2176, %v2175
        %vm2264 = vcmask 122880
        %2265 = vst.msk [vmem:[%s420] sm:$0x1] %vm2264, 0.0
      $region64: #{inverted_residual_forward.3} parent=59 // pred_fallthru
        _
      %s2266 = smul.u32 %s28, 8
      %s2267 = smul.u32 %s2266, 24
      %s2268 = scalar_lea.vmem [#allocation2], %s2267
      %v2269 = vld [vmem:[%s2268] sm:$0xff]
      %v2270 = vld [vmem:[%s2268 + $0x8] sm:$0xff]
      %v2271 = vld [vmem:[%s2268 + $0x10] sm:$0xff]
      %v2272 = vld [vmem:[%s2268 + $0x18] sm:$0xff]
      %v2273 = vld [vmem:[%s2268 + $0x20] sm:$0xff]
      %v2274 = vld [vmem:[%s2268 + $0x28] sm:$0xff]
      %v2275 = vld [vmem:[%s2268 + $0x30] sm:$0xff]
      %v2276 = vld [vmem:[%s2268 + $0x38] sm:$0xff]
      %v2277 = vld [vmem:[%s2268 + $0x40] sm:$0xff]
      %v2278 = vld [vmem:[%s2268 + $0x48] sm:$0xff]
      %v2279 = vld [vmem:[%s2268 + $0x50] sm:$0xff]
      %v2280 = vld [vmem:[%s2268 + $0x58] sm:$0xff]
      %v2281 = vld [vmem:[%s2268 + $0x60] sm:$0xff]
      %v2282 = vld [vmem:[%s2268 + $0x68] sm:$0xff]
      %v2283 = vld [vmem:[%s2268 + $0x70] sm:$0xff]
      %v2284 = vld [vmem:[%s2268 + $0x78] sm:$0xff]
      %v2285 = vld [vmem:[%s2268 + $0x80] sm:$0xff]
      %v2286 = vld [vmem:[%s2268 + $0x88] sm:$0xff]
      %v2287 = vld [vmem:[%s2268 + $0x90] sm:$0xff]
      %v2288 = vld [vmem:[%s2268 + $0x98] sm:$0xff]
      %v2289 = vld [vmem:[%s2268 + $0xa0] sm:$0xff]
      %v2290 = vld [vmem:[%s2268 + $0xa8] sm:$0xff]
      %v2291 = vld [vmem:[%s2268 + $0xb0] sm:$0xff]
      %v2292 = vld [vmem:[%s2268 + $0xb8] sm:$0xff]
      %v2293 = vld [vmem:[%s2268 + $0xc0] sm:$0xff]
      %v2294 = vld [vmem:[%s2268 + $0xc8] sm:$0xff]
      %v2295 = vld [vmem:[%s2268 + $0xd0] sm:$0xff]
      %v2296 = vld [vmem:[%s2268 + $0xd8] sm:$0xff]
      %v2297 = vld [vmem:[%s2268 + $0xe0] sm:$0xff]
      %v2298 = vld [vmem:[%s2268 + $0xe8] sm:$0xff]
      %v2299 = vld [vmem:[%s4] sm:$0x1]
      %v2300 = vlaneseq
      %v2301 = vshrl.u32 %v2300, 7
      %v2302 = vsub.s32 0, %v2301
      %v2303 = vrot.slane %v2299, %v2302
      %v2304 = vmul.f32 %v2269, %v2303
      %v2305 = vmul.f32 %v2270, %v2303
      %v2306 = vmul.f32 %v2272, %v2303
      %v2307 = vmul.f32 %v2273, %v2303
      %v2308 = vmul.f32 %v2275, %v2303
      %v2309 = vmul.f32 %v2276, %v2303
      %v2310 = vmul.f32 %v2278, %v2303
      %v2311 = vmul.f32 %v2279, %v2303
      %v2312 = vmul.f32 %v2281, %v2303
      %v2313 = vmul.f32 %v2282, %v2303
      %v2314 = vmul.f32 %v2284, %v2303
      %v2315 = vmul.f32 %v2285, %v2303
      %v2316 = vmul.f32 %v2287, %v2303
      %v2317 = vmul.f32 %v2288, %v2303
      %v2318 = vmul.f32 %v2290, %v2303
      %v2319 = vmul.f32 %v2291, %v2303
      %v2320 = vadd.f32 %v2304, 0.0
      %v2321 = vadd.f32 %v2305, 0.0
      %v2322 = vadd.f32 %v2306, 0.0
      %v2323 = vadd.f32 %v2307, 0.0
      %v2324 = vadd.f32 %v2308, 0.0
      %v2325 = vadd.f32 %v2309, 0.0
      %v2326 = vadd.f32 %v2310, 0.0
      %v2327 = vadd.f32 %v2311, 0.0
      %v2328 = vadd.f32 %v2312, 0.0
      %v2329 = vadd.f32 %v2313, 0.0
      %v2330 = vadd.f32 %v2314, 0.0
      %v2331 = vadd.f32 %v2315, 0.0
      %v2332 = vadd.f32 %v2316, 0.0
      %v2333 = vadd.f32 %v2317, 0.0
      %v2334 = vadd.f32 %v2318, 0.0
      %v2335 = vadd.f32 %v2319, 0.0
      %v2336 = vld [vmem:[%s4 + $0x3] sm:$0x1]
      %v2337 = vlaneseq
      %v2338 = vshrl.u32 %v2337, 7
      %v2339 = vsub.s32 0, %v2338
      %v2340 = vrot.slane %v2336, %v2339
      %v2341 = vmul.f32 %v2272, %v2340
      %v2342 = vmul.f32 %v2273, %v2340
      %v2343 = vmul.f32 %v2275, %v2340
      %v2344 = vmul.f32 %v2276, %v2340
      %v2345 = vmul.f32 %v2278, %v2340
      %v2346 = vmul.f32 %v2279, %v2340
      %v2347 = vmul.f32 %v2281, %v2340
      %v2348 = vmul.f32 %v2282, %v2340
      %v2349 = vmul.f32 %v2284, %v2340
      %v2350 = vmul.f32 %v2285, %v2340
      %v2351 = vmul.f32 %v2287, %v2340
      %v2352 = vmul.f32 %v2288, %v2340
      %v2353 = vmul.f32 %v2290, %v2340
      %v2354 = vmul.f32 %v2291, %v2340
      %v2355 = vmul.f32 %v2293, %v2340
      %v2356 = vmul.f32 %v2294, %v2340
      %v2357 = vadd.f32 %v2320, %v2341
      %v2358 = vadd.f32 %v2321, %v2342
      %v2359 = vadd.f32 %v2322, %v2343
      %v2360 = vadd.f32 %v2323, %v2344
      %v2361 = vadd.f32 %v2324, %v2345
      %v2362 = vadd.f32 %v2325, %v2346
      %v2363 = vadd.f32 %v2326, %v2347
      %v2364 = vadd.f32 %v2327, %v2348
      %v2365 = vadd.f32 %v2328, %v2349
      %v2366 = vadd.f32 %v2329, %v2350
      %v2367 = vadd.f32 %v2330, %v2351
      %v2368 = vadd.f32 %v2331, %v2352
      %v2369 = vadd.f32 %v2332, %v2353
      %v2370 = vadd.f32 %v2333, %v2354
      %v2371 = vadd.f32 %v2334, %v2355
      %v2372 = vadd.f32 %v2335, %v2356
      %v2373 = vld [vmem:[%s4 + $0x6] sm:$0x1]
      %v2374 = vlaneseq
      %v2375 = vshrl.u32 %v2374, 7
      %v2376 = vsub.s32 0, %v2375
      %v2377 = vrot.slane %v2373, %v2376
      %v2378 = vmul.f32 %v2275, %v2377
      %v2379 = vmul.f32 %v2276, %v2377
      %v2380 = vmul.f32 %v2278, %v2377
      %v2381 = vmul.f32 %v2279, %v2377
      %v2382 = vmul.f32 %v2281, %v2377
      %v2383 = vmul.f32 %v2282, %v2377
      %v2384 = vmul.f32 %v2284, %v2377
      %v2385 = vmul.f32 %v2285, %v2377
      %v2386 = vmul.f32 %v2287, %v2377
      %v2387 = vmul.f32 %v2288, %v2377
      %v2388 = vmul.f32 %v2290, %v2377
      %v2389 = vmul.f32 %v2291, %v2377
      %v2390 = vmul.f32 %v2293, %v2377
      %v2391 = vmul.f32 %v2294, %v2377
      %v2392 = vmul.f32 %v2296, %v2377
      %v2393 = vmul.f32 %v2297, %v2377
      %v2394 = vadd.f32 %v2357, %v2378
      %v2395 = vadd.f32 %v2358, %v2379
      %v2396 = vadd.f32 %v2359, %v2380
      %v2397 = vadd.f32 %v2360, %v2381
      %v2398 = vadd.f32 %v2361, %v2382
      %v2399 = vadd.f32 %v2362, %v2383
      %v2400 = vadd.f32 %v2363, %v2384
      %v2401 = vadd.f32 %v2364, %v2385
      %v2402 = vadd.f32 %v2365, %v2386
      %v2403 = vadd.f32 %v2366, %v2387
      %v2404 = vadd.f32 %v2367, %v2388
      %v2405 = vadd.f32 %v2368, %v2389
      %v2406 = vadd.f32 %v2369, %v2390
      %v2407 = vadd.f32 %v2370, %v2391
      %v2408 = vadd.f32 %v2371, %v2392
      %v2409 = vadd.f32 %v2372, %v2393
      %v2410 = vrot.slane %v2269, 1
      %v2411 = vrot.slane %v2272, 1
      %v2412 = vrot.slane %v2275, 1
      %v2413 = vrot.slane %v2278, 1
      %v2414 = vrot.slane %v2281, 1
      %v2415 = vrot.slane %v2284, 1
      %v2416 = vrot.slane %v2287, 1
      %v2417 = vrot.slane %v2290, 1
      %v2418 = vrot.slane %v2293, 1
      %v2419 = vrot.slane %v2296, 1
      %v2420 = vrot.slane %v2270, 1
      %v2421 = vrot.slane %v2273, 1
      %v2422 = vrot.slane %v2276, 1
      %v2423 = vrot.slane %v2279, 1
      %v2424 = vrot.slane %v2282, 1
      %v2425 = vrot.slane %v2285, 1
      %v2426 = vrot.slane %v2288, 1
      %v2427 = vrot.slane %v2291, 1
      %v2428 = vrot.slane %v2294, 1
      %v2429 = vrot.slane %v2297, 1
      %v2430 = vrot.slane %v2271, 1
      %v2431 = vrot.slane %v2274, 1
      %v2432 = vrot.slane %v2277, 1
      %v2433 = vrot.slane %v2280, 1
      %v2434 = vrot.slane %v2283, 1
      %v2435 = vrot.slane %v2286, 1
      %v2436 = vrot.slane %v2289, 1
      %v2437 = vrot.slane %v2292, 1
      %v2438 = vrot.slane %v2295, 1
      %v2439 = vrot.slane %v2298, 1
      %v2440 = vlaneseq
      %v2441 = vshrl.u32 %v2440, 7
      %vm2442 = vcmp.lt.s32.totalorder %v2441, 7
      %v2443 = vsel %vm2442, %v2420, %v2430
      %v2444 = vsel %vm2442, %v2421, %v2431
      %v2445 = vsel %vm2442, %v2422, %v2432
      %v2446 = vsel %vm2442, %v2423, %v2433
      %v2447 = vsel %vm2442, %v2424, %v2434
      %v2448 = vsel %vm2442, %v2425, %v2435
      %v2449 = vsel %vm2442, %v2426, %v2436
      %v2450 = vsel %vm2442, %v2427, %v2437
      %v2451 = vsel %vm2442, %v2428, %v2438
      %v2452 = vsel %vm2442, %v2429, %v2439
      %v2453 = vsel %vm2442, %v2410, %v2420
      %v2454 = vsel %vm2442, %v2411, %v2421
      %v2455 = vsel %vm2442, %v2412, %v2422
      %v2456 = vsel %vm2442, %v2413, %v2423
      %v2457 = vsel %vm2442, %v2414, %v2424
      %v2458 = vsel %vm2442, %v2415, %v2425
      %v2459 = vsel %vm2442, %v2416, %v2426
      %v2460 = vsel %vm2442, %v2417, %v2427
      %v2461 = vsel %vm2442, %v2418, %v2428
      %v2462 = vsel %vm2442, %v2419, %v2429
      %v2463 = vld [vmem:[%s4 + $0x1] sm:$0x1]
      %v2464 = vlaneseq
      %v2465 = vshrl.u32 %v2464, 7
      %v2466 = vsub.s32 0, %v2465
      %v2467 = vrot.slane %v2463, %v2466
      %v2468 = vmul.f32 %v2453, %v2467
      %v2469 = vmul.f32 %v2443, %v2467
      %v2470 = vmul.f32 %v2454, %v2467
      %v2471 = vmul.f32 %v2444, %v2467
      %v2472 = vmul.f32 %v2455, %v2467
      %v2473 = vmul.f32 %v2445, %v2467
      %v2474 = vmul.f32 %v2456, %v2467
      %v2475 = vmul.f32 %v2446, %v2467
      %v2476 = vmul.f32 %v2457, %v2467
      %v2477 = vmul.f32 %v2447, %v2467
      %v2478 = vmul.f32 %v2458, %v2467
      %v2479 = vmul.f32 %v2448, %v2467
      %v2480 = vmul.f32 %v2459, %v2467
      %v2481 = vmul.f32 %v2449, %v2467
      %v2482 = vmul.f32 %v2460, %v2467
      %v2483 = vmul.f32 %v2450, %v2467
      %v2484 = vadd.f32 %v2394, %v2468
      %v2485 = vadd.f32 %v2395, %v2469
      %v2486 = vadd.f32 %v2396, %v2470
      %v2487 = vadd.f32 %v2397, %v2471
      %v2488 = vadd.f32 %v2398, %v2472
      %v2489 = vadd.f32 %v2399, %v2473
      %v2490 = vadd.f32 %v2400, %v2474
      %v2491 = vadd.f32 %v2401, %v2475
      %v2492 = vadd.f32 %v2402, %v2476
      %v2493 = vadd.f32 %v2403, %v2477
      %v2494 = vadd.f32 %v2404, %v2478
      %v2495 = vadd.f32 %v2405, %v2479
      %v2496 = vadd.f32 %v2406, %v2480
      %v2497 = vadd.f32 %v2407, %v2481
      %v2498 = vadd.f32 %v2408, %v2482
      %v2499 = vadd.f32 %v2409, %v2483
      %v2500 = vld [vmem:[%s4 + $0x4] sm:$0x1]
      %v2501 = vlaneseq
      %v2502 = vshrl.u32 %v2501, 7
      %v2503 = vsub.s32 0, %v2502
      %v2504 = vrot.slane %v2500, %v2503
      %v2505 = vmul.f32 %v2454, %v2504
      %v2506 = vmul.f32 %v2444, %v2504
      %v2507 = vmul.f32 %v2455, %v2504
      %v2508 = vmul.f32 %v2445, %v2504
      %v2509 = vmul.f32 %v2456, %v2504
      %v2510 = vmul.f32 %v2446, %v2504
      %v2511 = vmul.f32 %v2457, %v2504
      %v2512 = vmul.f32 %v2447, %v2504
      %v2513 = vmul.f32 %v2458, %v2504
      %v2514 = vmul.f32 %v2448, %v2504
      %v2515 = vmul.f32 %v2459, %v2504
      %v2516 = vmul.f32 %v2449, %v2504
      %v2517 = vmul.f32 %v2460, %v2504
      %v2518 = vmul.f32 %v2450, %v2504
      %v2519 = vmul.f32 %v2461, %v2504
      %v2520 = vmul.f32 %v2451, %v2504
      %v2521 = vadd.f32 %v2484, %v2505
      %v2522 = vadd.f32 %v2485, %v2506
      %v2523 = vadd.f32 %v2486, %v2507
      %v2524 = vadd.f32 %v2487, %v2508
      %v2525 = vadd.f32 %v2488, %v2509
      %v2526 = vadd.f32 %v2489, %v2510
      %v2527 = vadd.f32 %v2490, %v2511
      %v2528 = vadd.f32 %v2491, %v2512
      %v2529 = vadd.f32 %v2492, %v2513
      %v2530 = vadd.f32 %v2493, %v2514
      %v2531 = vadd.f32 %v2494, %v2515
      %v2532 = vadd.f32 %v2495, %v2516
      %v2533 = vadd.f32 %v2496, %v2517
      %v2534 = vadd.f32 %v2497, %v2518
      %v2535 = vadd.f32 %v2498, %v2519
      %v2536 = vadd.f32 %v2499, %v2520
      %v2537 = vld [vmem:[%s4 + $0x7] sm:$0x1]
      %v2538 = vlaneseq
      %v2539 = vshrl.u32 %v2538, 7
      %v2540 = vsub.s32 0, %v2539
      %v2541 = vrot.slane %v2537, %v2540
      %v2542 = vmul.f32 %v2455, %v2541
      %v2543 = vmul.f32 %v2445, %v2541
      %v2544 = vmul.f32 %v2456, %v2541
      %v2545 = vmul.f32 %v2446, %v2541
      %v2546 = vmul.f32 %v2457, %v2541
      %v2547 = vmul.f32 %v2447, %v2541
      %v2548 = vmul.f32 %v2458, %v2541
      %v2549 = vmul.f32 %v2448, %v2541
      %v2550 = vmul.f32 %v2459, %v2541
      %v2551 = vmul.f32 %v2449, %v2541
      %v2552 = vmul.f32 %v2460, %v2541
      %v2553 = vmul.f32 %v2450, %v2541
      %v2554 = vmul.f32 %v2461, %v2541
      %v2555 = vmul.f32 %v2451, %v2541
      %v2556 = vmul.f32 %v2462, %v2541
      %v2557 = vmul.f32 %v2452, %v2541
      %v2558 = vadd.f32 %v2521, %v2542
      %v2559 = vadd.f32 %v2522, %v2543
      %v2560 = vadd.f32 %v2523, %v2544
      %v2561 = vadd.f32 %v2524, %v2545
      %v2562 = vadd.f32 %v2525, %v2546
      %v2563 = vadd.f32 %v2526, %v2547
      %v2564 = vadd.f32 %v2527, %v2548
      %v2565 = vadd.f32 %v2528, %v2549
      %v2566 = vadd.f32 %v2529, %v2550
      %v2567 = vadd.f32 %v2530, %v2551
      %v2568 = vadd.f32 %v2531, %v2552
      %v2569 = vadd.f32 %v2532, %v2553
      %v2570 = vadd.f32 %v2533, %v2554
      %v2571 = vadd.f32 %v2534, %v2555
      %v2572 = vadd.f32 %v2535, %v2556
      %v2573 = vadd.f32 %v2536, %v2557
      %v2574 = vrot.slane %v2269, 2
      %v2575 = vrot.slane %v2272, 2
      %v2576 = vrot.slane %v2275, 2
      %v2577 = vrot.slane %v2278, 2
      %v2578 = vrot.slane %v2281, 2
      %v2579 = vrot.slane %v2284, 2
      %v2580 = vrot.slane %v2287, 2
      %v2581 = vrot.slane %v2290, 2
      %v2582 = vrot.slane %v2293, 2
      %v2583 = vrot.slane %v2296, 2
      %v2584 = vrot.slane %v2270, 2
      %v2585 = vrot.slane %v2273, 2
      %v2586 = vrot.slane %v2276, 2
      %v2587 = vrot.slane %v2279, 2
      %v2588 = vrot.slane %v2282, 2
      %v2589 = vrot.slane %v2285, 2
      %v2590 = vrot.slane %v2288, 2
      %v2591 = vrot.slane %v2291, 2
      %v2592 = vrot.slane %v2294, 2
      %v2593 = vrot.slane %v2297, 2
      %v2594 = vrot.slane %v2271, 2
      %v2595 = vrot.slane %v2274, 2
      %v2596 = vrot.slane %v2277, 2
      %v2597 = vrot.slane %v2280, 2
      %v2598 = vrot.slane %v2283, 2
      %v2599 = vrot.slane %v2286, 2
      %v2600 = vrot.slane %v2289, 2
      %v2601 = vrot.slane %v2292, 2
      %v2602 = vrot.slane %v2295, 2
      %v2603 = vrot.slane %v2298, 2
      %vm2604 = vcmp.lt.s32.totalorder %v2441, 6
      %v2605 = vsel %vm2604, %v2584, %v2594
      %v2606 = vsel %vm2604, %v2585, %v2595
      %v2607 = vsel %vm2604, %v2586, %v2596
      %v2608 = vsel %vm2604, %v2587, %v2597
      %v2609 = vsel %vm2604, %v2588, %v2598
      %v2610 = vsel %vm2604, %v2589, %v2599
      %v2611 = vsel %vm2604, %v2590, %v2600
      %v2612 = vsel %vm2604, %v2591, %v2601
      %v2613 = vsel %vm2604, %v2592, %v2602
      %v2614 = vsel %vm2604, %v2593, %v2603
      %v2615 = vsel %vm2604, %v2574, %v2584
      %v2616 = vsel %vm2604, %v2575, %v2585
      %v2617 = vsel %vm2604, %v2576, %v2586
      %v2618 = vsel %vm2604, %v2577, %v2587
      %v2619 = vsel %vm2604, %v2578, %v2588
      %v2620 = vsel %vm2604, %v2579, %v2589
      %v2621 = vsel %vm2604, %v2580, %v2590
      %v2622 = vsel %vm2604, %v2581, %v2591
      %v2623 = vsel %vm2604, %v2582, %v2592
      %v2624 = vsel %vm2604, %v2583, %v2593
      %v2625 = vld [vmem:[%s4 + $0x2] sm:$0x1]
      %v2626 = vlaneseq
      %v2627 = vshrl.u32 %v2626, 7
      %v2628 = vsub.s32 0, %v2627
      %v2629 = vrot.slane %v2625, %v2628
      %v2630 = vmul.f32 %v2615, %v2629
      %v2631 = vmul.f32 %v2605, %v2629
      %v2632 = vmul.f32 %v2616, %v2629
      %v2633 = vmul.f32 %v2606, %v2629
      %v2634 = vmul.f32 %v2617, %v2629
      %v2635 = vmul.f32 %v2607, %v2629
      %v2636 = vmul.f32 %v2618, %v2629
      %v2637 = vmul.f32 %v2608, %v2629
      %v2638 = vmul.f32 %v2619, %v2629
      %v2639 = vmul.f32 %v2609, %v2629
      %v2640 = vmul.f32 %v2620, %v2629
      %v2641 = vmul.f32 %v2610, %v2629
      %v2642 = vmul.f32 %v2621, %v2629
      %v2643 = vmul.f32 %v2611, %v2629
      %v2644 = vmul.f32 %v2622, %v2629
      %v2645 = vmul.f32 %v2612, %v2629
      %v2646 = vadd.f32 %v2558, %v2630
      %v2647 = vadd.f32 %v2559, %v2631
      %v2648 = vadd.f32 %v2560, %v2632
      %v2649 = vadd.f32 %v2561, %v2633
      %v2650 = vadd.f32 %v2562, %v2634
      %v2651 = vadd.f32 %v2563, %v2635
      %v2652 = vadd.f32 %v2564, %v2636
      %v2653 = vadd.f32 %v2565, %v2637
      %v2654 = vadd.f32 %v2566, %v2638
      %v2655 = vadd.f32 %v2567, %v2639
      %v2656 = vadd.f32 %v2568, %v2640
      %v2657 = vadd.f32 %v2569, %v2641
      %v2658 = vadd.f32 %v2570, %v2642
      %v2659 = vadd.f32 %v2571, %v2643
      %v2660 = vadd.f32 %v2572, %v2644
      %v2661 = vadd.f32 %v2573, %v2645
      %v2662 = vld [vmem:[%s4 + $0x5] sm:$0x1]
      %v2663 = vlaneseq
      %v2664 = vshrl.u32 %v2663, 7
      %v2665 = vsub.s32 0, %v2664
      %v2666 = vrot.slane %v2662, %v2665
      %v2667 = vmul.f32 %v2616, %v2666
      %v2668 = vmul.f32 %v2606, %v2666
      %v2669 = vmul.f32 %v2617, %v2666
      %v2670 = vmul.f32 %v2607, %v2666
      %v2671 = vmul.f32 %v2618, %v2666
      %v2672 = vmul.f32 %v2608, %v2666
      %v2673 = vmul.f32 %v2619, %v2666
      %v2674 = vmul.f32 %v2609, %v2666
      %v2675 = vmul.f32 %v2620, %v2666
      %v2676 = vmul.f32 %v2610, %v2666
      %v2677 = vmul.f32 %v2621, %v2666
      %v2678 = vmul.f32 %v2611, %v2666
      %v2679 = vmul.f32 %v2622, %v2666
      %v2680 = vmul.f32 %v2612, %v2666
      %v2681 = vmul.f32 %v2623, %v2666
      %v2682 = vmul.f32 %v2613, %v2666
      %v2683 = vadd.f32 %v2646, %v2667
      %v2684 = vadd.f32 %v2647, %v2668
      %v2685 = vadd.f32 %v2648, %v2669
      %v2686 = vadd.f32 %v2649, %v2670
      %v2687 = vadd.f32 %v2650, %v2671
      %v2688 = vadd.f32 %v2651, %v2672
      %v2689 = vadd.f32 %v2652, %v2673
      %v2690 = vadd.f32 %v2653, %v2674
      %v2691 = vadd.f32 %v2654, %v2675
      %v2692 = vadd.f32 %v2655, %v2676
      %v2693 = vadd.f32 %v2656, %v2677
      %v2694 = vadd.f32 %v2657, %v2678
      %v2695 = vadd.f32 %v2658, %v2679
      %v2696 = vadd.f32 %v2659, %v2680
      %v2697 = vadd.f32 %v2660, %v2681
      %v2698 = vadd.f32 %v2661, %v2682
      %v2699 = vld [vmem:[%s4 + $0x8] sm:$0x1]
      %v2700 = vlaneseq
      %v2701 = vshrl.u32 %v2700, 7
      %v2702 = vsub.s32 0, %v2701
      %v2703 = vrot.slane %v2699, %v2702
      %v2704 = vmul.f32 %v2617, %v2703
      %v2705 = vmul.f32 %v2607, %v2703
      %v2706 = vmul.f32 %v2618, %v2703
      %v2707 = vmul.f32 %v2608, %v2703
      %v2708 = vmul.f32 %v2619, %v2703
      %v2709 = vmul.f32 %v2609, %v2703
      %v2710 = vmul.f32 %v2620, %v2703
      %v2711 = vmul.f32 %v2610, %v2703
      %v2712 = vmul.f32 %v2621, %v2703
      %v2713 = vmul.f32 %v2611, %v2703
      %v2714 = vmul.f32 %v2622, %v2703
      %v2715 = vmul.f32 %v2612, %v2703
      %v2716 = vmul.f32 %v2623, %v2703
      %v2717 = vmul.f32 %v2613, %v2703
      %v2718 = vmul.f32 %v2624, %v2703
      %v2719 = vmul.f32 %v2614, %v2703
      %v2720 = vadd.f32 %v2683, %v2704
      %v2721 = vadd.f32 %v2684, %v2705
      %v2722 = vadd.f32 %v2685, %v2706
      %v2723 = vadd.f32 %v2686, %v2707
      %v2724 = vadd.f32 %v2687, %v2708
      %v2725 = vadd.f32 %v2688, %v2709
      %v2726 = vadd.f32 %v2689, %v2710
      %v2727 = vadd.f32 %v2690, %v2711
      %v2728 = vadd.f32 %v2691, %v2712
      %v2729 = vadd.f32 %v2692, %v2713
      %v2730 = vadd.f32 %v2693, %v2714
      %v2731 = vadd.f32 %v2694, %v2715
      %v2732 = vadd.f32 %v2695, %v2716
      %v2733 = vadd.f32 %v2696, %v2717
      %v2734 = vadd.f32 %v2697, %v2718
      %v2735 = vadd.f32 %v2698, %v2719
      %v2736 = vld [vmem:[%s5] sm:$0x1]
      %v2738 = vlaneseq
      %v2739 = vshrl.u32 %v2738, 7
      %v2740 = vsub.s32 0, %v2739
      %v2741 = vrot.slane %v2736, %v2740
      %v2743 = vmul.f32 %v2720, %v2741
      %v2744 = vmul.f32 %v2721, %v2741
      %v2745 = vmul.f32 %v2722, %v2741
      %v2746 = vmul.f32 %v2723, %v2741
      %v2747 = vmul.f32 %v2724, %v2741
      %v2748 = vmul.f32 %v2725, %v2741
      %v2749 = vmul.f32 %v2726, %v2741
      %v2750 = vmul.f32 %v2727, %v2741
      %v2751 = vmul.f32 %v2728, %v2741
      %v2752 = vmul.f32 %v2729, %v2741
      %v2753 = vmul.f32 %v2730, %v2741
      %v2754 = vmul.f32 %v2731, %v2741
      %v2755 = vmul.f32 %v2732, %v2741
      %v2756 = vmul.f32 %v2733, %v2741
      %v2757 = vmul.f32 %v2734, %v2741
      %v2758 = vmul.f32 %v2735, %v2741
      %v2759 = vld [vmem:[%s6] sm:$0x1]
      %v2761 = vlaneseq
      %v2762 = vshrl.u32 %v2761, 7
      %v2763 = vsub.s32 0, %v2762
      %v2764 = vrot.slane %v2759, %v2763
      %v2766 = vadd.f32 %v2743, %v2764
      %v2767 = vadd.f32 %v2744, %v2764
      %v2768 = vadd.f32 %v2745, %v2764
      %v2769 = vadd.f32 %v2746, %v2764
      %v2770 = vadd.f32 %v2747, %v2764
      %v2771 = vadd.f32 %v2748, %v2764
      %v2772 = vadd.f32 %v2749, %v2764
      %v2773 = vadd.f32 %v2750, %v2764
      %v2774 = vadd.f32 %v2751, %v2764
      %v2775 = vadd.f32 %v2752, %v2764
      %v2776 = vadd.f32 %v2753, %v2764
      %v2777 = vadd.f32 %v2754, %v2764
      %v2778 = vadd.f32 %v2755, %v2764
      %v2779 = vadd.f32 %v2756, %v2764
      %v2780 = vadd.f32 %v2757, %v2764
      %v2781 = vadd.f32 %v2758, %v2764
      %v2782 = vmax.f32 %v2766, 0.0
      %v2783 = vmax.f32 %v2767, 0.0
      %v2784 = vmax.f32 %v2768, 0.0
      %v2785 = vmax.f32 %v2769, 0.0
      %v2786 = vmax.f32 %v2770, 0.0
      %v2787 = vmax.f32 %v2771, 0.0
      %v2788 = vmax.f32 %v2772, 0.0
      %v2789 = vmax.f32 %v2773, 0.0
      %v2790 = vmax.f32 %v2774, 0.0
      %v2791 = vmax.f32 %v2775, 0.0
      %v2792 = vmax.f32 %v2776, 0.0
      %v2793 = vmax.f32 %v2777, 0.0
      %v2794 = vmax.f32 %v2778, 0.0
      %v2795 = vmax.f32 %v2779, 0.0
      %v2796 = vmax.f32 %v2780, 0.0
      %v2797 = vmax.f32 %v2781, 0.0
      %v2798 = vpack.c.bf16 %v2783, %v2782
      %v2799 = vpack.c.bf16 %v2785, %v2784
      %v2800 = vpack.c.bf16 %v2787, %v2786
      %v2801 = vpack.c.bf16 %v2789, %v2788
      %v2802 = vpack.c.bf16 %v2791, %v2790
      %v2803 = vpack.c.bf16 %v2793, %v2792
      %v2804 = vpack.c.bf16 %v2795, %v2794
      %v2805 = vpack.c.bf16 %v2797, %v2796
      %v2806 = vld [vmem:[%s7] sm:$0xff]
      %v2807 = vld [vmem:[%s7 + $0x8] sm:$0xff]
      %v2808 = vld [vmem:[%s7 + $0x10] sm:$0xff]
      %v2809 = vpack.c.bf16 %v2807, %v2806
      %v2810 = vpack.c.bf16 %v2808, %v2808
      %vm2811 = vcmask 195584
      %v2813 = vsel %vm2811, %v2798, 0
      %v2816 = vsel %vm2811, %v2799, 0
      %v2819 = vsel %vm2811, %v2800, 0
      %v2822 = vsel %vm2811, %v2801, 0
      %v2825 = vsel %vm2811, %v2802, 0
      %v2828 = vsel %vm2811, %v2803, 0
      %v2831 = vsel %vm2811, %v2804, 0
      %v2834 = vsel %vm2811, %v2805, 0
      %vm2836 = vcmask 1043456
      %v2838 = vsel %vm2836, %v2810, 0
      %2840 = vmatprep.subr.bf16.mxu0 0
      %2841 = vmatpush1.bf16.msra.mxu0 %v2809
      %2842 = vmatprep.subr.bf16.mxu0 0
      %2843 = vmatpush1.bf16.msra.mxu0 %v2838
      %2844 = vmatprep.subr.bf16.mxu0 0
      %2845 = vmatpush1.bf16.msra.mxu0 0
      %2846 = vmatprep.subr.bf16.mxu0 0
      %2847 = vmatpush1.bf16.msra.mxu0 0
      %2848 = vmatprep.subr.bf16.mxu0 0
      %2849 = vmatpush1.bf16.msra.mxu0 0
      %2850 = vmatprep.subr.bf16.mxu0 0
      %2851 = vmatpush1.bf16.msra.mxu0 0
      %2852 = vmatprep.subr.bf16.mxu0 0
      %2853 = vmatpush1.bf16.msra.mxu0 0
      %2854 = vmatprep.subr.bf16.mxu0 0
      %2855 = vmatpush1.bf16.msra.mxu0 0
      %2856 = vmatprep.subr.bf16.mxu0 0
      %2857 = vmatpush1.bf16.msra.mxu0 0
      %2858 = vmatprep.subr.bf16.mxu0 0
      %2859 = vmatpush1.bf16.msra.mxu0 0
      %2860 = vmatprep.subr.bf16.mxu0 0
      %2861 = vmatpush1.bf16.msra.mxu0 0
      %2862 = vmatprep.subr.bf16.mxu0 0
      %2863 = vmatpush1.bf16.msra.mxu0 0
      %2864 = vmatprep.subr.bf16.mxu0 0
      %2865 = vmatpush1.bf16.msra.mxu0 0
      %2866 = vmatprep.subr.bf16.mxu0 0
      %2867 = vmatpush1.bf16.msra.mxu0 0
      %2868 = vmatprep.subr.bf16.mxu0 0
      %2869 = vmatpush1.bf16.msra.mxu0 0
      %2870 = vmatprep.subr.bf16.mxu0 0
      %2871 = vmatpush1.bf16.msra.mxu0 0
      %2872 = vmatprep.mubr.bf16.mxu0 0
      %2873 = vmatmul.mubr.bf16.gmra.mrb[0].mxu0 %v2813
      %v2874 = vpop.f32.mrb[0].mxu0
      %v2875 = vadd.f32 0.0, %v2874
      %v2876 = vpop.f32.mrb[0].mxu0
      %v2877 = vpop.f32.mrb[0].mxu0
      %v2878 = vadd.f32 0.0, %v2877
      %v2879 = vpop.f32.mrb[0].mxu0
      %2880 = vmatprep.mubr.bf16.mxu0 0
      %2881 = vmatmul.mubr.bf16.gmra.mrb[0].mxu0 %v2816
      %v2882 = vpop.f32.mrb[0].mxu0
      %v2883 = vadd.f32 0.0, %v2882
      %v2884 = vpop.f32.mrb[0].mxu0
      %v2885 = vpop.f32.mrb[0].mxu0
      %v2886 = vadd.f32 0.0, %v2885
      %v2887 = vpop.f32.mrb[0].mxu0
      %2888 = vmatprep.mubr.bf16.mxu0 0
      %2889 = vmatmul.mubr.bf16.gmra.mrb[0].mxu0 %v2819
      %v2890 = vpop.f32.mrb[0].mxu0
      %v2891 = vadd.f32 0.0, %v2890
      %v2892 = vpop.f32.mrb[0].mxu0
      %v2893 = vpop.f32.mrb[0].mxu0
      %v2894 = vadd.f32 0.0, %v2893
      %v2895 = vpop.f32.mrb[0].mxu0
      %2896 = vmatprep.mubr.bf16.mxu0 0
      %2897 = vmatmul.mubr.bf16.gmra.mrb[0].mxu0 %v2822
      %v2898 = vpop.f32.mrb[0].mxu0
      %v2899 = vadd.f32 0.0, %v2898
      %v2900 = vpop.f32.mrb[0].mxu0
      %v2901 = vpop.f32.mrb[0].mxu0
      %v2902 = vadd.f32 0.0, %v2901
      %v2903 = vpop.f32.mrb[0].mxu0
      %2904 = vmatprep.mubr.bf16.mxu0 0
      %2905 = vmatmul.mubr.bf16.gmra.mrb[0].mxu0 %v2825
      %v2906 = vpop.f32.mrb[0].mxu0
      %v2907 = vadd.f32 0.0, %v2906
      %v2908 = vpop.f32.mrb[0].mxu0
      %v2909 = vpop.f32.mrb[0].mxu0
      %v2910 = vadd.f32 0.0, %v2909
      %v2911 = vpop.f32.mrb[0].mxu0
      %2912 = vmatprep.mubr.bf16.mxu0 0
      %2913 = vmatmul.mubr.bf16.gmra.mrb[0].mxu0 %v2828
      %v2914 = vpop.f32.mrb[0].mxu0
      %v2915 = vadd.f32 0.0, %v2914
      %v2916 = vpop.f32.mrb[0].mxu0
      %v2917 = vpop.f32.mrb[0].mxu0
      %v2918 = vadd.f32 0.0, %v2917
      %v2919 = vpop.f32.mrb[0].mxu0
      %2920 = vmatprep.mubr.bf16.mxu0 0
      %2921 = vmatmul.mubr.bf16.gmra.mrb[0].mxu0 %v2831
      %v2922 = vpop.f32.mrb[0].mxu0
      %v2923 = vadd.f32 0.0, %v2922
      %v2924 = vpop.f32.mrb[0].mxu0
      %v2925 = vpop.f32.mrb[0].mxu0
      %v2926 = vadd.f32 0.0, %v2925
      %v2927 = vpop.f32.mrb[0].mxu0
      %2928 = vmatprep.mubr.bf16.mxu0 0
      %2929 = vmatmul.mubr.bf16.gmra.mrb[0].mxu0 %v2834
      %v2930 = vpop.f32.mrb[0].mxu0
      %v2931 = vadd.f32 0.0, %v2930
      %v2932 = vpop.f32.mrb[0].mxu0
      %v2933 = vpop.f32.mrb[0].mxu0
      %v2934 = vadd.f32 0.0, %v2933
      %v2935 = vpop.f32.mrb[0].mxu0
      %2936 = vdwg.mxu0
      %v2937 = vld [vmem:[%s8] sm:$0x1]
      %v2939 = vlaneseq
      %v2940 = vshrl.u32 %v2939, 7
      %v2941 = vsub.s32 0, %v2940
      %v2942 = vrot.slane %v2937, %v2941
      %v2944 = vmul.f32 %v2875, %v2942
      %v2945 = vmul.f32 %v2878, %v2942
      %v2946 = vmul.f32 %v2883, %v2942
      %v2947 = vmul.f32 %v2886, %v2942
      %v2948 = vmul.f32 %v2891, %v2942
      %v2949 = vmul.f32 %v2894, %v2942
      %v2950 = vmul.f32 %v2899, %v2942
      %v2951 = vmul.f32 %v2902, %v2942
      %v2952 = vmul.f32 %v2907, %v2942
      %v2953 = vmul.f32 %v2910, %v2942
      %v2954 = vmul.f32 %v2915, %v2942
      %v2955 = vmul.f32 %v2918, %v2942
      %v2956 = vmul.f32 %v2923, %v2942
      %v2957 = vmul.f32 %v2926, %v2942
      %v2958 = vmul.f32 %v2931, %v2942
      %v2959 = vmul.f32 %v2934, %v2942
      %v2960 = vld [vmem:[%s9] sm:$0x1]
      %v2962 = vlaneseq
      %v2963 = vshrl.u32 %v2962, 7
      %v2964 = vsub.s32 0, %v2963
      %v2965 = vrot.slane %v2960, %v2964
      %v2967 = vadd.f32 %v2944, %v2965
      %v2968 = vadd.f32 %v2945, %v2965
      %v2969 = vadd.f32 %v2946, %v2965
      %v2970 = vadd.f32 %v2947, %v2965
      %v2971 = vadd.f32 %v2948, %v2965
      %v2972 = vadd.f32 %v2949, %v2965
      %v2973 = vadd.f32 %v2950, %v2965
      %v2974 = vadd.f32 %v2951, %v2965
      %v2975 = vadd.f32 %v2952, %v2965
      %v2976 = vadd.f32 %v2953, %v2965
      %v2977 = vadd.f32 %v2954, %v2965
      %v2978 = vadd.f32 %v2955, %v2965
      %v2979 = vadd.f32 %v2956, %v2965
      %v2980 = vadd.f32 %v2957, %v2965
      %v2981 = vadd.f32 %v2958, %v2965
      %v2982 = vadd.f32 %v2959, %v2965
      %v2983 = vld [vmem:[%s420] sm:$0x1]
      %vm2984 = vcmask 130048
      %v2985 = vsel %vm2984, %v2967, 0.0
      %v2986 = vsel %vm2984, %v2968, 0.0
      %v2987 = vadd.f32 %v2985, %v2986
      %v2988 = vsel %vm2984, %v2969, 0.0
      %v2989 = vadd.f32 %v2987, %v2988
      %v2990 = vsel %vm2984, %v2970, 0.0
      %v2991 = vadd.f32 %v2989, %v2990
      %v2992 = vsel %vm2984, %v2971, 0.0
      %v2993 = vadd.f32 %v2991, %v2992
      %v2994 = vsel %vm2984, %v2972, 0.0
      %v2995 = vadd.f32 %v2993, %v2994
      %v2996 = vsel %vm2984, %v2973, 0.0
      %v2997 = vadd.f32 %v2995, %v2996
      %v2998 = vsel %vm2984, %v2974, 0.0
      %v2999 = vadd.f32 %v2997, %v2998
      %v3000 = vsel %vm2984, %v2975, 0.0
      %v3001 = vadd.f32 %v2999, %v3000
      %v3002 = vsel %vm2984, %v2976, 0.0
      %v3003 = vadd.f32 %v3001, %v3002
      %v3004 = vsel %vm2984, %v2977, 0.0
      %v3005 = vadd.f32 %v3003, %v3004
      %v3006 = vsel %vm2984, %v2978, 0.0
      %v3007 = vadd.f32 %v3005, %v3006
      %v3008 = vsel %vm2984, %v2979, 0.0
      %v3009 = vadd.f32 %v3007, %v3008
      %v3010 = vsel %vm2984, %v2980, 0.0
      %v3011 = vadd.f32 %v3009, %v3010
      %v3012 = vsel %vm2984, %v2981, 0.0
      %v3013 = vadd.f32 %v3011, %v3012
      %v3014 = vsel %vm2984, %v2982, 0.0
      %v3015 = vadd.f32 %v3013, %v3014
      %v3016 = vrot.slane %v3015, 4
      %v3017 = vadd.f32 %v3015, %v3016
      %v3018 = vrot.slane %v3017, 2
      %v3019 = vadd.f32 %v3017, %v3018
      %v3020 = vrot.slane %v3019, 1
      %v3021 = vadd.f32 %v3019, %v3020
      %v3022 = vmul.f32 %v3021, 0.00390625
      %v3023 = vadd.f32 %v2983, %v3022
      %vm3024 = vcmask 122880
      %3025 = vst.msk [vmem:[%s420] sm:$0x1] %vm3024, %v3023
      %v3026 = vpack.c.bf16 %v2968, %v2967
      %v3027 = vpack.c.bf16 %v2970, %v2969
      %v3028 = vpack.c.bf16 %v2972, %v2971
      %v3029 = vpack.c.bf16 %v2974, %v2973
      %v3030 = vpack.c.bf16 %v2976, %v2975
      %v3031 = vpack.c.bf16 %v2978, %v2977
      %v3032 = vpack.c.bf16 %v2980, %v2979
      %v3033 = vpack.c.bf16 %v2982, %v2981
      %v3035 = vunpack.c.l.b16 %v3026
      %v3036 = vunpack.c.h.b16 %v3026
      %v3037 = vpack.c.b16 %v3035, %v3035
      %v3038 = vpack.c.b16 %v3036, %v3036
      %vm3041 = vcmask 125952
      %3042 = vst.msk [vmem:[%s416] sm:$0xf] %vm3041, %v3037
      %3043 = vst.msk [vmem:[%s416 + $0x4] sm:$0xf] %vm3041, %v3038
      %v3045 = vunpack.c.l.b16 %v3027
      %v3046 = vunpack.c.h.b16 %v3027
      %v3047 = vpack.c.b16 %v3045, %v3045
      %v3048 = vpack.c.b16 %v3046, %v3046
      %s3051 = scalar_lea.vmem %s416, 8
      %3052 = vst.msk [vmem:[%s3051] sm:$0xf] %vm3041, %v3047
      %3053 = vst.msk [vmem:[%s3051 + $0x4] sm:$0xf] %vm3041, %v3048
      %v3055 = vunpack.c.l.b16 %v3028
      %v3056 = vunpack.c.h.b16 %v3028
      %v3057 = vpack.c.b16 %v3055, %v3055
      %v3058 = vpack.c.b16 %v3056, %v3056
      %s3061 = scalar_lea.vmem %s416, 16
      %3062 = vst.msk [vmem:[%s3061] sm:$0xf] %vm3041, %v3057
      %3063 = vst.msk [vmem:[%s3061 + $0x4] sm:$0xf] %vm3041, %v3058
      %v3065 = vunpack.c.l.b16 %v3029
      %v3066 = vunpack.c.h.b16 %v3029
      %v3067 = vpack.c.b16 %v3065, %v3065
      %v3068 = vpack.c.b16 %v3066, %v3066
      %s3071 = scalar_lea.vmem %s416, 24
      %3072 = vst.msk [vmem:[%s3071] sm:$0xf] %vm3041, %v3067
      %3073 = vst.msk [vmem:[%s3071 + $0x4] sm:$0xf] %vm3041, %v3068
      %v3075 = vunpack.c.l.b16 %v3030
      %v3076 = vunpack.c.h.b16 %v3030
      %v3077 = vpack.c.b16 %v3075, %v3075
      %v3078 = vpack.c.b16 %v3076, %v3076
      %s3081 = scalar_lea.vmem %s416, 32
      %3082 = vst.msk [vmem:[%s3081] sm:$0xf] %vm3041, %v3077
      %3083 = vst.msk [vmem:[%s3081 + $0x4] sm:$0xf] %vm3041, %v3078
      %v3085 = vunpack.c.l.b16 %v3031
      %v3086 = vunpack.c.h.b16 %v3031
      %v3087 = vpack.c.b16 %v3085, %v3085
      %v3088 = vpack.c.b16 %v3086, %v3086
      %s3091 = scalar_lea.vmem %s416, 40
      %3092 = vst.msk [vmem:[%s3091] sm:$0xf] %vm3041, %v3087
      %3093 = vst.msk [vmem:[%s3091 + $0x4] sm:$0xf] %vm3041, %v3088
      %v3095 = vunpack.c.l.b16 %v3032
      %v3096 = vunpack.c.h.b16 %v3032
      %v3097 = vpack.c.b16 %v3095, %v3095
      %v3098 = vpack.c.b16 %v3096, %v3096
      %s3101 = scalar_lea.vmem %s416, 48
      %3102 = vst.msk [vmem:[%s3101] sm:$0xf] %vm3041, %v3097
      %3103 = vst.msk [vmem:[%s3101 + $0x4] sm:$0xf] %vm3041, %v3098
      %v3105 = vunpack.c.l.b16 %v3033
      %v3106 = vunpack.c.h.b16 %v3033
      %v3107 = vpack.c.b16 %v3105, %v3105
      %v3108 = vpack.c.b16 %v3106, %v3106
      %s3111 = scalar_lea.vmem %s416, 56
      %3112 = vst.msk [vmem:[%s3111] sm:$0xf] %vm3041, %v3107
      %3113 = vst.msk [vmem:[%s3111 + $0x4] sm:$0xf] %vm3041, %v3108
      %s3114 = smul.u32 8, %s28
      %p3115 = scmp.lt.s32.totalorder %s27, 1
      %s3116 = scalar_select %p3115, %s27, 1
      %p3117 = scmp.lt.s32.totalorder %s3114, 15
      %s3118 = scalar_select %p3117, %s3114, 15
      %s3119 = smul.addr %s3118, 2
      %s3120 = smul.addr %s3116, 32
      %s3121 = sadd.s32 %s3119, %s3120
      %s3122 = smul.addr %s3121, 4
      %s3123 = scalar_lea.vmem %s10, %s3122
      %p3124 = scmp.lt.s32.totalorder %s27, 1
      %s3125 = scalar_select %p3124, %s27, 1
      %s3126 = scalar_lea.vmem %s11, %s3125
      // Predicated region
      $region65: #{inverted_residual_forward.3} parent=59 // pred_check
        %p3127 = pneg %p270
      $region66: #{inverted_residual_forward.3} parent=59 // pred_check_branch
        %3129 = sbr.rel (%p3127) target = $region68
      $region67: #{inverted_residual_forward.3} parent=59 // pred_region
        %s3130 = smul.u32 8, %s28
      $region68: #{inverted_residual_forward.3} parent=59 // pred_fallthru
        _
      // Predicated region
      $region69: #{inverted_residual_forward.3} parent=59 // pred_check
        %p3131 = pneg %p296
      $region70: #{inverted_residual_forward.3} parent=59 // pred_check_branch
        %3133 = sbr.rel (%p3131) target = $region72
      $region71: #{inverted_residual_forward.3} parent=59 // pred_region
        _
      $region72: #{inverted_residual_forward.3} parent=59 // pred_fallthru
        _
    $region60: #{inverted_residual_forward.3} parent=5 // pred_fallthru
      _
    %p3134 = scmp.le.s32.totalorder 2, %s18
    // Predicated region
    $region73: #{inverted_residual_forward.3} parent=5 // pred_check
      %p3135 = pneg %p3134
    $region74: #{inverted_residual_forward.3} parent=5 // pred_check_branch
      %3137 = sbr.rel (%p3135) target = $region76
    $region75: #{inverted_residual_forward.3} parent=5 // pred_region
      %s3138 = ssub.s32 %s18, 2
      // Predicated region
      $region77: #{inverted_residual_forward.3} parent=75 // pred_check
        %p3139 = pneg %p276
      $region78: #{inverted_residual_forward.3} parent=75 // pred_check_branch
        %3141 = sbr.rel (%p3139) target = $region80
      $region79: #{inverted_residual_forward.3} parent=75 // pred_region
        %s3142 = smul.u32 8, %s30
        %p3143 = scmp.lt.s32.totalorder %s29, 1
        %s3144 = scalar_select %p3143, %s29, 1
        %p3145 = scmp.lt.s32.totalorder %s3142, 15
        %s3146 = scalar_select %p3145, %s3142, 15
        %s3147 = smul.addr %s3146, 2
        %s3148 = smul.addr %s3144, 32
        %s3149 = sadd.s32 %s3147, %s3148
        %s3150 = smul.addr %s3149, 4
        %s3151 = scalar_lea.vmem %s10, %s3150
      $region80: #{inverted_residual_forward.3} parent=75 // pred_fallthru
        _
      // Predicated region
      $region81: #{inverted_residual_forward.3} parent=75 // pred_check
        %p3152 = pneg %p302
      $region82: #{inverted_residual_forward.3} parent=75 // pred_check_branch
        %3154 = sbr.rel (%p3152) target = $region84
      $region83: #{inverted_residual_forward.3} parent=75 // pred_region
        %p3155 = scmp.lt.s32.totalorder %s29, 1
        %s3156 = scalar_select %p3155, %s29, 1
        %s3157 = scalar_lea.vmem %s11, %s3156
      $region84: #{inverted_residual_forward.3} parent=75 // pred_fallthru
        _
    $region76: #{inverted_residual_forward.3} parent=5 // pred_fallthru
      _
  $region6: #{inverted_residual_forward.3} parent=0 // loop_footer
    %s22 = sadd.s32 1, %s18
  $region7: #{inverted_residual_forward.3} parent=0 // loop_footer_branch
    %17 = sbr.rel target = $region3
  $region8: #{inverted_residual_forward.3} parent=0 // loop_exit
    _

</llo_original>
